<compile_context>
chip_gen: v7x
topology: tpu7x:2x2x1
jax: 0.10.0
libtpu: 0.0.40
codegen_flags: <defaults>
</compile_context>

<pallas_src>
import functools

import jax
import jax.numpy as jnp
import numpy as np
from jax.experimental import pallas as pl
from jax.experimental.pallas import tpu as pltpu


# ------------------------------ helpers ----------------------------------- #
def _round_up(v, m):
    return -(-v // m) * m


def _choose_spt(n, lp, max_rows):
    """Largest divisor of n whose tile (spt*lp rows) fits the row budget."""
    best = 1
    for d in range(1, n + 1):
        if n % d == 0 and d * lp <= max(max_rows, lp):
            best = d
    return best


def _fold_bn(s_sum, s_sq, g, b, count, eps):
    """Training-mode BatchNorm folded to a single per-channel scale/shift."""
    mean = s_sum * (1.0 / count)
    var = jnp.maximum(s_sq * (1.0 / count) - mean * mean, 0.0)
    scale = g * jax.lax.rsqrt(var + eps)
    return scale, b - mean * scale


def _conv1_taps(xc_ref, xs_ref, w1p_ref, w1c_ref, w1n_ref, *, spt, lp, l_out, stride):
    """conv1 (k=3, stride folded by the wrapper) as 3 accumulating MXU dots.

    xc[l] = x[stride*l] (centre tap), xs[l] = x[stride*l + 1] (next tap, conv
    zero-padding already applied by the wrapper).  The previous tap
    x[stride*l - 1] is rebuilt in-kernel with a sublane roll + boundary mask so
    the activation is never tripled in HBM.  Padded rows (l >= l_out) stay
    exactly zero so BN partial sums need no extra masking.
    """
    xc = xc_ref[...]                                   # (rows, c_in) bf16
    xs = xs_ref[...]
    rows, c_in = xc.shape
    lpos = jax.lax.broadcasted_iota(jnp.int32, (spt, lp, c_in), 1).reshape(rows, c_in)
    prev_src = xc if stride == 1 else xs               # roll(.,1)[l] == x[stride*l - 1]
    rolled = pltpu.roll(prev_src.astype(jnp.float32), 1, axis=0)
    xp = jnp.where((lpos == 0) | (lpos >= l_out), 0.0, rolled).astype(jnp.bfloat16)

    def mm(a, w_ref):
        return jnp.dot(a, w_ref[...], preferred_element_type=jnp.float32)

    return mm(xp, w1p_ref) + mm(xc, w1c_ref) + mm(xs, w1n_ref)   # (rows, c_pad) f32


# ------------------------------ kernels ------------------------------------ #
def _phase1_kernel(xc_ref, xs_ref, w1p_ref, w1c_ref, w1n_ref, wd_ref, st1_ref,
                   *, spt, lp, l_out, stride):
    """Per-tile partial sums / sums-of-squares for bn1 (conv1) and bnd (downsample)."""
    h1 = _conv1_taps(xc_ref, xs_ref, w1p_ref, w1c_ref, w1n_ref,
                     spt=spt, lp=lp, l_out=l_out, stride=stride)
    r = jnp.dot(xc_ref[...], wd_ref[...], preferred_element_type=jnp.float32)
    z = jnp.zeros((1, h1.shape[1]), jnp.float32)
    st1_ref[...] = jnp.concatenate(
        [jnp.sum(h1, axis=0, keepdims=True),
         jnp.sum(h1 * h1, axis=0, keepdims=True),
         jnp.sum(r, axis=0, keepdims=True),
         jnp.sum(r * r, axis=0, keepdims=True),
         z, z, z, z], axis=0)


def _phase2_kernel(xc_ref, xs_ref, w1p_ref, w1c_ref, w1n_ref, w2_ref, bnp_ref,
                   st1_ref, h2_ref, st2_ref, se_ref,
                   *, spt, spt8, lp, l_out, stride, num_tiles, count, eps):
    """Fold bn1, relu, conv2 (fused K=3*c_pad matmul); emit h2 (bf16), bn2 partial
    stats and per-sample SE sums."""
    rows = spt * lp
    c_pad = h2_ref.shape[1]

    h1 = _conv1_taps(xc_ref, xs_ref, w1p_ref, w1c_ref, w1n_ref,
                     spt=spt, lp=lp, l_out=l_out, stride=stride)

    bnp = bnp_ref[...]                                  # rows: g1,b1,g2,b2,gd,bd
    st1 = jnp.sum(st1_ref[...].reshape(num_tiles, 8, c_pad), axis=0)
    scale1, shift1 = _fold_bn(st1[0:1], st1[1:2], bnp[0:1], bnp[1:2], count, eps)
    h = jnp.maximum(h1 * scale1 + shift1, 0.0)          # (rows, c_pad) f32

    # conv2 (k=3, stride=1, pad=1): shifted taps via sublane roll + per-sample
    # boundary masks (iota over the in-sample position, no modulo), bf16 staging.
    lpos = jax.lax.broadcasted_iota(jnp.int32, (spt, lp, c_pad), 1).reshape(rows, c_pad)
    h_prev = jnp.where(lpos == 0, 0.0,
                       pltpu.roll(h, 1, axis=0)).astype(jnp.bfloat16)
    h_next = jnp.where(lpos == l_out - 1, 0.0,
                       pltpu.roll(h, rows - 1, axis=0)).astype(jnp.bfloat16)
    cat = jnp.concatenate([h_prev, h.astype(jnp.bfloat16), h_next], axis=1)
    h2 = jnp.dot(cat, w2_ref[...], preferred_element_type=jnp.float32)
    if lp != l_out:                                     # drop sublane-pad rows
        h2 = jnp.where(lpos < l_out, h2, 0.0)

    z = jnp.zeros((1, c_pad), jnp.float32)
    st2_ref[...] = jnp.concatenate(
        [jnp.sum(h2, axis=0, keepdims=True),
         jnp.sum(h2 * h2, axis=0, keepdims=True),
         z, z, z, z, z, z], axis=0)

    sums = jnp.sum(h2.reshape(spt, lp, c_pad), axis=1)  # per-sample SE sums
    if spt8 > spt:
        sums = jnp.concatenate(
            [sums, jnp.zeros((spt8 - spt, c_pad), jnp.float32)], axis=0)
    se_ref[...] = sums
    h2_ref[...] = h2.astype(jnp.bfloat16)


def _phase3_kernel(xc_ref, h2_ref, wd_ref, wdn_ref, wup_ref, bnp_ref,
                   st1_ref, st2_ref, se_ref, o_ref,
                   *, spt, spt8, lp, l_out, num_tiles, count, eps):
    """Fold bn2/bnd, SE gate, combine with the residual branch, final ReLU."""
    rows = spt * lp
    c_pad = o_ref.shape[1]
    bnp = bnp_ref[...]
    st1 = jnp.sum(st1_ref[...].reshape(num_tiles, 8, c_pad), axis=0)
    st2 = jnp.sum(st2_ref[...].reshape(num_tiles, 8, c_pad), axis=0)
    scale2, shift2 = _fold_bn(st2[0:1], st2[1:2], bnp[2:3], bnp[3:4], count, eps)
    scale_d, shift_d = _fold_bn(st1[2:3], st1[3:4], bnp[4:5], bnp[5:6], count, eps)

    # residual branch: 1x1 strided conv (centre tap only) + folded BNd
    r = jnp.dot(xc_ref[...], wd_ref[...], preferred_element_type=jnp.float32)
    r = r * scale_d + shift_d

    # bn2 applied to the streamed conv2 output (bf16 from HBM, f32 math)
    h2n = h2_ref[...] * scale2 + shift2                  # (rows, c_pad) f32

    # SE gate: mean over L of bn2(h2) == (sum/l_out)*scale2 + shift2 (affine fold)
    s_in = se_ref[...] * (scale2 * (1.0 / l_out)) + shift2        # (spt8, c_pad)
    s_mid = jnp.maximum(
        jnp.dot(s_in.astype(jnp.bfloat16), wdn_ref[...],
                preferred_element_type=jnp.float32), 0.0)
    gate = jax.nn.sigmoid(
        jnp.dot(s_mid.astype(jnp.bfloat16), wup_ref[...],
                preferred_element_type=jnp.float32))              # (spt8, c_pad)
    if spt8 > spt:
        gate = gate[:spt]

    out = h2n.reshape(spt, lp, c_pad) * gate.reshape(spt, 1, c_pad)
    o_ref[...] = jnp.maximum(out.reshape(rows, c_pad) + r, 0.0)


# ------------------------------ JAX wrapper -------------------------------- #
def basic_block_forward(x, params, *, stride, max_rows_per_tile=2048):
    """x: (N, C_in, L) float32, NCL (PyTorch layout). Returns (N, planes, L_out)."""
    assert stride in (1, 2), "stride > 2 needs an explicit prev-tap array"
    N, c_in, L = x.shape
    w1 = params["conv1_w"]            # (planes, c_in, 3)
    w2 = params["conv2_w"]            # (planes, planes, 3)
    wd = params["down_conv_w"]        # (planes, c_in, 1)
    planes = w1.shape[0]
    c_down = params["linear_down_w"].shape[0]
    c_pad = _round_up(planes, 128)
    cdp = _round_up(c_down, 128)
    l_out = (L - 1) // stride + 1
    lp = _round_up(l_out, 8)          # per-sample rows, sublane aligned
    spt = _choose_spt(N, lp, max_rows_per_tile)
    spt8 = _round_up(spt, 8)
    num_tiles = N // spt
    rows = spt * lp
    nlp = N * lp
    count = N * l_out                 # true BN population (padding excluded)
    eps = 1e-5

    # ---- glue: layout + stride folding.  Only centre & next taps hit HBM. ----
    x_nlc = jnp.transpose(x, (0, 2, 1)).astype(jnp.float32)          # (N, L, c_in)
    xc = x_nlc[:, 0:stride * (l_out - 1) + 1:stride, :]              # x[s*l]
    x_e = jnp.pad(x_nlc, ((0, 0), (0, 1), (0, 0)))
    xs = x_e[:, 1:stride * (l_out - 1) + 2:stride, :]                # x[s*l + 1]

    def lay(a):                        # pad l_out -> lp, flatten rows, cast bf16
        a = jnp.pad(a, ((0, 0), (0, lp - l_out), (0, 0)))
        return a.reshape(nlp, c_in).astype(jnp.bfloat16)
    xc = lay(xc)
    xs = lay(xs)

    # ---- weights: per-tap conv1 + downsample, fused-K conv2, right-sized SE ----
    def pad_cols(m):
        return (jnp.zeros((m.shape[0], c_pad), jnp.float32)
                .at[:, :m.shape[1]].set(m).astype(jnp.bfloat16))
    w1_t = jnp.transpose(w1, (2, 1, 0))                              # (3, c_in, planes)
    w1p, w1c, w1n = pad_cols(w1_t[0]), pad_cols(w1_t[1]), pad_cols(w1_t[2])
    wdm = pad_cols(wd[:, :, 0].T)                                    # (c_in, c_pad)
    w2_big = (jnp.zeros((3, c_pad, c_pad), jnp.float32)
              .at[:, :planes, :planes].set(jnp.transpose(w2, (2, 1, 0)))
              .reshape(3 * c_pad, c_pad).astype(jnp.bfloat16))
    wdn = (jnp.zeros((c_pad, cdp), jnp.float32)
           .at[:planes, :c_down].set(params["linear_down_w"].T).astype(jnp.bfloat16))
    wup = (jnp.zeros((cdp, c_pad), jnp.float32)
           .at[:c_down, :planes].set(params["linear_up_w"].T).astype(jnp.bfloat16))

    def row(v):
        return jnp.zeros((c_pad,), jnp.float32).at[:planes].set(v.astype(jnp.float32))
    zrow = jnp.zeros((c_pad,), jnp.float32)
    bnp = jnp.stack([row(params["bn1_g"]), row(params["bn1_b"]),
                     row(params["bn2_g"]), row(params["bn2_b"]),
                     row(params["bnd_g"]), row(params["bnd_b"]),
                     zrow, zrow], axis=0)                            # (8, c_pad) f32

    # ---- scoped-VMEM budget (double-buffered tiles + resident weights/stats
    #      + temporaries headroom), clamped under v7x's 64 MiB physical VMEM. ----
    stream_b = rows * (2 * c_in * 2 + c_pad * 2 + c_pad * 4)
    resident_b = 2 * (4 * c_in * c_pad + 3 * c_pad * c_pad + 2 * c_pad * cdp) \
        + 4 * (8 * c_pad + (2 * 8 + spt8) * num_tiles * c_pad)
    temp_b = 16 * rows * c_pad * 4
    vmem_bytes = int(min(max(4 * stream_b + 2 * resident_b + temp_b, 32 << 20),
                         60 << 20))
    cparams = pltpu.CompilerParams(dimension_semantics=("parallel",),
                                   vmem_limit_bytes=vmem_bytes)

    tile_x = pl.BlockSpec((rows, c_in), lambda t: (t, 0))
    tile_h = pl.BlockSpec((rows, c_pad), lambda t: (t, 0))
    tile_st = pl.BlockSpec((8, c_pad), lambda t: (t, 0))
    tile_se = pl.BlockSpec((spt8, c_pad), lambda t: (t, 0))

    def full(a):
        return pl.BlockSpec(a.shape, lambda t: (0, 0))

    # ---- phase 1: bn1 / bnd partial stats -------------------------------------
    st1 = pl.pallas_call(
        functools.partial(_phase1_kernel, spt=spt, lp=lp, l_out=l_out, stride=stride),
        grid=(num_tiles,),
        in_specs=[tile_x, tile_x, full(w1p), full(w1c), full(w1n), full(wdm)],
        out_specs=tile_st,
        out_shape=jax.ShapeDtypeStruct((num_tiles * 8, c_pad), jnp.float32),
        compiler_params=cparams,
    )(xc, xs, w1p, w1c, w1n, wdm)

    # ---- phase 2: conv2, bn2 partial stats, SE sums, h2 (bf16) ----------------
    h2, st2, se = pl.pallas_call(
        functools.partial(_phase2_kernel, spt=spt, spt8=spt8, lp=lp, l_out=l_out,
                          stride=stride, num_tiles=num_tiles, count=count, eps=eps),
        grid=(num_tiles,),
        in_specs=[tile_x, tile_x, full(w1p), full(w1c), full(w1n),
                  full(w2_big), full(bnp), full(st1)],
        out_specs=(tile_h, tile_st, tile_se),
        out_shape=(jax.ShapeDtypeStruct((nlp, c_pad), jnp.bfloat16),
                   jax.ShapeDtypeStruct((num_tiles * 8, c_pad), jnp.float32),
                   jax.ShapeDtypeStruct((num_tiles * spt8, c_pad), jnp.float32)),
        compiler_params=cparams,
    )(xc, xs, w1p, w1c, w1n, w2_big, bnp, st1)

    # ---- phase 3: bn2/bnd fold + SE gate + residual + final ReLU --------------
    out_flat = pl.pallas_call(
        functools.partial(_phase3_kernel, spt=spt, spt8=spt8, lp=lp, l_out=l_out,
                          num_tiles=num_tiles, count=count, eps=eps),
        grid=(num_tiles,),
        in_specs=[tile_x, tile_h, full(wdm), full(wdn), full(wup), full(bnp),
                  full(st1), full(st2), tile_se],
        out_specs=tile_h,
        out_shape=jax.ShapeDtypeStruct((nlp, c_pad), jnp.float32),
        compiler_params=cparams,
    )(xc, h2, wdm, wdn, wup, bnp, st1, st2, se)

    # back to PyTorch NCL layout, dropping sublane / lane padding
    out = out_flat.reshape(N, lp, c_pad)[:, :l_out, :planes]
    return jnp.transpose(out, (0, 2, 1))


# ----------------------- deterministic parameter init ---------------------- #
def init_params(key, in_planes, planes):
    ks = jax.random.split(key, 9)

    def w(k, shape, fan_in):
        return jax.random.normal(k, shape, jnp.float32) / jnp.sqrt(float(fan_in))

    return dict(
        conv1_w=w(ks[0], (planes, in_planes, 3), in_planes * 3),
        conv2_w=w(ks[1], (planes, planes, 3), planes * 3),
        down_conv_w=w(ks[2], (planes, in_planes, 1), in_planes),
        linear_down_w=w(ks[3], (planes // 16, planes), planes),
        linear_up_w=w(ks[4], (planes, planes // 16), planes // 16),
        bn1_g=1.0 + 0.1 * jax.random.normal(ks[5], (planes,), jnp.float32),
        bn1_b=0.1 * jax.random.normal(ks[6], (planes,), jnp.float32),
        bn2_g=1.0 + 0.1 * jax.random.normal(ks[7], (planes,), jnp.float32),
        bn2_b=0.1 * jax.random.normal(ks[8], (planes,), jnp.float32),
        bnd_g=jnp.ones((planes,), jnp.float32),
        bnd_b=jnp.zeros((planes,), jnp.float32),
    )


# -------------------------- pure-JAX reference ----------------------------- #
def ref_forward(x, params, stride):
    eps = 1e-5

    def conv1d(v, w, s, p):
        return jax.lax.conv_general_dilated(
            v, w, window_strides=(s,), padding=[(p, p)],
            dimension_numbers=("NCH", "OIH", "NCH"),
            precision=jax.lax.Precision.HIGHEST)

    def bn(h, g, b):
        mean = jnp.mean(h, axis=(0, 2), keepdims=True)
        var = jnp.mean((h - mean) ** 2, axis=(0, 2), keepdims=True)
        return (h - mean) / jnp.sqrt(var + eps) * g[None, :, None] + b[None, :, None]

    out = jax.nn.relu(bn(conv1d(x, params["conv1_w"], stride, 1),
                         params["bn1_g"], params["bn1_b"]))
    out = bn(conv1d(out, params["conv2_w"], 1, 1), params["bn2_g"], params["bn2_b"])
    s = jnp.mean(out, axis=2)
    s = jax.nn.relu(s @ params["linear_down_w"].T)
    se = jax.nn.sigmoid(s @ params["linear_up_w"].T)
    res = bn(conv1d(x, params["down_conv_w"], stride, 0),
             params["bnd_g"], params["bnd_b"])
    return jax.nn.relu(out * se[:, :, None] + res)


if __name__ == "__main__":
    key = jax.random.PRNGKey(0)
    kx, kp, k2 = jax.random.split(key, 3)

    # Config A: stride-2 downsampling block, forced to 2 row tiles so the
    # cross-tile BN partial-stat reduction and the 'parallel' grid are exercised.
    in_planes, planes, stride = 16, 32, 2
    N, L = 4, 32
    x = jax.random.normal(kx, (N, in_planes, L), jnp.float32)
    params = init_params(kp, in_planes, planes)
    fwd = jax.jit(functools.partial(basic_block_forward, stride=stride,
                                    max_rows_per_tile=32))
    out = jax.block_until_ready(fwd(x, params))
    l_out = (L - 1) // stride + 1
    assert out.shape == (N, planes, l_out), out.shape
    ref = ref_forward(x, params, stride)
    # Tolerance reflects bf16 matmul operands and bf16 h2 staging (f32 accumulation).
    np.testing.assert_allclose(np.asarray(out), np.asarray(ref), rtol=3e-2, atol=4e-2)

    # Config B: stride-1 block with l_out not a multiple of 8 (exercises the
    # sublane padding / masking path and the stride-1 prev-tap roll).
    Nb, Lb, stride_b = 2, 12, 1
    xb = jax.random.normal(k2, (Nb, in_planes, Lb), jnp.float32)
    params_b = init_params(jax.random.fold_in(kp, 1), in_planes, planes)
    fwd_b = jax.jit(functools.partial(basic_block_forward, stride=stride_b))
    out_b = jax.block_until_ready(fwd_b(xb, params_b))
    ref_b = ref_forward(xb, params_b, stride_b)
    np.testing.assert_allclose(np.asarray(out_b), np.asarray(ref_b),
                               rtol=3e-2, atol=4e-2)

    print("KERNEL_OK")
</pallas_src>

<mosaic_0001>
module attributes {stable_mosaic.version = 11 : i64} {
  func.func @_phase1_kernel(%arg0: i32, %arg1: memref<32x16xbf16, #tpu.memory_space<vmem>>, %arg2: memref<32x16xbf16, #tpu.memory_space<vmem>>, %arg3: memref<16x128xbf16, #tpu.memory_space<vmem>>, %arg4: memref<16x128xbf16, #tpu.memory_space<vmem>>, %arg5: memref<16x128xbf16, #tpu.memory_space<vmem>>, %arg6: memref<16x128xbf16, #tpu.memory_space<vmem>>, %arg7: memref<8x128xf32, #tpu.memory_space<vmem>>) attributes {dimension_semantics = [#tpu.dimension_semantics<parallel>], iteration_bounds = array<i64: 2>, scalar_prefetch = 0 : i64, scratch_operands = 0 : i64, tpu.core_type = #tpu.core_type<tc>, window_params = [{transform_indices = @transform_0, window_bounds = array<i64: 32, 16>}, {transform_indices = @transform_1, window_bounds = array<i64: 32, 16>}, {pipeline_mode = #tpu.pipeline_mode<synchronous>, transform_indices = @transform_2, window_bounds = array<i64: 16, 128>}, {pipeline_mode = #tpu.pipeline_mode<synchronous>, transform_indices = @transform_3, window_bounds = array<i64: 16, 128>}, {pipeline_mode = #tpu.pipeline_mode<synchronous>, transform_indices = @transform_4, window_bounds = array<i64: 16, 128>}, {pipeline_mode = #tpu.pipeline_mode<synchronous>, transform_indices = @transform_5, window_bounds = array<i64: 16, 128>}, {transform_indices = @transform_6, window_bounds = array<i64: 8, 128>}]} {
    %c0 = arith.constant 0 : index
    %c0_0 = arith.constant 0 : index
    %0 = vector.load %arg1[%c0, %c0_0] : memref<32x16xbf16, #tpu.memory_space<vmem>>, vector<32x16xbf16>
    %c0_1 = arith.constant 0 : index
    %c0_2 = arith.constant 0 : index
    %1 = vector.load %arg2[%c0_1, %c0_2] : memref<32x16xbf16, #tpu.memory_space<vmem>>, vector<32x16xbf16>
    %2 = tpu.iota {dimensions = array<i32: 1>} : vector<2x16x16xi32>
    %3 = vector.shape_cast %2 : vector<2x16x16xi32> to vector<32x16xi32>
    %4 = arith.extf %1 : vector<32x16xbf16> to vector<32x16xf32>
    %c1_i32 = arith.constant 1 : i32
    %5 = tpu.dynamic_rotate %4 by %c1_i32 dim 0 : vector<32x16xf32>, i32 -> vector<32x16xf32>
    %c0_i32 = arith.constant 0 : i32
    %6 = vector.broadcast %c0_i32 : i32 to vector<32x16xi32>
    %7 = arith.cmpi eq, %3, %6 : vector<32x16xi32>
    %c16_i32 = arith.constant 16 : i32
    %8 = vector.broadcast %c16_i32 : i32 to vector<32x16xi32>
    %9 = arith.cmpi sge, %3, %8 : vector<32x16xi32>
    %10 = arith.ori %7, %9 : vector<32x16xi1>
    %cst = arith.constant 0.000000e+00 : f32
    %11 = vector.broadcast %cst : f32 to vector<32x16xf32>
    %12 = arith.select %10, %11, %5 : vector<32x16xi1>, vector<32x16xf32>
    %13 = arith.truncf %12 : vector<32x16xf32> to vector<32x16xbf16>
    %c0_3 = arith.constant 0 : index
    %c0_4 = arith.constant 0 : index
    %14 = vector.load %arg3[%c0_3, %c0_4] : memref<16x128xbf16, #tpu.memory_space<vmem>>, vector<16x128xbf16>
    %cst_5 = arith.constant dense<0.000000e+00> : vector<32x128xf32>
    %15 = tpu.matmul %13, %14, %cst_5 {dimension_numbers = #tpu.dot_dimension_numbers<[1], [0], [0], [1], [0, 0, 1, 1], [], []>} : vector<32x16xbf16>, vector<16x128xbf16>, vector<32x128xf32> -> vector<32x128xf32>
    %c0_6 = arith.constant 0 : index
    %c0_7 = arith.constant 0 : index
    %16 = vector.load %arg4[%c0_6, %c0_7] : memref<16x128xbf16, #tpu.memory_space<vmem>>, vector<16x128xbf16>
    %cst_8 = arith.constant dense<0.000000e+00> : vector<32x128xf32>
    %17 = tpu.matmul %0, %16, %cst_8 {dimension_numbers = #tpu.dot_dimension_numbers<[1], [0], [0], [1], [0, 0, 1, 1], [], []>} : vector<32x16xbf16>, vector<16x128xbf16>, vector<32x128xf32> -> vector<32x128xf32>
    %18 = arith.addf %15, %17 : vector<32x128xf32>
    %c0_9 = arith.constant 0 : index
    %c0_10 = arith.constant 0 : index
    %19 = vector.load %arg5[%c0_9, %c0_10] : memref<16x128xbf16, #tpu.memory_space<vmem>>, vector<16x128xbf16>
    %cst_11 = arith.constant dense<0.000000e+00> : vector<32x128xf32>
    %20 = tpu.matmul %1, %19, %cst_11 {dimension_numbers = #tpu.dot_dimension_numbers<[1], [0], [0], [1], [0, 0, 1, 1], [], []>} : vector<32x16xbf16>, vector<16x128xbf16>, vector<32x128xf32> -> vector<32x128xf32>
    %21 = arith.addf %18, %20 : vector<32x128xf32>
    %c0_12 = arith.constant 0 : index
    %c0_13 = arith.constant 0 : index
    %22 = vector.load %arg1[%c0_12, %c0_13] : memref<32x16xbf16, #tpu.memory_space<vmem>>, vector<32x16xbf16>
    %c0_14 = arith.constant 0 : index
    %c0_15 = arith.constant 0 : index
    %23 = vector.load %arg6[%c0_14, %c0_15] : memref<16x128xbf16, #tpu.memory_space<vmem>>, vector<16x128xbf16>
    %cst_16 = arith.constant dense<0.000000e+00> : vector<32x128xf32>
    %24 = tpu.matmul %22, %23, %cst_16 {dimension_numbers = #tpu.dot_dimension_numbers<[1], [0], [0], [1], [0, 0, 1, 1], [], []>} : vector<32x16xbf16>, vector<16x128xbf16>, vector<32x128xf32> -> vector<32x128xf32>
    %cst_17 = arith.constant 0.000000e+00 : f32
    %25 = vector.broadcast %cst_17 : f32 to vector<1x128xf32>
    %cst_18 = arith.constant dense<0.000000e+00> : vector<128xf32>
    %26 = vector.multi_reduction <add>, %21, %cst_18 [0] : vector<32x128xf32> to vector<128xf32>
    %27 = vector.shape_cast %26 : vector<128xf32> to vector<1x128xf32>
    %28 = arith.mulf %21, %21 : vector<32x128xf32>
    %cst_19 = arith.constant dense<0.000000e+00> : vector<128xf32>
    %29 = vector.multi_reduction <add>, %28, %cst_19 [0] : vector<32x128xf32> to vector<128xf32>
    %30 = vector.shape_cast %29 : vector<128xf32> to vector<1x128xf32>
    %cst_20 = arith.constant dense<0.000000e+00> : vector<128xf32>
    %31 = vector.multi_reduction <add>, %24, %cst_20 [0] : vector<32x128xf32> to vector<128xf32>
    %32 = vector.shape_cast %31 : vector<128xf32> to vector<1x128xf32>
    %33 = arith.mulf %24, %24 : vector<32x128xf32>
    %cst_21 = arith.constant dense<0.000000e+00> : vector<128xf32>
    %34 = vector.multi_reduction <add>, %33, %cst_21 [0] : vector<32x128xf32> to vector<128xf32>
    %35 = vector.shape_cast %34 : vector<128xf32> to vector<1x128xf32>
    %36 = tpu.concatenate %27, %30, %32, %35, %25, %25, %25, %25 in 0 : vector<1x128xf32>, vector<1x128xf32>, vector<1x128xf32>, vector<1x128xf32>, vector<1x128xf32>, vector<1x128xf32>, vector<1x128xf32>, vector<1x128xf32> -> vector<8x128xf32>
    %c0_22 = arith.constant 0 : index
    %c0_23 = arith.constant 0 : index
    %37 = vector.load %arg7[%c0_22, %c0_23] : memref<8x128xf32, #tpu.memory_space<vmem>>, vector<8x128xf32>
    tpu.vector_store %arg7[%c0_22, %c0_23], %36 {strides = array<i32>} : memref<8x128xf32, #tpu.memory_space<vmem>>, vector<8x128xf32>,
    return
  }
  func.func @transform_0(%arg0: i32) -> (i32, i32) {
    %c0_i32 = arith.constant 0 : i32
    %c0_i32_0 = arith.constant 0 : i32
    return %arg0, %c0_i32 : i32, i32
  }
  func.func @transform_1(%arg0: i32) -> (i32, i32) {
    %c0_i32 = arith.constant 0 : i32
    %c0_i32_0 = arith.constant 0 : i32
    return %arg0, %c0_i32 : i32, i32
  }
  func.func @transform_2(%arg0: i32) -> (i32, i32) {
    %c0_i32 = arith.constant 0 : i32
    %c0_i32_0 = arith.constant 0 : i32
    %c0_i32_1 = arith.constant 0 : i32
    return %c0_i32, %c0_i32_0 : i32, i32
  }
  func.func @transform_3(%arg0: i32) -> (i32, i32) {
    %c0_i32 = arith.constant 0 : i32
    %c0_i32_0 = arith.constant 0 : i32
    %c0_i32_1 = arith.constant 0 : i32
    return %c0_i32, %c0_i32_0 : i32, i32
  }
  func.func @transform_4(%arg0: i32) -> (i32, i32) {
    %c0_i32 = arith.constant 0 : i32
    %c0_i32_0 = arith.constant 0 : i32
    %c0_i32_1 = arith.constant 0 : i32
    return %c0_i32, %c0_i32_0 : i32, i32
  }
  func.func @transform_5(%arg0: i32) -> (i32, i32) {
    %c0_i32 = arith.constant 0 : i32
    %c0_i32_0 = arith.constant 0 : i32
    %c0_i32_1 = arith.constant 0 : i32
    return %c0_i32, %c0_i32_0 : i32, i32
  }
  func.func @transform_6(%arg0: i32) -> (i32, i32) {
    %c0_i32 = arith.constant 0 : i32
    %c0_i32_0 = arith.constant 0 : i32
    return %arg0, %c0_i32 : i32, i32
  }
}

module attributes {stable_mosaic.version = 11 : i64} {
  func.func @_phase2_kernel(%arg0: i32, %arg1: memref<32x16xbf16, #tpu.memory_space<vmem>>, %arg2: memref<32x16xbf16, #tpu.memory_space<vmem>>, %arg3: memref<16x128xbf16, #tpu.memory_space<vmem>>, %arg4: memref<16x128xbf16, #tpu.memory_space<vmem>>, %arg5: memref<16x128xbf16, #tpu.memory_space<vmem>>, %arg6: memref<384x128xbf16, #tpu.memory_space<vmem>>, %arg7: memref<8x128xf32, #tpu.memory_space<vmem>>, %arg8: memref<16x128xf32, #tpu.memory_space<vmem>>, %arg9: memref<32x128xbf16, #tpu.memory_space<vmem>>, %arg10: memref<8x128xf32, #tpu.memory_space<vmem>>, %arg11: memref<8x128xf32, #tpu.memory_space<vmem>>) attributes {dimension_semantics = [#tpu.dimension_semantics<parallel>], iteration_bounds = array<i64: 2>, scalar_prefetch = 0 : i64, scratch_operands = 0 : i64, tpu.core_type = #tpu.core_type<tc>, window_params = [{transform_indices = @transform_0, window_bounds = array<i64: 32, 16>}, {transform_indices = @transform_1, window_bounds = array<i64: 32, 16>}, {pipeline_mode = #tpu.pipeline_mode<synchronous>, transform_indices = @transform_2, window_bounds = array<i64: 16, 128>}, {pipeline_mode = #tpu.pipeline_mode<synchronous>, transform_indices = @transform_3, window_bounds = array<i64: 16, 128>}, {pipeline_mode = #tpu.pipeline_mode<synchronous>, transform_indices = @transform_4, window_bounds = array<i64: 16, 128>}, {pipeline_mode = #tpu.pipeline_mode<synchronous>, transform_indices = @transform_5, window_bounds = array<i64: 384, 128>}, {pipeline_mode = #tpu.pipeline_mode<synchronous>, transform_indices = @transform_6, window_bounds = array<i64: 8, 128>}, {pipeline_mode = #tpu.pipeline_mode<synchronous>, transform_indices = @transform_7, window_bounds = array<i64: 16, 128>}, {transform_indices = @transform_8, window_bounds = array<i64: 32, 128>}, {transform_indices = @transform_9, window_bounds = array<i64: 8, 128>}, {transform_indices = @transform_10, window_bounds = array<i64: 8, 128>}]} {
    %c0 = arith.constant 0 : index
    %c0_0 = arith.constant 0 : index
    %0 = vector.load %arg1[%c0, %c0_0] : memref<32x16xbf16, #tpu.memory_space<vmem>>, vector<32x16xbf16>
    %c0_1 = arith.constant 0 : index
    %c0_2 = arith.constant 0 : index
    %1 = vector.load %arg2[%c0_1, %c0_2] : memref<32x16xbf16, #tpu.memory_space<vmem>>, vector<32x16xbf16>
    %2 = tpu.iota {dimensions = array<i32: 1>} : vector<2x16x16xi32>
    %3 = vector.shape_cast %2 : vector<2x16x16xi32> to vector<32x16xi32>
    %4 = arith.extf %1 : vector<32x16xbf16> to vector<32x16xf32>
    %c1_i32 = arith.constant 1 : i32
    %5 = tpu.dynamic_rotate %4 by %c1_i32 dim 0 : vector<32x16xf32>, i32 -> vector<32x16xf32>
    %c0_i32 = arith.constant 0 : i32
    %6 = vector.broadcast %c0_i32 : i32 to vector<32x16xi32>
    %7 = arith.cmpi eq, %3, %6 : vector<32x16xi32>
    %c16_i32 = arith.constant 16 : i32
    %8 = vector.broadcast %c16_i32 : i32 to vector<32x16xi32>
    %9 = arith.cmpi sge, %3, %8 : vector<32x16xi32>
    %10 = arith.ori %7, %9 : vector<32x16xi1>
    %cst = arith.constant 0.000000e+00 : f32
    %11 = vector.broadcast %cst : f32 to vector<32x16xf32>
    %12 = arith.select %10, %11, %5 : vector<32x16xi1>, vector<32x16xf32>
    %13 = arith.truncf %12 : vector<32x16xf32> to vector<32x16xbf16>
    %c0_3 = arith.constant 0 : index
    %c0_4 = arith.constant 0 : index
    %14 = vector.load %arg3[%c0_3, %c0_4] : memref<16x128xbf16, #tpu.memory_space<vmem>>, vector<16x128xbf16>
    %cst_5 = arith.constant dense<0.000000e+00> : vector<32x128xf32>
    %15 = tpu.matmul %13, %14, %cst_5 {dimension_numbers = #tpu.dot_dimension_numbers<[1], [0], [0], [1], [0, 0, 1, 1], [], []>} : vector<32x16xbf16>, vector<16x128xbf16>, vector<32x128xf32> -> vector<32x128xf32>
    %c0_6 = arith.constant 0 : index
    %c0_7 = arith.constant 0 : index
    %16 = vector.load %arg4[%c0_6, %c0_7] : memref<16x128xbf16, #tpu.memory_space<vmem>>, vector<16x128xbf16>
    %cst_8 = arith.constant dense<0.000000e+00> : vector<32x128xf32>
    %17 = tpu.matmul %0, %16, %cst_8 {dimension_numbers = #tpu.dot_dimension_numbers<[1], [0], [0], [1], [0, 0, 1, 1], [], []>} : vector<32x16xbf16>, vector<16x128xbf16>, vector<32x128xf32> -> vector<32x128xf32>
    %18 = arith.addf %15, %17 : vector<32x128xf32>
    %c0_9 = arith.constant 0 : index
    %c0_10 = arith.constant 0 : index
    %19 = vector.load %arg5[%c0_9, %c0_10] : memref<16x128xbf16, #tpu.memory_space<vmem>>, vector<16x128xbf16>
    %cst_11 = arith.constant dense<0.000000e+00> : vector<32x128xf32>
    %20 = tpu.matmul %1, %19, %cst_11 {dimension_numbers = #tpu.dot_dimension_numbers<[1], [0], [0], [1], [0, 0, 1, 1], [], []>} : vector<32x16xbf16>, vector<16x128xbf16>, vector<32x128xf32> -> vector<32x128xf32>
    %21 = arith.addf %18, %20 : vector<32x128xf32>
    %c0_12 = arith.constant 0 : index
    %c0_13 = arith.constant 0 : index
    %22 = vector.load %arg7[%c0_12, %c0_13] : memref<8x128xf32, #tpu.memory_space<vmem>>, vector<8x128xf32>
    %c0_14 = arith.constant 0 : index
    %c0_15 = arith.constant 0 : index
    %23 = vector.load %arg8[%c0_14, %c0_15] : memref<16x128xf32, #tpu.memory_space<vmem>>, vector<16x128xf32>
    %24 = vector.shape_cast %23 : vector<16x128xf32> to vector<2x8x128xf32>
    %cst_16 = arith.constant dense<0.000000e+00> : vector<8x128xf32>
    %25 = vector.multi_reduction <add>, %24, %cst_16 [0] : vector<2x8x128xf32> to vector<8x128xf32>
    %26 = vector.extract_strided_slice %25 {offsets = [0, 0], sizes = [1, 128], strides = [1, 1]} : vector<8x128xf32> to vector<1x128xf32>
    %27 = vector.extract_strided_slice %25 {offsets = [1, 0], sizes = [1, 128], strides = [1, 1]} : vector<8x128xf32> to vector<1x128xf32>
    %28 = vector.extract_strided_slice %22 {offsets = [0, 0], sizes = [1, 128], strides = [1, 1]} : vector<8x128xf32> to vector<1x128xf32>
    %29 = vector.extract_strided_slice %22 {offsets = [1, 0], sizes = [1, 128], strides = [1, 1]} : vector<8x128xf32> to vector<1x128xf32>
    %cst_17 = arith.constant 1.562500e-02 : f32
    %30 = vector.broadcast %cst_17 : f32 to vector<1x128xf32>
    %31 = arith.mulf %26, %30 : vector<1x128xf32>
    %cst_18 = arith.constant 1.562500e-02 : f32
    %32 = vector.broadcast %cst_18 : f32 to vector<1x128xf32>
    %33 = arith.mulf %27, %32 : vector<1x128xf32>
    %34 = arith.mulf %31, %31 : vector<1x128xf32>
    %35 = arith.subf %33, %34 : vector<1x128xf32>
    %cst_19 = arith.constant 0.000000e+00 : f32
    %36 = vector.broadcast %cst_19 : f32 to vector<1x128xf32>
    %37 = arith.maximumf %35, %36 : vector<1x128xf32>
    %cst_20 = arith.constant 9.99999974E-6 : f32
    %38 = vector.broadcast %cst_20 : f32 to vector<1x128xf32>
    %39 = arith.addf %37, %38 : vector<1x128xf32>
    %40 = math.rsqrt %39 : vector<1x128xf32>
    %41 = arith.mulf %28, %40 : vector<1x128xf32>
    %42 = arith.mulf %31, %41 : vector<1x128xf32>
    %43 = arith.subf %29, %42 : vector<1x128xf32>
    %44 = vector.broadcast %41 : vector<1x128xf32> to vector<32x128xf32>
    %45 = arith.mulf %21, %44 : vector<32x128xf32>
    %46 = vector.broadcast %43 : vector<1x128xf32> to vector<32x128xf32>
    %47 = arith.addf %45, %46 : vector<32x128xf32>
    %cst_21 = arith.constant 0.000000e+00 : f32
    %48 = vector.broadcast %cst_21 : f32 to vector<32x128xf32>
    %49 = arith.maximumf %47, %48 : vector<32x128xf32>
    %50 = tpu.iota {dimensions = array<i32: 1>} : vector<2x16x128xi32>
    %51 = vector.shape_cast %50 : vector<2x16x128xi32> to vector<32x128xi32>
    %c0_i32_22 = arith.constant 0 : i32
    %52 = vector.broadcast %c0_i32_22 : i32 to vector<32x128xi32>
    %53 = arith.cmpi eq, %51, %52 : vector<32x128xi32>
    %c1_i32_23 = arith.constant 1 : i32
    %54 = tpu.dynamic_rotate %49 by %c1_i32_23 dim 0 : vector<32x128xf32>, i32 -> vector<32x128xf32>
    %cst_24 = arith.constant 0.000000e+00 : f32
    %55 = vector.broadcast %cst_24 : f32 to vector<32x128xf32>
    %56 = arith.select %53, %55, %54 : vector<32x128xi1>, vector<32x128xf32>
    %57 = arith.truncf %56 : vector<32x128xf32> to vector<32x128xbf16>
    %c15_i32 = arith.constant 15 : i32
    %58 = vector.broadcast %c15_i32 : i32 to vector<32x128xi32>
    %59 = arith.cmpi eq, %51, %58 : vector<32x128xi32>
    %c31_i32 = arith.constant 31 : i32
    %60 = tpu.dynamic_rotate %49 by %c31_i32 dim 0 : vector<32x128xf32>, i32 -> vector<32x128xf32>
    %cst_25 = arith.constant 0.000000e+00 : f32
    %61 = vector.broadcast %cst_25 : f32 to vector<32x128xf32>
    %62 = arith.select %59, %61, %60 : vector<32x128xi1>, vector<32x128xf32>
    %63 = arith.truncf %62 : vector<32x128xf32> to vector<32x128xbf16>
    %64 = arith.truncf %49 : vector<32x128xf32> to vector<32x128xbf16>
    %65 = tpu.concatenate %57, %64, %63 in 1 : vector<32x128xbf16>, vector<32x128xbf16>, vector<32x128xbf16> -> vector<32x384xbf16>
    %c0_26 = arith.constant 0 : index
    %c0_27 = arith.constant 0 : index
    %66 = vector.load %arg6[%c0_26, %c0_27] : memref<384x128xbf16, #tpu.memory_space<vmem>>, vector<384x128xbf16>
    %cst_28 = arith.constant dense<0.000000e+00> : vector<32x128xf32>
    %67 = tpu.matmul %65, %66, %cst_28 {dimension_numbers = #tpu.dot_dimension_numbers<[1], [0], [0], [1], [0, 0, 1, 1], [], []>} : vector<32x384xbf16>, vector<384x128xbf16>, vector<32x128xf32> -> vector<32x128xf32>
    %cst_29 = arith.constant 0.000000e+00 : f32
    %68 = vector.broadcast %cst_29 : f32 to vector<1x128xf32>
    %cst_30 = arith.constant dense<0.000000e+00> : vector<128xf32>
    %69 = vector.multi_reduction <add>, %67, %cst_30 [0] : vector<32x128xf32> to vector<128xf32>
    %70 = vector.shape_cast %69 : vector<128xf32> to vector<1x128xf32>
    %71 = arith.mulf %67, %67 : vector<32x128xf32>
    %cst_31 = arith.constant dense<0.000000e+00> : vector<128xf32>
    %72 = vector.multi_reduction <add>, %71, %cst_31 [0] : vector<32x128xf32> to vector<128xf32>
    %73 = vector.shape_cast %72 : vector<128xf32> to vector<1x128xf32>
    %74 = tpu.concatenate %70, %73, %68, %68, %68, %68, %68, %68 in 0 : vector<1x128xf32>, vector<1x128xf32>, vector<1x128xf32>, vector<1x128xf32>, vector<1x128xf32>, vector<1x128xf32>, vector<1x128xf32>, vector<1x128xf32> -> vector<8x128xf32>
    %c0_32 = arith.constant 0 : index
    %c0_33 = arith.constant 0 : index
    %75 = vector.load %arg10[%c0_32, %c0_33] : memref<8x128xf32, #tpu.memory_space<vmem>>, vector<8x128xf32>
    tpu.vector_store %arg10[%c0_32, %c0_33], %74 {strides = array<i32>} : memref<8x128xf32, #tpu.memory_space<vmem>>, vector<8x128xf32>,
    %76 = vector.shape_cast %67 : vector<32x128xf32> to vector<2x16x128xf32>
    %cst_34 = arith.constant dense<0.000000e+00> : vector<2x128xf32>
    %77 = vector.multi_reduction <add>, %76, %cst_34 [1] : vector<2x16x128xf32> to vector<2x128xf32>
    %cst_35 = arith.constant 0.000000e+00 : f32
    %78 = vector.broadcast %cst_35 : f32 to vector<6x128xf32>
    %79 = tpu.concatenate %77, %78 in 0 : vector<2x128xf32>, vector<6x128xf32> -> vector<8x128xf32>
    %c0_36 = arith.constant 0 : index
    %c0_37 = arith.constant 0 : index
    %80 = vector.load %arg11[%c0_36, %c0_37] : memref<8x128xf32, #tpu.memory_space<vmem>>, vector<8x128xf32>
    tpu.vector_store %arg11[%c0_36, %c0_37], %79 {strides = array<i32>} : memref<8x128xf32, #tpu.memory_space<vmem>>, vector<8x128xf32>,
    %81 = arith.truncf %67 : vector<32x128xf32> to vector<32x128xbf16>
    %c0_38 = arith.constant 0 : index
    %c0_39 = arith.constant 0 : index
    %82 = vector.load %arg9[%c0_38, %c0_39] : memref<32x128xbf16, #tpu.memory_space<vmem>>, vector<32x128xbf16>
    tpu.vector_store %arg9[%c0_38, %c0_39], %81 {strides = array<i32>} : memref<32x128xbf16, #tpu.memory_space<vmem>>, vector<32x128xbf16>,
    return
  }
  func.func @transform_0(%arg0: i32) -> (i32, i32) {
    %c0_i32 = arith.constant 0 : i32
    %c0_i32_0 = arith.constant 0 : i32
    return %arg0, %c0_i32 : i32, i32
  }
  func.func @transform_1(%arg0: i32) -> (i32, i32) {
    %c0_i32 = arith.constant 0 : i32
    %c0_i32_0 = arith.constant 0 : i32
    return %arg0, %c0_i32 : i32, i32
  }
  func.func @transform_2(%arg0: i32) -> (i32, i32) {
    %c0_i32 = arith.constant 0 : i32
    %c0_i32_0 = arith.constant 0 : i32
    %c0_i32_1 = arith.constant 0 : i32
    return %c0_i32, %c0_i32_0 : i32, i32
  }
  func.func @transform_3(%arg0: i32) -> (i32, i32) {
    %c0_i32 = arith.constant 0 : i32
    %c0_i32_0 = arith.constant 0 : i32
    %c0_i32_1 = arith.constant 0 : i32
    return %c0_i32, %c0_i32_0 : i32, i32
  }
  func.func @transform_4(%arg0: i32) -> (i32, i32) {
    %c0_i32 = arith.constant 0 : i32
    %c0_i32_0 = arith.constant 0 : i32
    %c0_i32_1 = arith.constant 0 : i32
    return %c0_i32, %c0_i32_0 : i32, i32
  }
  func.func @transform_5(%arg0: i32) -> (i32, i32) {
    %c0_i32 = arith.constant 0 : i32
    %c0_i32_0 = arith.constant 0 : i32
    %c0_i32_1 = arith.constant 0 : i32
    return %c0_i32, %c0_i32_0 : i32, i32
  }
  func.func @transform_6(%arg0: i32) -> (i32, i32) {
    %c0_i32 = arith.constant 0 : i32
    %c0_i32_0 = arith.constant 0 : i32
    %c0_i32_1 = arith.constant 0 : i32
    return %c0_i32, %c0_i32_0 : i32, i32
  }
  func.func @transform_7(%arg0: i32) -> (i32, i32) {
    %c0_i32 = arith.constant 0 : i32
    %c0_i32_0 = arith.constant 0 : i32
    %c0_i32_1 = arith.constant 0 : i32
    return %c0_i32, %c0_i32_0 : i32, i32
  }
  func.func @transform_8(%arg0: i32) -> (i32, i32) {
    %c0_i32 = arith.constant 0 : i32
    %c0_i32_0 = arith.constant 0 : i32
    return %arg0, %c0_i32 : i32, i32
  }
  func.func @transform_9(%arg0: i32) -> (i32, i32) {
    %c0_i32 = arith.constant 0 : i32
    %c0_i32_0 = arith.constant 0 : i32
    return %arg0, %c0_i32 : i32, i32
  }
  func.func @transform_10(%arg0: i32) -> (i32, i32) {
    %c0_i32 = arith.constant 0 : i32
    %c0_i32_0 = arith.constant 0 : i32
    return %arg0, %c0_i32 : i32, i32
  }
}

module attributes {stable_mosaic.version = 11 : i64} {
  func.func @_phase3_kernel(%arg0: i32, %arg1: memref<32x16xbf16, #tpu.memory_space<vmem>>, %arg2: memref<32x128xbf16, #tpu.memory_space<vmem>>, %arg3: memref<16x128xbf16, #tpu.memory_space<vmem>>, %arg4: memref<128x128xbf16, #tpu.memory_space<vmem>>, %arg5: memref<128x128xbf16, #tpu.memory_space<vmem>>, %arg6: memref<8x128xf32, #tpu.memory_space<vmem>>, %arg7: memref<16x128xf32, #tpu.memory_space<vmem>>, %arg8: memref<16x128xf32, #tpu.memory_space<vmem>>, %arg9: memref<8x128xf32, #tpu.memory_space<vmem>>, %arg10: memref<32x128xf32, #tpu.memory_space<vmem>>) attributes {dimension_semantics = [#tpu.dimension_semantics<parallel>], iteration_bounds = array<i64: 2>, scalar_prefetch = 0 : i64, scratch_operands = 0 : i64, tpu.core_type = #tpu.core_type<tc>, window_params = [{transform_indices = @transform_0, window_bounds = array<i64: 32, 16>}, {transform_indices = @transform_1, window_bounds = array<i64: 32, 128>}, {pipeline_mode = #tpu.pipeline_mode<synchronous>, transform_indices = @transform_2, window_bounds = array<i64: 16, 128>}, {pipeline_mode = #tpu.pipeline_mode<synchronous>, transform_indices = @transform_3, window_bounds = array<i64: 128, 128>}, {pipeline_mode = #tpu.pipeline_mode<synchronous>, transform_indices = @transform_4, window_bounds = array<i64: 128, 128>}, {pipeline_mode = #tpu.pipeline_mode<synchronous>, transform_indices = @transform_5, window_bounds = array<i64: 8, 128>}, {pipeline_mode = #tpu.pipeline_mode<synchronous>, transform_indices = @transform_6, window_bounds = array<i64: 16, 128>}, {pipeline_mode = #tpu.pipeline_mode<synchronous>, transform_indices = @transform_7, window_bounds = array<i64: 16, 128>}, {transform_indices = @transform_8, window_bounds = array<i64: 8, 128>}, {transform_indices = @transform_9, window_bounds = array<i64: 32, 128>}]} {
    %c0 = arith.constant 0 : index
    %c0_0 = arith.constant 0 : index
    %0 = vector.load %arg6[%c0, %c0_0] : memref<8x128xf32, #tpu.memory_space<vmem>>, vector<8x128xf32>
    %c0_1 = arith.constant 0 : index
    %c0_2 = arith.constant 0 : index
    %1 = vector.load %arg7[%c0_1, %c0_2] : memref<16x128xf32, #tpu.memory_space<vmem>>, vector<16x128xf32>
    %2 = vector.shape_cast %1 : vector<16x128xf32> to vector<2x8x128xf32>
    %cst = arith.constant dense<0.000000e+00> : vector<8x128xf32>
    %3 = vector.multi_reduction <add>, %2, %cst [0] : vector<2x8x128xf32> to vector<8x128xf32>
    %c0_3 = arith.constant 0 : index
    %c0_4 = arith.constant 0 : index
    %4 = vector.load %arg8[%c0_3, %c0_4] : memref<16x128xf32, #tpu.memory_space<vmem>>, vector<16x128xf32>
    %5 = vector.shape_cast %4 : vector<16x128xf32> to vector<2x8x128xf32>
    %cst_5 = arith.constant dense<0.000000e+00> : vector<8x128xf32>
    %6 = vector.multi_reduction <add>, %5, %cst_5 [0] : vector<2x8x128xf32> to vector<8x128xf32>
    %7 = vector.extract_strided_slice %6 {offsets = [0, 0], sizes = [1, 128], strides = [1, 1]} : vector<8x128xf32> to vector<1x128xf32>
    %8 = vector.extract_strided_slice %6 {offsets = [1, 0], sizes = [1, 128], strides = [1, 1]} : vector<8x128xf32> to vector<1x128xf32>
    %9 = vector.extract_strided_slice %0 {offsets = [2, 0], sizes = [1, 128], strides = [1, 1]} : vector<8x128xf32> to vector<1x128xf32>
    %10 = vector.extract_strided_slice %0 {offsets = [3, 0], sizes = [1, 128], strides = [1, 1]} : vector<8x128xf32> to vector<1x128xf32>
    %cst_6 = arith.constant 1.562500e-02 : f32
    %11 = vector.broadcast %cst_6 : f32 to vector<1x128xf32>
    %12 = arith.mulf %7, %11 : vector<1x128xf32>
    %cst_7 = arith.constant 1.562500e-02 : f32
    %13 = vector.broadcast %cst_7 : f32 to vector<1x128xf32>
    %14 = arith.mulf %8, %13 : vector<1x128xf32>
    %15 = arith.mulf %12, %12 : vector<1x128xf32>
    %16 = arith.subf %14, %15 : vector<1x128xf32>
    %cst_8 = arith.constant 0.000000e+00 : f32
    %17 = vector.broadcast %cst_8 : f32 to vector<1x128xf32>
    %18 = arith.maximumf %16, %17 : vector<1x128xf32>
    %cst_9 = arith.constant 9.99999974E-6 : f32
    %19 = vector.broadcast %cst_9 : f32 to vector<1x128xf32>
    %20 = arith.addf %18, %19 : vector<1x128xf32>
    %21 = math.rsqrt %20 : vector<1x128xf32>
    %22 = arith.mulf %9, %21 : vector<1x128xf32>
    %23 = arith.mulf %12, %22 : vector<1x128xf32>
    %24 = arith.subf %10, %23 : vector<1x128xf32>
    %25 = vector.extract_strided_slice %3 {offsets = [2, 0], sizes = [1, 128], strides = [1, 1]} : vector<8x128xf32> to vector<1x128xf32>
    %26 = vector.extract_strided_slice %3 {offsets = [3, 0], sizes = [1, 128], strides = [1, 1]} : vector<8x128xf32> to vector<1x128xf32>
    %27 = vector.extract_strided_slice %0 {offsets = [4, 0], sizes = [1, 128], strides = [1, 1]} : vector<8x128xf32> to vector<1x128xf32>
    %28 = vector.extract_strided_slice %0 {offsets = [5, 0], sizes = [1, 128], strides = [1, 1]} : vector<8x128xf32> to vector<1x128xf32>
    %cst_10 = arith.constant 1.562500e-02 : f32
    %29 = vector.broadcast %cst_10 : f32 to vector<1x128xf32>
    %30 = arith.mulf %25, %29 : vector<1x128xf32>
    %cst_11 = arith.constant 1.562500e-02 : f32
    %31 = vector.broadcast %cst_11 : f32 to vector<1x128xf32>
    %32 = arith.mulf %26, %31 : vector<1x128xf32>
    %33 = arith.mulf %30, %30 : vector<1x128xf32>
    %34 = arith.subf %32, %33 : vector<1x128xf32>
    %cst_12 = arith.constant 0.000000e+00 : f32
    %35 = vector.broadcast %cst_12 : f32 to vector<1x128xf32>
    %36 = arith.maximumf %34, %35 : vector<1x128xf32>
    %cst_13 = arith.constant 9.99999974E-6 : f32
    %37 = vector.broadcast %cst_13 : f32 to vector<1x128xf32>
    %38 = arith.addf %36, %37 : vector<1x128xf32>
    %39 = math.rsqrt %38 : vector<1x128xf32>
    %40 = arith.mulf %27, %39 : vector<1x128xf32>
    %41 = arith.mulf %30, %40 : vector<1x128xf32>
    %42 = arith.subf %28, %41 : vector<1x128xf32>
    %c0_14 = arith.constant 0 : index
    %c0_15 = arith.constant 0 : index
    %43 = vector.load %arg1[%c0_14, %c0_15] : memref<32x16xbf16, #tpu.memory_space<vmem>>, vector<32x16xbf16>
    %c0_16 = arith.constant 0 : index
    %c0_17 = arith.constant 0 : index
    %44 = vector.load %arg3[%c0_16, %c0_17] : memref<16x128xbf16, #tpu.memory_space<vmem>>, vector<16x128xbf16>
    %cst_18 = arith.constant dense<0.000000e+00> : vector<32x128xf32>
    %45 = tpu.matmul %43, %44, %cst_18 {dimension_numbers = #tpu.dot_dimension_numbers<[1], [0], [0], [1], [0, 0, 1, 1], [], []>} : vector<32x16xbf16>, vector<16x128xbf16>, vector<32x128xf32> -> vector<32x128xf32>
    %46 = vector.broadcast %40 : vector<1x128xf32> to vector<32x128xf32>
    %47 = arith.mulf %45, %46 : vector<32x128xf32>
    %48 = vector.broadcast %42 : vector<1x128xf32> to vector<32x128xf32>
    %49 = arith.addf %47, %48 : vector<32x128xf32>
    %c0_19 = arith.constant 0 : index
    %c0_20 = arith.constant 0 : index
    %50 = vector.load %arg2[%c0_19, %c0_20] : memref<32x128xbf16, #tpu.memory_space<vmem>>, vector<32x128xbf16>
    %51 = arith.extf %50 : vector<32x128xbf16> to vector<32x128xf32>
    %52 = vector.broadcast %22 : vector<1x128xf32> to vector<32x128xf32>
    %53 = arith.mulf %51, %52 : vector<32x128xf32>
    %54 = vector.broadcast %24 : vector<1x128xf32> to vector<32x128xf32>
    %55 = arith.addf %53, %54 : vector<32x128xf32>
    %c0_21 = arith.constant 0 : index
    %c0_22 = arith.constant 0 : index
    %56 = vector.load %arg9[%c0_21, %c0_22] : memref<8x128xf32, #tpu.memory_space<vmem>>, vector<8x128xf32>
    %cst_23 = arith.constant 6.250000e-02 : f32
    %57 = vector.broadcast %cst_23 : f32 to vector<1x128xf32>
    %58 = arith.mulf %22, %57 : vector<1x128xf32>
    %59 = vector.broadcast %58 : vector<1x128xf32> to vector<8x128xf32>
    %60 = arith.mulf %56, %59 : vector<8x128xf32>
    %61 = vector.broadcast %24 : vector<1x128xf32> to vector<8x128xf32>
    %62 = arith.addf %60, %61 : vector<8x128xf32>
    %63 = arith.truncf %62 : vector<8x128xf32> to vector<8x128xbf16>
    %c0_24 = arith.constant 0 : index
    %c0_25 = arith.constant 0 : index
    %64 = vector.load %arg4[%c0_24, %c0_25] : memref<128x128xbf16, #tpu.memory_space<vmem>>, vector<128x128xbf16>
    %cst_26 = arith.constant dense<0.000000e+00> : vector<8x128xf32>
    %65 = tpu.matmul %63, %64, %cst_26 {dimension_numbers = #tpu.dot_dimension_numbers<[1], [0], [0], [1], [0, 0, 1, 1], [], []>} : vector<8x128xbf16>, vector<128x128xbf16>, vector<8x128xf32> -> vector<8x128xf32>
    %cst_27 = arith.constant 0.000000e+00 : f32
    %66 = vector.broadcast %cst_27 : f32 to vector<8x128xf32>
    %67 = arith.maximumf %65, %66 : vector<8x128xf32>
    %68 = arith.truncf %67 : vector<8x128xf32> to vector<8x128xbf16>
    %c0_28 = arith.constant 0 : index
    %c0_29 = arith.constant 0 : index
    %69 = vector.load %arg5[%c0_28, %c0_29] : memref<128x128xbf16, #tpu.memory_space<vmem>>, vector<128x128xbf16>
    %cst_30 = arith.constant dense<0.000000e+00> : vector<8x128xf32>
    %70 = tpu.matmul %68, %69, %cst_30 {dimension_numbers = #tpu.dot_dimension_numbers<[1], [0], [0], [1], [0, 0, 1, 1], [], []>} : vector<8x128xbf16>, vector<128x128xbf16>, vector<8x128xf32> -> vector<8x128xf32>
    %71 = arith.negf %70 : vector<8x128xf32>
    %72 = math.exp %71 : vector<8x128xf32>
    %cst_31 = arith.constant 1.000000e+00 : f32
    %73 = vector.broadcast %cst_31 : f32 to vector<8x128xf32>
    %74 = arith.addf %73, %72 : vector<8x128xf32>
    %75 = arith.divf %73, %74 : vector<8x128xf32>
    %76 = vector.extract_strided_slice %75 {offsets = [0, 0], sizes = [2, 128], strides = [1, 1]} : vector<8x128xf32> to vector<2x128xf32>
    %77 = vector.shape_cast %55 : vector<32x128xf32> to vector<2x16x128xf32>
    %78 = vector.shape_cast %76 : vector<2x128xf32> to vector<2x1x128xf32>
    %79 = vector.broadcast %78 : vector<2x1x128xf32> to vector<2x16x128xf32>
    %80 = arith.mulf %77, %79 : vector<2x16x128xf32>
    %81 = vector.shape_cast %80 : vector<2x16x128xf32> to vector<32x128xf32>
    %82 = arith.addf %81, %49 : vector<32x128xf32>
    %cst_32 = arith.constant 0.000000e+00 : f32
    %83 = vector.broadcast %cst_32 : f32 to vector<32x128xf32>
    %84 = arith.maximumf %82, %83 : vector<32x128xf32>
    %c0_33 = arith.constant 0 : index
    %c0_34 = arith.constant 0 : index
    %85 = vector.load %arg10[%c0_33, %c0_34] : memref<32x128xf32, #tpu.memory_space<vmem>>, vector<32x128xf32>
    tpu.vector_store %arg10[%c0_33, %c0_34], %84 {strides = array<i32>} : memref<32x128xf32, #tpu.memory_space<vmem>>, vector<32x128xf32>,
    return
  }
  func.func @transform_0(%arg0: i32) -> (i32, i32) {
    %c0_i32 = arith.constant 0 : i32
    %c0_i32_0 = arith.constant 0 : i32
    return %arg0, %c0_i32 : i32, i32
  }
  func.func @transform_1(%arg0: i32) -> (i32, i32) {
    %c0_i32 = arith.constant 0 : i32
    %c0_i32_0 = arith.constant 0 : i32
    return %arg0, %c0_i32 : i32, i32
  }
  func.func @transform_2(%arg0: i32) -> (i32, i32) {
    %c0_i32 = arith.constant 0 : i32
    %c0_i32_0 = arith.constant 0 : i32
    %c0_i32_1 = arith.constant 0 : i32
    return %c0_i32, %c0_i32_0 : i32, i32
  }
  func.func @transform_3(%arg0: i32) -> (i32, i32) {
    %c0_i32 = arith.constant 0 : i32
    %c0_i32_0 = arith.constant 0 : i32
    %c0_i32_1 = arith.constant 0 : i32
    return %c0_i32, %c0_i32_0 : i32, i32
  }
  func.func @transform_4(%arg0: i32) -> (i32, i32) {
    %c0_i32 = arith.constant 0 : i32
    %c0_i32_0 = arith.constant 0 : i32
    %c0_i32_1 = arith.constant 0 : i32
    return %c0_i32, %c0_i32_0 : i32, i32
  }
  func.func @transform_5(%arg0: i32) -> (i32, i32) {
    %c0_i32 = arith.constant 0 : i32
    %c0_i32_0 = arith.constant 0 : i32
    %c0_i32_1 = arith.constant 0 : i32
    return %c0_i32, %c0_i32_0 : i32, i32
  }
  func.func @transform_6(%arg0: i32) -> (i32, i32) {
    %c0_i32 = arith.constant 0 : i32
    %c0_i32_0 = arith.constant 0 : i32
    %c0_i32_1 = arith.constant 0 : i32
    return %c0_i32, %c0_i32_0 : i32, i32
  }
  func.func @transform_7(%arg0: i32) -> (i32, i32) {
    %c0_i32 = arith.constant 0 : i32
    %c0_i32_0 = arith.constant 0 : i32
    %c0_i32_1 = arith.constant 0 : i32
    return %c0_i32, %c0_i32_0 : i32, i32
  }
  func.func @transform_8(%arg0: i32) -> (i32, i32) {
    %c0_i32 = arith.constant 0 : i32
    %c0_i32_0 = arith.constant 0 : i32
    return %arg0, %c0_i32 : i32, i32
  }
  func.func @transform_9(%arg0: i32) -> (i32, i32) {
    %c0_i32 = arith.constant 0 : i32
    %c0_i32_0 = arith.constant 0 : i32
    return %arg0, %c0_i32 : i32, i32
  }
}

</mosaic_0001>

<llo_original>
// kernel: basic_block_forward.3
$region0: #{basic_block_forward.3}
  #allocation0 [shape = 'u32[]', space=smem, size = 0x4, offset = 0x4, fixed_abs, tag = 'smem constant byte address 0x4 - core index']
  #allocation1 [shape = 'u32[144,128]{1,0:T(1,128)}', space=vmem, size = 0x12000, scoped, tag = 'internal scratch']
  %s0 = inlined_call_operand.vmem [shape: bf16[64,16], index: 0, kind: input, shape index: {}]
  %s1 = inlined_call_operand.vmem [shape: bf16[64,16], index: 1, kind: input, shape index: {}]
  %s2 = inlined_call_operand.vmem [shape: bf16[16,128], index: 2, kind: input, shape index: {}]
  %s3 = inlined_call_operand.vmem [shape: bf16[16,128], index: 3, kind: input, shape index: {}]
  %s4 = inlined_call_operand.vmem [shape: bf16[16,128], index: 4, kind: input, shape index: {}]
  %s5 = inlined_call_operand.vmem [shape: bf16[16,128], index: 5, kind: input, shape index: {}]
  %s6 = inlined_call_operand.vmem [shape: f32[16,128], index: 6, kind: output, shape index: {}]
  %s7 = sld [smem:[#allocation0]]
  $region57: #{basic_block_forward.3} parent=0
    _
  %s9 = ssub.s32 1, %s7
  %s10 = scalar_select 0, %s9, %s7
  loop: start=0, step=1, limit=4
  $region2: #{basic_block_forward.3} parent=0 // loop_pre_header
    _
  $region3: #{basic_block_forward.3} parent=0 // loop_header
    %s12 = sphi 0, %s16
    %p13 = scmp.ge.s32.totalorder %s12, 4
    %s22 = sphi 0, %s24
    %s25 = sphi 0, %s22
    %s26 = sphi 0, %s25
    %s42 = sphi 0, %s26
    %s48 = sphi 0, %s50
    %s51 = sphi 0, %s48
    %s52 = sphi 0, %s51
    %s68 = sphi 0, %s52
    %s72 = sphi 0, %s72
    %s74 = sphi 0, %s72
    %s75 = sphi 0, %s74
    %s89 = sphi 0, %s75
    %s93 = sphi 0, %s93
    %s95 = sphi 0, %s93
    %s96 = sphi 0, %s95
    %s110 = sphi 0, %s96
    %s114 = sphi 0, %s114
    %s116 = sphi 0, %s114
    %s117 = sphi 0, %s116
    %s131 = sphi 0, %s117
    %s135 = sphi 0, %s135
    %s137 = sphi 0, %s135
    %s138 = sphi 0, %s137
    %s152 = sphi 0, %s138
    %s158 = sphi 0, %s160
    %s161 = sphi 0, %s158
    %s162 = sphi 0, %s161
    %s178 = sphi 0, %s162
  $region4: #{basic_block_forward.3} parent=0 // loop_header_branch
    %15 = sbr.rel (%p13) target = $region8
  $region5: #{basic_block_forward.3} parent=0 // loop_body
    %s17 = ssub.s32 %s12, 1
    %s18 = ssub.s32 %s12, 2
    %s19 = sadd.s32 %s12, 1
    %s20 = ssub.s32 %s12, %s19
    %p21 = scmp.eq.s32.totalorder %s20, 0
    %s23 = sadd.s32 %s22, 1
    %s24 = scalar_select %p21, %s22, %s23
    %p27 = pneg %p21
    %p28 = scmp.eq.s32.totalorder %s12, 1
    %p29 = por %p27, %p28
    %p30 = scmp.ne.s32.totalorder %s22, %s25
    %p31 = scmp.eq.s32.totalorder %s12, 0
    %p32 = por %p30, %p31
    %p33 = scmp.ne.s32.totalorder %s22, %s25
    %p34 = scmp.eq.s32.totalorder %s17, 1
    %p35 = por %p33, %p34
    %p36 = scmp.ne.s32.totalorder %s25, %s26
    %p37 = scmp.eq.s32.totalorder %s17, 0
    %p38 = por %p36, %p37
    %p39 = scmp.ne.s32.totalorder %s25, %s26
    %p40 = scmp.eq.s32.totalorder %s18, 1
    %p41 = por %p39, %p40
    %p43 = scmp.ne.s32.totalorder %s26, %s42
    %p44 = scmp.eq.s32.totalorder %s18, 0
    %p45 = por %p43, %p44
    %s46 = ssub.s32 %s12, %s19
    %p47 = scmp.eq.s32.totalorder %s46, 0
    %s49 = sadd.s32 %s48, 1
    %s50 = scalar_select %p47, %s48, %s49
    %p53 = pneg %p47
    %p54 = scmp.eq.s32.totalorder %s12, 1
    %p55 = por %p53, %p54
    %p56 = scmp.ne.s32.totalorder %s48, %s51
    %p57 = scmp.eq.s32.totalorder %s12, 0
    %p58 = por %p56, %p57
    %p59 = scmp.ne.s32.totalorder %s48, %s51
    %p60 = scmp.eq.s32.totalorder %s17, 1
    %p61 = por %p59, %p60
    %p62 = scmp.ne.s32.totalorder %s51, %s52
    %p63 = scmp.eq.s32.totalorder %s17, 0
    %p64 = por %p62, %p63
    %p65 = scmp.ne.s32.totalorder %s51, %s52
    %p66 = scmp.eq.s32.totalorder %s18, 1
    %p67 = por %p65, %p66
    %p69 = scmp.ne.s32.totalorder %s52, %s68
    %p70 = scmp.eq.s32.totalorder %s18, 0
    %p71 = por %p69, %p70
    %s73 = sadd.s32 %s72, 1
    %p76 = scmp.eq.s32.totalorder %s12, 1
    %p77 = scmp.ne.s32.totalorder %s72, %s74
    %p78 = scmp.eq.s32.totalorder %s12, 0
    %p79 = por %p77, %p78
    %p80 = scmp.ne.s32.totalorder %s72, %s74
    %p81 = scmp.eq.s32.totalorder %s17, 1
    %p82 = por %p80, %p81
    %p83 = scmp.ne.s32.totalorder %s74, %s75
    %p84 = scmp.eq.s32.totalorder %s17, 0
    %p85 = por %p83, %p84
    %p86 = scmp.ne.s32.totalorder %s74, %s75
    %p87 = scmp.eq.s32.totalorder %s18, 1
    %p88 = por %p86, %p87
    %p90 = scmp.ne.s32.totalorder %s75, %s89
    %p91 = scmp.eq.s32.totalorder %s18, 0
    %p92 = por %p90, %p91
    %s94 = sadd.s32 %s93, 1
    %p97 = scmp.eq.s32.totalorder %s12, 1
    %p98 = scmp.ne.s32.totalorder %s93, %s95
    %p99 = scmp.eq.s32.totalorder %s12, 0
    %p100 = por %p98, %p99
    %p101 = scmp.ne.s32.totalorder %s93, %s95
    %p102 = scmp.eq.s32.totalorder %s17, 1
    %p103 = por %p101, %p102
    %p104 = scmp.ne.s32.totalorder %s95, %s96
    %p105 = scmp.eq.s32.totalorder %s17, 0
    %p106 = por %p104, %p105
    %p107 = scmp.ne.s32.totalorder %s95, %s96
    %p108 = scmp.eq.s32.totalorder %s18, 1
    %p109 = por %p107, %p108
    %p111 = scmp.ne.s32.totalorder %s96, %s110
    %p112 = scmp.eq.s32.totalorder %s18, 0
    %p113 = por %p111, %p112
    %s115 = sadd.s32 %s114, 1
    %p118 = scmp.eq.s32.totalorder %s12, 1
    %p119 = scmp.ne.s32.totalorder %s114, %s116
    %p120 = scmp.eq.s32.totalorder %s12, 0
    %p121 = por %p119, %p120
    %p122 = scmp.ne.s32.totalorder %s114, %s116
    %p123 = scmp.eq.s32.totalorder %s17, 1
    %p124 = por %p122, %p123
    %p125 = scmp.ne.s32.totalorder %s116, %s117
    %p126 = scmp.eq.s32.totalorder %s17, 0
    %p127 = por %p125, %p126
    %p128 = scmp.ne.s32.totalorder %s116, %s117
    %p129 = scmp.eq.s32.totalorder %s18, 1
    %p130 = por %p128, %p129
    %p132 = scmp.ne.s32.totalorder %s117, %s131
    %p133 = scmp.eq.s32.totalorder %s18, 0
    %p134 = por %p132, %p133
    %s136 = sadd.s32 %s135, 1
    %p139 = scmp.eq.s32.totalorder %s12, 1
    %p140 = scmp.ne.s32.totalorder %s135, %s137
    %p141 = scmp.eq.s32.totalorder %s12, 0
    %p142 = por %p140, %p141
    %p143 = scmp.ne.s32.totalorder %s135, %s137
    %p144 = scmp.eq.s32.totalorder %s17, 1
    %p145 = por %p143, %p144
    %p146 = scmp.ne.s32.totalorder %s137, %s138
    %p147 = scmp.eq.s32.totalorder %s17, 0
    %p148 = por %p146, %p147
    %p149 = scmp.ne.s32.totalorder %s137, %s138
    %p150 = scmp.eq.s32.totalorder %s18, 1
    %p151 = por %p149, %p150
    %p153 = scmp.ne.s32.totalorder %s138, %s152
    %p154 = scmp.eq.s32.totalorder %s18, 0
    %p155 = por %p153, %p154
    %s156 = ssub.s32 %s12, %s19
    %p157 = scmp.eq.s32.totalorder %s156, 0
    %s159 = sadd.s32 %s158, 1
    %s160 = scalar_select %p157, %s158, %s159
    %p163 = pneg %p157
    %p164 = scmp.eq.s32.totalorder %s12, 1
    %p165 = por %p163, %p164
    %p166 = scmp.ne.s32.totalorder %s158, %s161
    %p167 = scmp.eq.s32.totalorder %s12, 0
    %p168 = por %p166, %p167
    %p169 = scmp.ne.s32.totalorder %s158, %s161
    %p170 = scmp.eq.s32.totalorder %s17, 1
    %p171 = por %p169, %p170
    %p172 = scmp.ne.s32.totalorder %s161, %s162
    %p173 = scmp.eq.s32.totalorder %s17, 0
    %p174 = por %p172, %p173
    %p175 = scmp.ne.s32.totalorder %s161, %s162
    %p176 = scmp.eq.s32.totalorder %s18, 1
    %p177 = por %p175, %p176
    %p179 = scmp.ne.s32.totalorder %s162, %s178
    %p180 = scmp.eq.s32.totalorder %s18, 0
    %p181 = por %p179, %p180
    %p182 = scmp.le.s32.totalorder 1, %s12
    %p183 = scmp.lt.s32.totalorder %s12, 3
    %p184 = pnand %p182, %p183
    %p185 = pneg %p184
    // Predicated region
    $region9: #{basic_block_forward.3} parent=5 // pred_check
      _
    $region10: #{basic_block_forward.3} parent=5 // pred_check_branch
      %187 = sbr.rel (%p184) target = $region12
    $region11: #{basic_block_forward.3} parent=5 // pred_region
      %s188 = ssub.s32 %s12, 1
      // Predicated region
      $region13: #{basic_block_forward.3} parent=11 // pred_check
        %p189 = pneg %p85
      $region14: #{basic_block_forward.3} parent=11 // pred_check_branch
        %191 = sbr.rel (%p189) target = $region16
      $region15: #{basic_block_forward.3} parent=11 // pred_region
        _
      $region16: #{basic_block_forward.3} parent=11 // pred_fallthru
        _
      // Predicated region
      $region17: #{basic_block_forward.3} parent=11 // pred_check
        %p192 = pneg %p106
      $region18: #{basic_block_forward.3} parent=11 // pred_check_branch
        %194 = sbr.rel (%p192) target = $region20
      $region19: #{basic_block_forward.3} parent=11 // pred_region
        _
      $region20: #{basic_block_forward.3} parent=11 // pred_fallthru
        _
      // Predicated region
      $region21: #{basic_block_forward.3} parent=11 // pred_check
        %p195 = pneg %p127
      $region22: #{basic_block_forward.3} parent=11 // pred_check_branch
        %197 = sbr.rel (%p195) target = $region24
      $region23: #{basic_block_forward.3} parent=11 // pred_region
        _
      $region24: #{basic_block_forward.3} parent=11 // pred_fallthru
        _
      // Predicated region
      $region25: #{basic_block_forward.3} parent=11 // pred_check
        %p198 = pneg %p148
      $region26: #{basic_block_forward.3} parent=11 // pred_check_branch
        %200 = sbr.rel (%p198) target = $region28
      $region27: #{basic_block_forward.3} parent=11 // pred_region
        _
      $region28: #{basic_block_forward.3} parent=11 // pred_fallthru
        _
    $region12: #{basic_block_forward.3} parent=5 // pred_fallthru
      _
    %p201 = scmp.lt.s32.totalorder %s12, 2
    // Predicated region
    $region29: #{basic_block_forward.3} parent=5 // pred_check
      %p202 = pneg %p201
    $region30: #{basic_block_forward.3} parent=5 // pred_check_branch
      %204 = sbr.rel (%p202) target = $region32
    $region31: #{basic_block_forward.3} parent=5 // pred_region
      // Predicated region
      $region33: #{basic_block_forward.3} parent=31 // pred_check
        %p205 = pneg %p32
      $region34: #{basic_block_forward.3} parent=31 // pred_check_branch
        %207 = sbr.rel (%p205) target = $region36
      $region35: #{basic_block_forward.3} parent=31 // pred_region
        %s208 = smul.u32 4, %s12
        %p209 = scmp.lt.s32.totalorder %s208, 7
        %s210 = scalar_select %p209, %s208, 7
        %s211 = smul.addr %s210, 4
        %s212 = scalar_lea.vmem %s0, %s211
        %s213 = smul.u32 4, %s12
      $region36: #{basic_block_forward.3} parent=31 // pred_fallthru
        _
      // Predicated region
      $region37: #{basic_block_forward.3} parent=31 // pred_check
        %p214 = pneg %p58
      $region38: #{basic_block_forward.3} parent=31 // pred_check_branch
        %216 = sbr.rel (%p214) target = $region40
      $region39: #{basic_block_forward.3} parent=31 // pred_region
        %s217 = smul.u32 4, %s12
        %p218 = scmp.lt.s32.totalorder %s217, 7
        %s219 = scalar_select %p218, %s217, 7
        %s220 = smul.addr %s219, 4
        %s221 = scalar_lea.vmem %s1, %s220
        %s222 = smul.u32 4, %s12
      $region40: #{basic_block_forward.3} parent=31 // pred_fallthru
        _
    $region32: #{basic_block_forward.3} parent=5 // pred_fallthru
      _
    %p223 = scmp.le.s32.totalorder 1, %s12
    %p224 = scmp.lt.s32.totalorder %s12, 3
    %p225 = pnand %p223, %p224
    %p226 = pneg %p225
    // Predicated region
    $region41: #{basic_block_forward.3} parent=5 // pred_check
      _
    $region42: #{basic_block_forward.3} parent=5 // pred_check_branch
      %228 = sbr.rel (%p225) target = $region44
    $region43: #{basic_block_forward.3} parent=5 // pred_region
      %s229 = ssub.s32 %s12, 1
      %s230 = smul.u32 4, %s17
      %p231 = scmp.lt.s32.totalorder %s230, 7
      %s232 = scalar_select %p231, %s230, 7
      %s233 = smul.addr %s232, 4
      %s234 = scalar_lea.vmem %s0, %s233
      %p235 = pneg %p38
      %p236 = pneg %p35
      %s237 = smul.u32 4, %s17
      %p238 = scmp.lt.s32.totalorder %s237, 7
      %s239 = scalar_select %p238, %s237, 7
      %s240 = smul.addr %s239, 4
      %s241 = scalar_lea.vmem %s1, %s240
      %p242 = pneg %p64
      %p243 = pneg %p61
      %p244 = pneg %p85
      %p245 = pneg %p82
      %p246 = pneg %p106
      %p247 = pneg %p103
      %p248 = pneg %p127
      %p249 = pneg %p124
      %p250 = pneg %p148
      %p251 = pneg %p145
      %p252 = pneg %p174
      %p253 = pneg %p171
      %p254 = scmp.lt.s32.totalorder %s17, 1
      %s255 = scalar_select %p254, %s17, 1
      %s256 = smul.addr %s255, 8
      %s257 = scalar_lea.vmem %s6, %s256
      %s258 = smul.u32 4, %s17
      %p259 = scmp.lt.s32.totalorder %s258, 7
      %s260 = scalar_select %p259, %s258, 7
      %s261 = smul.addr %s260, 4
      %s262 = scalar_lea.vmem %s0, %s261
      %s263 = smul.u32 4, %s17
      %s264 = smul.u32 4, %s17
      %p265 = scmp.lt.s32.totalorder %s264, 7
      %s266 = scalar_select %p265, %s264, 7
      %s267 = smul.addr %s266, 4
      %s268 = scalar_lea.vmem %s1, %s267
      %s269 = smul.u32 4, %s17
      %p270 = scmp.lt.s32.totalorder %s17, 1
      %s271 = scalar_select %p270, %s17, 1
      %s272 = smul.addr %s271, 8
      %s273 = scalar_lea.vmem %s6, %s272
      %v275 = vld [vmem:[%s262] sm:$0xf]
      %v276 = vld [vmem:[%s262 + $0x4] sm:$0xf]
      %v277 = vld [vmem:[%s262 + $0x8] sm:$0xf]
      %v278 = vld [vmem:[%s262 + $0xc] sm:$0xf]
      %v279 = vld [vmem:[%s268] sm:$0xf]
      %v280 = vld [vmem:[%s268 + $0x4] sm:$0xf]
      %v281 = vld [vmem:[%s268 + $0x8] sm:$0xf]
      %v282 = vld [vmem:[%s268 + $0xc] sm:$0xf]
      %v283 = vlaneseq
      %v284 = vshrl.u32 %v283, 7
      %v285 = vadd.s32 %v284, 8
      %v286 = vunpack.c.l.bf16 %v279
      %v287 = vunpack.c.l.bf16 %v280
      %v288 = vunpack.c.l.bf16 %v281
      %v289 = vunpack.c.l.bf16 %v282
      %v290 = vrot.slane %v286, 7
      %v291 = vrot.slane %v287, 7
      %v292 = vrot.slane %v288, 7
      %v293 = vrot.slane %v289, 7
      %vm294 = vcmp.lt.s32.totalorder %v284, 1
      %v295 = vsel %vm294, %v292, %v293
      %v296 = vsel %vm294, %v291, %v292
      %v297 = vsel %vm294, %v290, %v291
      %v298 = vsel %vm294, %v293, %v290
      %vm299 = vcmp.eq.s32.totalorder %v284, 0
      %vm300 = vcmp.eq.s32.totalorder %v285, 0
      %vm301 = vcmp.ge.s32.totalorder %v284, 16
      %vm302 = vcmp.ge.s32.totalorder %v285, 16
      %vm303 = vmor %vm299, %vm301
      %vm304 = vmor %vm300, %vm302
      %v305 = vsel %vm303, 0.0, %v298
      %v306 = vsel %vm304, 0.0, %v297
      %v307 = vsel %vm303, 0.0, %v296
      %v308 = vsel %vm304, 0.0, %v295
      %v309 = vpack.c.bf16 %v306, %v305
      %v310 = vpack.c.bf16 %v308, %v307
      %v311 = vld [vmem:[%s2] sm:$0xf]
      %v312 = vld [vmem:[%s2 + $0x4] sm:$0xf]
      %v313 = vld [vmem:[%s3] sm:$0xf]
      %v314 = vld [vmem:[%s3 + $0x4] sm:$0xf]
      %v319 = vunpack.c.l.b16 %v275
      %v320 = vunpack.c.l.b16 %v276
      %v321 = vunpack.c.l.b16 %v277
      %v322 = vunpack.c.l.b16 %v278
      %v323 = vpack.c.b16 %v320, %v319
      %v324 = vpack.c.b16 %v322, %v321
      %v327 = vunpack.c.l.b16 %v313
      %v328 = vunpack.c.l.b16 %v314
      %v329 = vpack.c.b16 %v328, %v327
      %vm331 = vcmask 130048
      %v333 = vsel %vm331, %v323, 0
      %v336 = vsel %vm331, %v324, 0
      %338 = vmatprep.subr.bf16.mxu0 0
      %339 = vmatpush1.bf16.msra.mxu0 %v329
      %340 = vmatprep.subr.bf16.mxu0 0
      %341 = vmatpush1.bf16.msra.mxu0 0
      %342 = vmatprep.subr.bf16.mxu0 0
      %343 = vmatpush1.bf16.msra.mxu0 0
      %344 = vmatprep.subr.bf16.mxu0 0
      %345 = vmatpush1.bf16.msra.mxu0 0
      %346 = vmatprep.subr.bf16.mxu0 0
      %347 = vmatpush1.bf16.msra.mxu0 0
      %348 = vmatprep.subr.bf16.mxu0 0
      %349 = vmatpush1.bf16.msra.mxu0 0
      %350 = vmatprep.subr.bf16.mxu0 0
      %351 = vmatpush1.bf16.msra.mxu0 0
      %352 = vmatprep.subr.bf16.mxu0 0
      %353 = vmatpush1.bf16.msra.mxu0 0
      %354 = vmatprep.subr.bf16.mxu0 0
      %355 = vmatpush1.bf16.msra.mxu0 0
      %356 = vmatprep.subr.bf16.mxu0 0
      %357 = vmatpush1.bf16.msra.mxu0 0
      %358 = vmatprep.subr.bf16.mxu0 0
      %359 = vmatpush1.bf16.msra.mxu0 0
      %360 = vmatprep.subr.bf16.mxu0 0
      %361 = vmatpush1.bf16.msra.mxu0 0
      %362 = vmatprep.subr.bf16.mxu0 0
      %363 = vmatpush1.bf16.msra.mxu0 0
      %364 = vmatprep.subr.bf16.mxu0 0
      %365 = vmatpush1.bf16.msra.mxu0 0
      %366 = vmatprep.subr.bf16.mxu0 0
      %367 = vmatpush1.bf16.msra.mxu0 0
      %368 = vmatprep.subr.bf16.mxu0 0
      %369 = vmatpush1.bf16.msra.mxu0 0
      %370 = vmatprep.mubr.bf16.mxu0 0
      %371 = vmatmul.mubr.bf16.gmra.mrb[0].mxu0 %v333
      %v372 = vpop.f32.mrb[0].mxu0
      %v373 = vadd.f32 0.0, %v372
      %v374 = vpop.f32.mrb[0].mxu0
      %v375 = vpop.f32.mrb[0].mxu0
      %v376 = vadd.f32 0.0, %v375
      %v377 = vpop.f32.mrb[0].mxu0
      %378 = vmatprep.mubr.bf16.mxu0 0
      %379 = vmatmul.mubr.bf16.gmra.mrb[0].mxu0 %v336
      %v380 = vpop.f32.mrb[0].mxu0
      %v381 = vadd.f32 0.0, %v380
      %v382 = vpop.f32.mrb[0].mxu0
      %v383 = vpop.f32.mrb[0].mxu0
      %v384 = vadd.f32 0.0, %v383
      %v385 = vpop.f32.mrb[0].mxu0
      %386 = vdwg.mxu0
      %v389 = vunpack.c.l.b16 %v311
      %v390 = vunpack.c.l.b16 %v312
      %v391 = vpack.c.b16 %v390, %v389
      %v394 = vsel %vm331, %v309, 0
      %v397 = vsel %vm331, %v310, 0
      %399 = vmatprep.subr.bf16.mxu0 0
      %400 = vmatpush1.bf16.msra.mxu0 %v391
      %401 = vmatprep.subr.bf16.mxu0 0
      %402 = vmatpush1.bf16.msra.mxu0 0
      %403 = vmatprep.subr.bf16.mxu0 0
      %404 = vmatpush1.bf16.msra.mxu0 0
      %405 = vmatprep.subr.bf16.mxu0 0
      %406 = vmatpush1.bf16.msra.mxu0 0
      %407 = vmatprep.subr.bf16.mxu0 0
      %408 = vmatpush1.bf16.msra.mxu0 0
      %409 = vmatprep.subr.bf16.mxu0 0
      %410 = vmatpush1.bf16.msra.mxu0 0
      %411 = vmatprep.subr.bf16.mxu0 0
      %412 = vmatpush1.bf16.msra.mxu0 0
      %413 = vmatprep.subr.bf16.mxu0 0
      %414 = vmatpush1.bf16.msra.mxu0 0
      %415 = vmatprep.subr.bf16.mxu0 0
      %416 = vmatpush1.bf16.msra.mxu0 0
      %417 = vmatprep.subr.bf16.mxu0 0
      %418 = vmatpush1.bf16.msra.mxu0 0
      %419 = vmatprep.subr.bf16.mxu0 0
      %420 = vmatpush1.bf16.msra.mxu0 0
      %421 = vmatprep.subr.bf16.mxu0 0
      %422 = vmatpush1.bf16.msra.mxu0 0
      %423 = vmatprep.subr.bf16.mxu0 0
      %424 = vmatpush1.bf16.msra.mxu0 0
      %425 = vmatprep.subr.bf16.mxu0 0
      %426 = vmatpush1.bf16.msra.mxu0 0
      %427 = vmatprep.subr.bf16.mxu0 0
      %428 = vmatpush1.bf16.msra.mxu0 0
      %429 = vmatprep.subr.bf16.mxu0 0
      %430 = vmatpush1.bf16.msra.mxu0 0
      %431 = vmatprep.mubr.bf16.mxu0 0
      %432 = vmatmul.mubr.bf16.gmra.mrb[0].mxu0 %v394
      %v433 = vpop.f32.mrb[0].mxu0
      %v434 = vadd.f32 %v373, %v433
      %v435 = vpop.f32.mrb[0].mxu0
      %v436 = vpop.f32.mrb[0].mxu0
      %v437 = vadd.f32 %v376, %v436
      %v438 = vpop.f32.mrb[0].mxu0
      %439 = vmatprep.mubr.bf16.mxu0 0
      %440 = vmatmul.mubr.bf16.gmra.mrb[0].mxu0 %v397
      %v441 = vpop.f32.mrb[0].mxu0
      %v442 = vadd.f32 %v381, %v441
      %v443 = vpop.f32.mrb[0].mxu0
      %v444 = vpop.f32.mrb[0].mxu0
      %v445 = vadd.f32 %v384, %v444
      %v446 = vpop.f32.mrb[0].mxu0
      %447 = vdwg.mxu0
      %v448 = vld [vmem:[%s4] sm:$0xf]
      %v449 = vld [vmem:[%s4 + $0x4] sm:$0xf]
      %v454 = vunpack.c.l.b16 %v279
      %v455 = vunpack.c.l.b16 %v280
      %v456 = vunpack.c.l.b16 %v281
      %v457 = vunpack.c.l.b16 %v282
      %v458 = vpack.c.b16 %v455, %v454
      %v459 = vpack.c.b16 %v457, %v456
      %v462 = vunpack.c.l.b16 %v448
      %v463 = vunpack.c.l.b16 %v449
      %v464 = vpack.c.b16 %v463, %v462
      %v467 = vsel %vm331, %v458, 0
      %v470 = vsel %vm331, %v459, 0
      %472 = vmatprep.subr.bf16.mxu0 0
      %473 = vmatpush1.bf16.msra.mxu0 %v464
      %474 = vmatprep.subr.bf16.mxu0 0
      %475 = vmatpush1.bf16.msra.mxu0 0
      %476 = vmatprep.subr.bf16.mxu0 0
      %477 = vmatpush1.bf16.msra.mxu0 0
      %478 = vmatprep.subr.bf16.mxu0 0
      %479 = vmatpush1.bf16.msra.mxu0 0
      %480 = vmatprep.subr.bf16.mxu0 0
      %481 = vmatpush1.bf16.msra.mxu0 0
      %482 = vmatprep.subr.bf16.mxu0 0
      %483 = vmatpush1.bf16.msra.mxu0 0
      %484 = vmatprep.subr.bf16.mxu0 0
      %485 = vmatpush1.bf16.msra.mxu0 0
      %486 = vmatprep.subr.bf16.mxu0 0
      %487 = vmatpush1.bf16.msra.mxu0 0
      %488 = vmatprep.subr.bf16.mxu0 0
      %489 = vmatpush1.bf16.msra.mxu0 0
      %490 = vmatprep.subr.bf16.mxu0 0
      %491 = vmatpush1.bf16.msra.mxu0 0
      %492 = vmatprep.subr.bf16.mxu0 0
      %493 = vmatpush1.bf16.msra.mxu0 0
      %494 = vmatprep.subr.bf16.mxu0 0
      %495 = vmatpush1.bf16.msra.mxu0 0
      %496 = vmatprep.subr.bf16.mxu0 0
      %497 = vmatpush1.bf16.msra.mxu0 0
      %498 = vmatprep.subr.bf16.mxu0 0
      %499 = vmatpush1.bf16.msra.mxu0 0
      %500 = vmatprep.subr.bf16.mxu0 0
      %501 = vmatpush1.bf16.msra.mxu0 0
      %502 = vmatprep.subr.bf16.mxu0 0
      %503 = vmatpush1.bf16.msra.mxu0 0
      %504 = vmatprep.mubr.bf16.mxu0 0
      %505 = vmatmul.mubr.bf16.gmra.mrb[0].mxu0 %v467
      %v506 = vpop.f32.mrb[0].mxu0
      %v507 = vadd.f32 0.0, %v506
      %v508 = vpop.f32.mrb[0].mxu0
      %v509 = vpop.f32.mrb[0].mxu0
      %v510 = vadd.f32 0.0, %v509
      %v511 = vpop.f32.mrb[0].mxu0
      %512 = vmatprep.mubr.bf16.mxu0 0
      %513 = vmatmul.mubr.bf16.gmra.mrb[0].mxu0 %v470
      %v514 = vpop.f32.mrb[0].mxu0
      %v515 = vadd.f32 0.0, %v514
      %v516 = vpop.f32.mrb[0].mxu0
      %v517 = vpop.f32.mrb[0].mxu0
      %v518 = vadd.f32 0.0, %v517
      %v519 = vpop.f32.mrb[0].mxu0
      %520 = vdwg.mxu0
      %v521 = vadd.f32 %v434, %v507
      %v522 = vadd.f32 %v437, %v510
      %v523 = vadd.f32 %v442, %v515
      %v524 = vadd.f32 %v445, %v518
      %v525 = vld [vmem:[%s5] sm:$0xf]
      %v526 = vld [vmem:[%s5 + $0x4] sm:$0xf]
      %v529 = vunpack.c.l.b16 %v525
      %v530 = vunpack.c.l.b16 %v526
      %v531 = vpack.c.b16 %v530, %v529
      %533 = vmatprep.subr.bf16.mxu0 0
      %534 = vmatpush1.bf16.msra.mxu0 %v531
      %535 = vmatprep.subr.bf16.mxu0 0
      %536 = vmatpush1.bf16.msra.mxu0 0
      %537 = vmatprep.subr.bf16.mxu0 0
      %538 = vmatpush1.bf16.msra.mxu0 0
      %539 = vmatprep.subr.bf16.mxu0 0
      %540 = vmatpush1.bf16.msra.mxu0 0
      %541 = vmatprep.subr.bf16.mxu0 0
      %542 = vmatpush1.bf16.msra.mxu0 0
      %543 = vmatprep.subr.bf16.mxu0 0
      %544 = vmatpush1.bf16.msra.mxu0 0
      %545 = vmatprep.subr.bf16.mxu0 0
      %546 = vmatpush1.bf16.msra.mxu0 0
      %547 = vmatprep.subr.bf16.mxu0 0
      %548 = vmatpush1.bf16.msra.mxu0 0
      %549 = vmatprep.subr.bf16.mxu0 0
      %550 = vmatpush1.bf16.msra.mxu0 0
      %551 = vmatprep.subr.bf16.mxu0 0
      %552 = vmatpush1.bf16.msra.mxu0 0
      %553 = vmatprep.subr.bf16.mxu0 0
      %554 = vmatpush1.bf16.msra.mxu0 0
      %555 = vmatprep.subr.bf16.mxu0 0
      %556 = vmatpush1.bf16.msra.mxu0 0
      %557 = vmatprep.subr.bf16.mxu0 0
      %558 = vmatpush1.bf16.msra.mxu0 0
      %559 = vmatprep.subr.bf16.mxu0 0
      %560 = vmatpush1.bf16.msra.mxu0 0
      %561 = vmatprep.subr.bf16.mxu0 0
      %562 = vmatpush1.bf16.msra.mxu0 0
      %563 = vmatprep.subr.bf16.mxu0 0
      %564 = vmatpush1.bf16.msra.mxu0 0
      %565 = vmatprep.mubr.bf16.mxu0 0
      %566 = vmatmul.mubr.bf16.gmra.mrb[0].mxu0 %v333
      %v567 = vpop.f32.mrb[0].mxu0
      %v568 = vadd.f32 0.0, %v567
      %v569 = vpop.f32.mrb[0].mxu0
      %v570 = vpop.f32.mrb[0].mxu0
      %v571 = vadd.f32 0.0, %v570
      %v572 = vpop.f32.mrb[0].mxu0
      %573 = vmatprep.mubr.bf16.mxu0 0
      %574 = vmatmul.mubr.bf16.gmra.mrb[0].mxu0 %v336
      %v575 = vpop.f32.mrb[0].mxu0
      %v576 = vadd.f32 0.0, %v575
      %v577 = vpop.f32.mrb[0].mxu0
      %v578 = vpop.f32.mrb[0].mxu0
      %v579 = vadd.f32 0.0, %v578
      %v580 = vpop.f32.mrb[0].mxu0
      %581 = vdwg.mxu0
      %v582 = vadd.f32 %v521, %v522
      %v583 = vadd.f32 %v582, %v523
      %v584 = vadd.f32 %v583, %v524
      %v585 = vrot.slane %v584, 4
      %v586 = vadd.f32 %v584, %v585
      %v587 = vrot.slane %v586, 2
      %v588 = vadd.f32 %v586, %v587
      %v589 = vrot.slane %v588, 1
      %v590 = vadd.f32 %v588, %v589
      %v591 = vmul.f32 %v521, %v521
      %v592 = vmul.f32 %v522, %v522
      %v593 = vmul.f32 %v523, %v523
      %v594 = vmul.f32 %v524, %v524
      %v595 = vadd.f32 %v591, %v592
      %v596 = vadd.f32 %v595, %v593
      %v597 = vadd.f32 %v596, %v594
      %v598 = vrot.slane %v597, 4
      %v599 = vadd.f32 %v597, %v598
      %v600 = vrot.slane %v599, 2
      %v601 = vadd.f32 %v599, %v600
      %v602 = vrot.slane %v601, 1
      %v603 = vadd.f32 %v601, %v602
      %v604 = vadd.f32 %v568, %v571
      %v605 = vadd.f32 %v604, %v576
      %v606 = vadd.f32 %v605, %v579
      %v607 = vrot.slane %v606, 4
      %v608 = vadd.f32 %v606, %v607
      %v609 = vrot.slane %v608, 2
      %v610 = vadd.f32 %v608, %v609
      %v611 = vrot.slane %v610, 1
      %v612 = vadd.f32 %v610, %v611
      %v613 = vmul.f32 %v568, %v568
      %v614 = vmul.f32 %v571, %v571
      %v615 = vmul.f32 %v576, %v576
      %v616 = vmul.f32 %v579, %v579
      %v617 = vadd.f32 %v613, %v614
      %v618 = vadd.f32 %v617, %v615
      %v619 = vadd.f32 %v618, %v616
      %v620 = vrot.slane %v619, 4
      %v621 = vadd.f32 %v619, %v620
      %v622 = vrot.slane %v621, 2
      %v623 = vadd.f32 %v621, %v622
      %v624 = vrot.slane %v623, 1
      %v625 = vadd.f32 %v623, %v624
      %vm626 = vcmask 1040384
      %v627 = vsel %vm626, %v590, %v603
      %vm628 = vcmask 1041408
      %v629 = vsel %vm628, %v627, %v612
      %vm630 = vcmask 1042432
      %v631 = vsel %vm630, %v629, %v625
      %vm632 = vcmask 1043456
      %v633 = vsel %vm632, %v631, 0.0
      %vm634 = vcmask 1044480
      %v635 = vsel %vm634, %v633, 0.0
      %vm636 = vcmask 1045504
      %v637 = vsel %vm636, %v635, 0.0
      %vm638 = vcmask 1046528
      %v639 = vsel %vm638, %v637, 0.0
      %640 = vst [vmem:[%s273] sm:$0xff] %v639
      %p641 = scmp.lt.s32.totalorder %s17, 1
      %s642 = scalar_select %p641, %s17, 1
      %s643 = smul.addr %s642, 8
      %s644 = scalar_lea.vmem %s6, %s643
      // Predicated region
      $region45: #{basic_block_forward.3} parent=43 // pred_check
        %p645 = pneg %p171
      $region46: #{basic_block_forward.3} parent=43 // pred_check_branch
        %647 = sbr.rel (%p645) target = $region48
      $region47: #{basic_block_forward.3} parent=43 // pred_region
        _
      $region48: #{basic_block_forward.3} parent=43 // pred_fallthru
        _
    $region44: #{basic_block_forward.3} parent=5 // pred_fallthru
      _
    %p648 = scmp.le.s32.totalorder 2, %s12
    // Predicated region
    $region49: #{basic_block_forward.3} parent=5 // pred_check
      %p649 = pneg %p648
    $region50: #{basic_block_forward.3} parent=5 // pred_check_branch
      %651 = sbr.rel (%p649) target = $region52
    $region51: #{basic_block_forward.3} parent=5 // pred_region
      %s652 = ssub.s32 %s12, 2
      // Predicated region
      $region53: #{basic_block_forward.3} parent=51 // pred_check
        %p653 = pneg %p177
      $region54: #{basic_block_forward.3} parent=51 // pred_check_branch
        %655 = sbr.rel (%p653) target = $region56
      $region55: #{basic_block_forward.3} parent=51 // pred_region
        %p656 = scmp.lt.s32.totalorder %s18, 1
        %s657 = scalar_select %p656, %s18, 1
        %s658 = smul.addr %s657, 8
        %s659 = scalar_lea.vmem %s6, %s658
      $region56: #{basic_block_forward.3} parent=51 // pred_fallthru
        _
    $region52: #{basic_block_forward.3} parent=5 // pred_fallthru
      _
  $region6: #{basic_block_forward.3} parent=0 // loop_footer
    %s16 = sadd.s32 1, %s12
  $region7: #{basic_block_forward.3} parent=0 // loop_footer_branch
    %11 = sbr.rel target = $region3
  $region8: #{basic_block_forward.3} parent=0 // loop_exit
    _

// kernel: basic_block_forward.4
$region0: #{basic_block_forward.4}
  #allocation0 [shape = 'u32[]', space=smem, size = 0x4, offset = 0x4, fixed_abs, tag = 'smem constant byte address 0x4 - core index']
  #allocation1 [shape = 'u32[144,128]{1,0:T(1,128)}', space=vmem, size = 0x12000, scoped, tag = 'internal scratch']
  %s0 = inlined_call_operand.vmem [shape: bf16[64,16], index: 0, kind: input, shape index: {}]
  %s1 = inlined_call_operand.vmem [shape: bf16[64,16], index: 1, kind: input, shape index: {}]
  %s2 = inlined_call_operand.vmem [shape: bf16[16,128], index: 2, kind: input, shape index: {}]
  %s3 = inlined_call_operand.vmem [shape: bf16[16,128], index: 3, kind: input, shape index: {}]
  %s4 = inlined_call_operand.vmem [shape: bf16[16,128], index: 4, kind: input, shape index: {}]
  %s5 = inlined_call_operand.vmem [shape: bf16[384,128], index: 5, kind: input, shape index: {}]
  %s6 = inlined_call_operand.vmem [shape: f32[8,128], index: 6, kind: input, shape index: {}]
  %s7 = inlined_call_operand.vmem [shape: f32[16,128], index: 7, kind: input, shape index: {}]
  %s8 = inlined_call_operand.vmem [shape: bf16[64,128], index: 8, kind: output, shape index: {0}]
  %s9 = inlined_call_operand.vmem [shape: f32[16,128], index: 9, kind: output, shape index: {1}]
  %s10 = inlined_call_operand.vmem [shape: f32[16,128], index: 10, kind: output, shape index: {2}]
  %11 = xla_tuple %s8, %s9, %s10
  %s12 = sld [smem:[#allocation0]]
  $region81: #{basic_block_forward.4} parent=0
    _
  %s14 = ssub.s32 1, %s12
  %s15 = scalar_select 0, %s14, %s12
  loop: start=0, step=1, limit=4
  $region2: #{basic_block_forward.4} parent=0 // loop_pre_header
    _
  $region3: #{basic_block_forward.4} parent=0 // loop_header
    %s17 = sphi 0, %s21
    %p18 = scmp.ge.s32.totalorder %s17, 4
    %s27 = sphi 0, %s29
    %s30 = sphi 0, %s27
    %s31 = sphi 0, %s30
    %s47 = sphi 0, %s31
    %s53 = sphi 0, %s55
    %s56 = sphi 0, %s53
    %s57 = sphi 0, %s56
    %s73 = sphi 0, %s57
    %s77 = sphi 0, %s77
    %s79 = sphi 0, %s77
    %s80 = sphi 0, %s79
    %s94 = sphi 0, %s80
    %s98 = sphi 0, %s98
    %s100 = sphi 0, %s98
    %s101 = sphi 0, %s100
    %s115 = sphi 0, %s101
    %s119 = sphi 0, %s119
    %s121 = sphi 0, %s119
    %s122 = sphi 0, %s121
    %s136 = sphi 0, %s122
    %s140 = sphi 0, %s140
    %s142 = sphi 0, %s140
    %s143 = sphi 0, %s142
    %s157 = sphi 0, %s143
    %s161 = sphi 0, %s161
    %s163 = sphi 0, %s161
    %s164 = sphi 0, %s163
    %s178 = sphi 0, %s164
    %s182 = sphi 0, %s182
    %s184 = sphi 0, %s182
    %s185 = sphi 0, %s184
    %s199 = sphi 0, %s185
    %s205 = sphi 0, %s207
    %s208 = sphi 0, %s205
    %s209 = sphi 0, %s208
    %s225 = sphi 0, %s209
    %s231 = sphi 0, %s233
    %s234 = sphi 0, %s231
    %s235 = sphi 0, %s234
    %s251 = sphi 0, %s235
    %s257 = sphi 0, %s259
    %s260 = sphi 0, %s257
    %s261 = sphi 0, %s260
    %s277 = sphi 0, %s261
  $region4: #{basic_block_forward.4} parent=0 // loop_header_branch
    %20 = sbr.rel (%p18) target = $region8
  $region5: #{basic_block_forward.4} parent=0 // loop_body
    %s22 = ssub.s32 %s17, 1
    %s23 = ssub.s32 %s17, 2
    %s24 = sadd.s32 %s17, 1
    %s25 = ssub.s32 %s17, %s24
    %p26 = scmp.eq.s32.totalorder %s25, 0
    %s28 = sadd.s32 %s27, 1
    %s29 = scalar_select %p26, %s27, %s28
    %p32 = pneg %p26
    %p33 = scmp.eq.s32.totalorder %s17, 1
    %p34 = por %p32, %p33
    %p35 = scmp.ne.s32.totalorder %s27, %s30
    %p36 = scmp.eq.s32.totalorder %s17, 0
    %p37 = por %p35, %p36
    %p38 = scmp.ne.s32.totalorder %s27, %s30
    %p39 = scmp.eq.s32.totalorder %s22, 1
    %p40 = por %p38, %p39
    %p41 = scmp.ne.s32.totalorder %s30, %s31
    %p42 = scmp.eq.s32.totalorder %s22, 0
    %p43 = por %p41, %p42
    %p44 = scmp.ne.s32.totalorder %s30, %s31
    %p45 = scmp.eq.s32.totalorder %s23, 1
    %p46 = por %p44, %p45
    %p48 = scmp.ne.s32.totalorder %s31, %s47
    %p49 = scmp.eq.s32.totalorder %s23, 0
    %p50 = por %p48, %p49
    %s51 = ssub.s32 %s17, %s24
    %p52 = scmp.eq.s32.totalorder %s51, 0
    %s54 = sadd.s32 %s53, 1
    %s55 = scalar_select %p52, %s53, %s54
    %p58 = pneg %p52
    %p59 = scmp.eq.s32.totalorder %s17, 1
    %p60 = por %p58, %p59
    %p61 = scmp.ne.s32.totalorder %s53, %s56
    %p62 = scmp.eq.s32.totalorder %s17, 0
    %p63 = por %p61, %p62
    %p64 = scmp.ne.s32.totalorder %s53, %s56
    %p65 = scmp.eq.s32.totalorder %s22, 1
    %p66 = por %p64, %p65
    %p67 = scmp.ne.s32.totalorder %s56, %s57
    %p68 = scmp.eq.s32.totalorder %s22, 0
    %p69 = por %p67, %p68
    %p70 = scmp.ne.s32.totalorder %s56, %s57
    %p71 = scmp.eq.s32.totalorder %s23, 1
    %p72 = por %p70, %p71
    %p74 = scmp.ne.s32.totalorder %s57, %s73
    %p75 = scmp.eq.s32.totalorder %s23, 0
    %p76 = por %p74, %p75
    %s78 = sadd.s32 %s77, 1
    %p81 = scmp.eq.s32.totalorder %s17, 1
    %p82 = scmp.ne.s32.totalorder %s77, %s79
    %p83 = scmp.eq.s32.totalorder %s17, 0
    %p84 = por %p82, %p83
    %p85 = scmp.ne.s32.totalorder %s77, %s79
    %p86 = scmp.eq.s32.totalorder %s22, 1
    %p87 = por %p85, %p86
    %p88 = scmp.ne.s32.totalorder %s79, %s80
    %p89 = scmp.eq.s32.totalorder %s22, 0
    %p90 = por %p88, %p89
    %p91 = scmp.ne.s32.totalorder %s79, %s80
    %p92 = scmp.eq.s32.totalorder %s23, 1
    %p93 = por %p91, %p92
    %p95 = scmp.ne.s32.totalorder %s80, %s94
    %p96 = scmp.eq.s32.totalorder %s23, 0
    %p97 = por %p95, %p96
    %s99 = sadd.s32 %s98, 1
    %p102 = scmp.eq.s32.totalorder %s17, 1
    %p103 = scmp.ne.s32.totalorder %s98, %s100
    %p104 = scmp.eq.s32.totalorder %s17, 0
    %p105 = por %p103, %p104
    %p106 = scmp.ne.s32.totalorder %s98, %s100
    %p107 = scmp.eq.s32.totalorder %s22, 1
    %p108 = por %p106, %p107
    %p109 = scmp.ne.s32.totalorder %s100, %s101
    %p110 = scmp.eq.s32.totalorder %s22, 0
    %p111 = por %p109, %p110
    %p112 = scmp.ne.s32.totalorder %s100, %s101
    %p113 = scmp.eq.s32.totalorder %s23, 1
    %p114 = por %p112, %p113
    %p116 = scmp.ne.s32.totalorder %s101, %s115
    %p117 = scmp.eq.s32.totalorder %s23, 0
    %p118 = por %p116, %p117
    %s120 = sadd.s32 %s119, 1
    %p123 = scmp.eq.s32.totalorder %s17, 1
    %p124 = scmp.ne.s32.totalorder %s119, %s121
    %p125 = scmp.eq.s32.totalorder %s17, 0
    %p126 = por %p124, %p125
    %p127 = scmp.ne.s32.totalorder %s119, %s121
    %p128 = scmp.eq.s32.totalorder %s22, 1
    %p129 = por %p127, %p128
    %p130 = scmp.ne.s32.totalorder %s121, %s122
    %p131 = scmp.eq.s32.totalorder %s22, 0
    %p132 = por %p130, %p131
    %p133 = scmp.ne.s32.totalorder %s121, %s122
    %p134 = scmp.eq.s32.totalorder %s23, 1
    %p135 = por %p133, %p134
    %p137 = scmp.ne.s32.totalorder %s122, %s136
    %p138 = scmp.eq.s32.totalorder %s23, 0
    %p139 = por %p137, %p138
    %s141 = sadd.s32 %s140, 1
    %p144 = scmp.eq.s32.totalorder %s17, 1
    %p145 = scmp.ne.s32.totalorder %s140, %s142
    %p146 = scmp.eq.s32.totalorder %s17, 0
    %p147 = por %p145, %p146
    %p148 = scmp.ne.s32.totalorder %s140, %s142
    %p149 = scmp.eq.s32.totalorder %s22, 1
    %p150 = por %p148, %p149
    %p151 = scmp.ne.s32.totalorder %s142, %s143
    %p152 = scmp.eq.s32.totalorder %s22, 0
    %p153 = por %p151, %p152
    %p154 = scmp.ne.s32.totalorder %s142, %s143
    %p155 = scmp.eq.s32.totalorder %s23, 1
    %p156 = por %p154, %p155
    %p158 = scmp.ne.s32.totalorder %s143, %s157
    %p159 = scmp.eq.s32.totalorder %s23, 0
    %p160 = por %p158, %p159
    %s162 = sadd.s32 %s161, 1
    %p165 = scmp.eq.s32.totalorder %s17, 1
    %p166 = scmp.ne.s32.totalorder %s161, %s163
    %p167 = scmp.eq.s32.totalorder %s17, 0
    %p168 = por %p166, %p167
    %p169 = scmp.ne.s32.totalorder %s161, %s163
    %p170 = scmp.eq.s32.totalorder %s22, 1
    %p171 = por %p169, %p170
    %p172 = scmp.ne.s32.totalorder %s163, %s164
    %p173 = scmp.eq.s32.totalorder %s22, 0
    %p174 = por %p172, %p173
    %p175 = scmp.ne.s32.totalorder %s163, %s164
    %p176 = scmp.eq.s32.totalorder %s23, 1
    %p177 = por %p175, %p176
    %p179 = scmp.ne.s32.totalorder %s164, %s178
    %p180 = scmp.eq.s32.totalorder %s23, 0
    %p181 = por %p179, %p180
    %s183 = sadd.s32 %s182, 1
    %p186 = scmp.eq.s32.totalorder %s17, 1
    %p187 = scmp.ne.s32.totalorder %s182, %s184
    %p188 = scmp.eq.s32.totalorder %s17, 0
    %p189 = por %p187, %p188
    %p190 = scmp.ne.s32.totalorder %s182, %s184
    %p191 = scmp.eq.s32.totalorder %s22, 1
    %p192 = por %p190, %p191
    %p193 = scmp.ne.s32.totalorder %s184, %s185
    %p194 = scmp.eq.s32.totalorder %s22, 0
    %p195 = por %p193, %p194
    %p196 = scmp.ne.s32.totalorder %s184, %s185
    %p197 = scmp.eq.s32.totalorder %s23, 1
    %p198 = por %p196, %p197
    %p200 = scmp.ne.s32.totalorder %s185, %s199
    %p201 = scmp.eq.s32.totalorder %s23, 0
    %p202 = por %p200, %p201
    %s203 = ssub.s32 %s17, %s24
    %p204 = scmp.eq.s32.totalorder %s203, 0
    %s206 = sadd.s32 %s205, 1
    %s207 = scalar_select %p204, %s205, %s206
    %p210 = pneg %p204
    %p211 = scmp.eq.s32.totalorder %s17, 1
    %p212 = por %p210, %p211
    %p213 = scmp.ne.s32.totalorder %s205, %s208
    %p214 = scmp.eq.s32.totalorder %s17, 0
    %p215 = por %p213, %p214
    %p216 = scmp.ne.s32.totalorder %s205, %s208
    %p217 = scmp.eq.s32.totalorder %s22, 1
    %p218 = por %p216, %p217
    %p219 = scmp.ne.s32.totalorder %s208, %s209
    %p220 = scmp.eq.s32.totalorder %s22, 0
    %p221 = por %p219, %p220
    %p222 = scmp.ne.s32.totalorder %s208, %s209
    %p223 = scmp.eq.s32.totalorder %s23, 1
    %p224 = por %p222, %p223
    %p226 = scmp.ne.s32.totalorder %s209, %s225
    %p227 = scmp.eq.s32.totalorder %s23, 0
    %p228 = por %p226, %p227
    %s229 = ssub.s32 %s17, %s24
    %p230 = scmp.eq.s32.totalorder %s229, 0
    %s232 = sadd.s32 %s231, 1
    %s233 = scalar_select %p230, %s231, %s232
    %p236 = pneg %p230
    %p237 = scmp.eq.s32.totalorder %s17, 1
    %p238 = por %p236, %p237
    %p239 = scmp.ne.s32.totalorder %s231, %s234
    %p240 = scmp.eq.s32.totalorder %s17, 0
    %p241 = por %p239, %p240
    %p242 = scmp.ne.s32.totalorder %s231, %s234
    %p243 = scmp.eq.s32.totalorder %s22, 1
    %p244 = por %p242, %p243
    %p245 = scmp.ne.s32.totalorder %s234, %s235
    %p246 = scmp.eq.s32.totalorder %s22, 0
    %p247 = por %p245, %p246
    %p248 = scmp.ne.s32.totalorder %s234, %s235
    %p249 = scmp.eq.s32.totalorder %s23, 1
    %p250 = por %p248, %p249
    %p252 = scmp.ne.s32.totalorder %s235, %s251
    %p253 = scmp.eq.s32.totalorder %s23, 0
    %p254 = por %p252, %p253
    %s255 = ssub.s32 %s17, %s24
    %p256 = scmp.eq.s32.totalorder %s255, 0
    %s258 = sadd.s32 %s257, 1
    %s259 = scalar_select %p256, %s257, %s258
    %p262 = pneg %p256
    %p263 = scmp.eq.s32.totalorder %s17, 1
    %p264 = por %p262, %p263
    %p265 = scmp.ne.s32.totalorder %s257, %s260
    %p266 = scmp.eq.s32.totalorder %s17, 0
    %p267 = por %p265, %p266
    %p268 = scmp.ne.s32.totalorder %s257, %s260
    %p269 = scmp.eq.s32.totalorder %s22, 1
    %p270 = por %p268, %p269
    %p271 = scmp.ne.s32.totalorder %s260, %s261
    %p272 = scmp.eq.s32.totalorder %s22, 0
    %p273 = por %p271, %p272
    %p274 = scmp.ne.s32.totalorder %s260, %s261
    %p275 = scmp.eq.s32.totalorder %s23, 1
    %p276 = por %p274, %p275
    %p278 = scmp.ne.s32.totalorder %s261, %s277
    %p279 = scmp.eq.s32.totalorder %s23, 0
    %p280 = por %p278, %p279
    %p281 = scmp.le.s32.totalorder 1, %s17
    %p282 = scmp.lt.s32.totalorder %s17, 3
    %p283 = pnand %p281, %p282
    %p284 = pneg %p283
    // Predicated region
    $region9: #{basic_block_forward.4} parent=5 // pred_check
      _
    $region10: #{basic_block_forward.4} parent=5 // pred_check_branch
      %286 = sbr.rel (%p283) target = $region12
    $region11: #{basic_block_forward.4} parent=5 // pred_region
      %s287 = ssub.s32 %s17, 1
      // Predicated region
      $region13: #{basic_block_forward.4} parent=11 // pred_check
        %p288 = pneg %p90
      $region14: #{basic_block_forward.4} parent=11 // pred_check_branch
        %290 = sbr.rel (%p288) target = $region16
      $region15: #{basic_block_forward.4} parent=11 // pred_region
        _
      $region16: #{basic_block_forward.4} parent=11 // pred_fallthru
        _
      // Predicated region
      $region17: #{basic_block_forward.4} parent=11 // pred_check
        %p291 = pneg %p111
      $region18: #{basic_block_forward.4} parent=11 // pred_check_branch
        %293 = sbr.rel (%p291) target = $region20
      $region19: #{basic_block_forward.4} parent=11 // pred_region
        _
      $region20: #{basic_block_forward.4} parent=11 // pred_fallthru
        _
      // Predicated region
      $region21: #{basic_block_forward.4} parent=11 // pred_check
        %p294 = pneg %p132
      $region22: #{basic_block_forward.4} parent=11 // pred_check_branch
        %296 = sbr.rel (%p294) target = $region24
      $region23: #{basic_block_forward.4} parent=11 // pred_region
        _
      $region24: #{basic_block_forward.4} parent=11 // pred_fallthru
        _
      // Predicated region
      $region25: #{basic_block_forward.4} parent=11 // pred_check
        %p297 = pneg %p153
      $region26: #{basic_block_forward.4} parent=11 // pred_check_branch
        %299 = sbr.rel (%p297) target = $region28
      $region27: #{basic_block_forward.4} parent=11 // pred_region
        _
      $region28: #{basic_block_forward.4} parent=11 // pred_fallthru
        _
      // Predicated region
      $region29: #{basic_block_forward.4} parent=11 // pred_check
        %p300 = pneg %p174
      $region30: #{basic_block_forward.4} parent=11 // pred_check_branch
        %302 = sbr.rel (%p300) target = $region32
      $region31: #{basic_block_forward.4} parent=11 // pred_region
        _
      $region32: #{basic_block_forward.4} parent=11 // pred_fallthru
        _
      // Predicated region
      $region33: #{basic_block_forward.4} parent=11 // pred_check
        %p303 = pneg %p195
      $region34: #{basic_block_forward.4} parent=11 // pred_check_branch
        %305 = sbr.rel (%p303) target = $region36
      $region35: #{basic_block_forward.4} parent=11 // pred_region
        _
      $region36: #{basic_block_forward.4} parent=11 // pred_fallthru
        _
    $region12: #{basic_block_forward.4} parent=5 // pred_fallthru
      _
    %p306 = scmp.lt.s32.totalorder %s17, 2
    // Predicated region
    $region37: #{basic_block_forward.4} parent=5 // pred_check
      %p307 = pneg %p306
    $region38: #{basic_block_forward.4} parent=5 // pred_check_branch
      %309 = sbr.rel (%p307) target = $region40
    $region39: #{basic_block_forward.4} parent=5 // pred_region
      // Predicated region
      $region41: #{basic_block_forward.4} parent=39 // pred_check
        %p310 = pneg %p37
      $region42: #{basic_block_forward.4} parent=39 // pred_check_branch
        %312 = sbr.rel (%p310) target = $region44
      $region43: #{basic_block_forward.4} parent=39 // pred_region
        %s313 = smul.u32 4, %s17
        %p314 = scmp.lt.s32.totalorder %s313, 7
        %s315 = scalar_select %p314, %s313, 7
        %s316 = smul.addr %s315, 4
        %s317 = scalar_lea.vmem %s0, %s316
        %s318 = smul.u32 4, %s17
      $region44: #{basic_block_forward.4} parent=39 // pred_fallthru
        _
      // Predicated region
      $region45: #{basic_block_forward.4} parent=39 // pred_check
        %p319 = pneg %p63
      $region46: #{basic_block_forward.4} parent=39 // pred_check_branch
        %321 = sbr.rel (%p319) target = $region48
      $region47: #{basic_block_forward.4} parent=39 // pred_region
        %s322 = smul.u32 4, %s17
        %p323 = scmp.lt.s32.totalorder %s322, 7
        %s324 = scalar_select %p323, %s322, 7
        %s325 = smul.addr %s324, 4
        %s326 = scalar_lea.vmem %s1, %s325
        %s327 = smul.u32 4, %s17
      $region48: #{basic_block_forward.4} parent=39 // pred_fallthru
        _
    $region40: #{basic_block_forward.4} parent=5 // pred_fallthru
      _
    %p328 = scmp.le.s32.totalorder 1, %s17
    %p329 = scmp.lt.s32.totalorder %s17, 3
    %p330 = pnand %p328, %p329
    %p331 = pneg %p330
    // Predicated region
    $region49: #{basic_block_forward.4} parent=5 // pred_check
      _
    $region50: #{basic_block_forward.4} parent=5 // pred_check_branch
      %333 = sbr.rel (%p330) target = $region52
    $region51: #{basic_block_forward.4} parent=5 // pred_region
      %s334 = ssub.s32 %s17, 1
      %s335 = smul.u32 4, %s22
      %p336 = scmp.lt.s32.totalorder %s335, 7
      %s337 = scalar_select %p336, %s335, 7
      %s338 = smul.addr %s337, 4
      %s339 = scalar_lea.vmem %s0, %s338
      %p340 = pneg %p43
      %p341 = pneg %p40
      %s342 = smul.u32 4, %s22
      %p343 = scmp.lt.s32.totalorder %s342, 7
      %s344 = scalar_select %p343, %s342, 7
      %s345 = smul.addr %s344, 4
      %s346 = scalar_lea.vmem %s1, %s345
      %p347 = pneg %p69
      %p348 = pneg %p66
      %p349 = pneg %p90
      %p350 = pneg %p87
      %p351 = pneg %p111
      %p352 = pneg %p108
      %p353 = pneg %p132
      %p354 = pneg %p129
      %p355 = pneg %p153
      %p356 = pneg %p150
      %p357 = pneg %p174
      %p358 = pneg %p171
      %p359 = pneg %p195
      %p360 = pneg %p192
      %p361 = pneg %p221
      %p362 = pneg %p218
      %s363 = smul.u32 4, %s22
      %p364 = scmp.lt.s32.totalorder %s363, 7
      %s365 = scalar_select %p364, %s363, 7
      %s366 = smul.addr %s365, 4
      %s367 = scalar_lea.vmem %s8, %s366
      %p368 = pneg %p247
      %p369 = pneg %p244
      %p370 = scmp.lt.s32.totalorder %s22, 1
      %s371 = scalar_select %p370, %s22, 1
      %s372 = smul.addr %s371, 8
      %s373 = scalar_lea.vmem %s9, %s372
      %p374 = pneg %p273
      %p375 = pneg %p270
      %p376 = scmp.lt.s32.totalorder %s22, 1
      %s377 = scalar_select %p376, %s22, 1
      %s378 = smul.addr %s377, 8
      %s379 = scalar_lea.vmem %s10, %s378
      %s380 = smul.u32 4, %s22
      %p381 = scmp.lt.s32.totalorder %s380, 7
      %s382 = scalar_select %p381, %s380, 7
      %s383 = smul.addr %s382, 4
      %s384 = scalar_lea.vmem %s0, %s383
      %s385 = smul.u32 4, %s22
      %s386 = smul.u32 4, %s22
      %p387 = scmp.lt.s32.totalorder %s386, 7
      %s388 = scalar_select %p387, %s386, 7
      %s389 = smul.addr %s388, 4
      %s390 = scalar_lea.vmem %s1, %s389
      %s391 = smul.u32 4, %s22
      %s392 = smul.u32 4, %s22
      %p393 = scmp.lt.s32.totalorder %s392, 7
      %s394 = scalar_select %p393, %s392, 7
      %s395 = smul.addr %s394, 4
      %s396 = scalar_lea.vmem %s8, %s395
      %s397 = smul.u32 4, %s22
      %p398 = scmp.lt.s32.totalorder %s22, 1
      %s399 = scalar_select %p398, %s22, 1
      %s400 = smul.addr %s399, 8
      %s401 = scalar_lea.vmem %s9, %s400
      %p402 = scmp.lt.s32.totalorder %s22, 1
      %s403 = scalar_select %p402, %s22, 1
      %s404 = smul.addr %s403, 8
      %s405 = scalar_lea.vmem %s10, %s404
      %v407 = vld [vmem:[%s384] sm:$0xf]
      %v408 = vld [vmem:[%s384 + $0x4] sm:$0xf]
      %v409 = vld [vmem:[%s384 + $0x8] sm:$0xf]
      %v410 = vld [vmem:[%s384 + $0xc] sm:$0xf]
      %v411 = vld [vmem:[%s390] sm:$0xf]
      %v412 = vld [vmem:[%s390 + $0x4] sm:$0xf]
      %v413 = vld [vmem:[%s390 + $0x8] sm:$0xf]
      %v414 = vld [vmem:[%s390 + $0xc] sm:$0xf]
      %v415 = vlaneseq
      %v416 = vshrl.u32 %v415, 7
      %v417 = vadd.s32 %v416, 8
      %v418 = vunpack.c.l.bf16 %v411
      %v419 = vunpack.c.l.bf16 %v412
      %v420 = vunpack.c.l.bf16 %v413
      %v421 = vunpack.c.l.bf16 %v414
      %v422 = vrot.slane %v418, 7
      %v423 = vrot.slane %v419, 7
      %v424 = vrot.slane %v420, 7
      %v425 = vrot.slane %v421, 7
      %vm426 = vcmp.lt.s32.totalorder %v416, 1
      %v427 = vsel %vm426, %v424, %v425
      %v428 = vsel %vm426, %v423, %v424
      %v429 = vsel %vm426, %v422, %v423
      %v430 = vsel %vm426, %v425, %v422
      %vm431 = vcmp.eq.s32.totalorder %v416, 0
      %vm432 = vcmp.eq.s32.totalorder %v417, 0
      %vm433 = vcmp.ge.s32.totalorder %v416, 16
      %vm434 = vcmp.ge.s32.totalorder %v417, 16
      %vm435 = vmor %vm431, %vm433
      %vm436 = vmor %vm432, %vm434
      %v437 = vsel %vm435, 0.0, %v430
      %v438 = vsel %vm436, 0.0, %v429
      %v439 = vsel %vm435, 0.0, %v428
      %v440 = vsel %vm436, 0.0, %v427
      %v441 = vpack.c.bf16 %v438, %v437
      %v442 = vpack.c.bf16 %v440, %v439
      %v443 = vld [vmem:[%s2] sm:$0xf]
      %v444 = vld [vmem:[%s2 + $0x4] sm:$0xf]
      %v445 = vld [vmem:[%s3] sm:$0xf]
      %v446 = vld [vmem:[%s3 + $0x4] sm:$0xf]
      %v451 = vunpack.c.l.b16 %v407
      %v452 = vunpack.c.l.b16 %v408
      %v453 = vunpack.c.l.b16 %v409
      %v454 = vunpack.c.l.b16 %v410
      %v455 = vpack.c.b16 %v452, %v451
      %v456 = vpack.c.b16 %v454, %v453
      %v459 = vunpack.c.l.b16 %v445
      %v460 = vunpack.c.l.b16 %v446
      %v461 = vpack.c.b16 %v460, %v459
      %vm463 = vcmask 130048
      %v465 = vsel %vm463, %v455, 0
      %v468 = vsel %vm463, %v456, 0
      %470 = vmatprep.subr.bf16.mxu0 0
      %471 = vmatpush1.bf16.msra.mxu0 %v461
      %472 = vmatprep.subr.bf16.mxu0 0
      %473 = vmatpush1.bf16.msra.mxu0 0
      %474 = vmatprep.subr.bf16.mxu0 0
      %475 = vmatpush1.bf16.msra.mxu0 0
      %476 = vmatprep.subr.bf16.mxu0 0
      %477 = vmatpush1.bf16.msra.mxu0 0
      %478 = vmatprep.subr.bf16.mxu0 0
      %479 = vmatpush1.bf16.msra.mxu0 0
      %480 = vmatprep.subr.bf16.mxu0 0
      %481 = vmatpush1.bf16.msra.mxu0 0
      %482 = vmatprep.subr.bf16.mxu0 0
      %483 = vmatpush1.bf16.msra.mxu0 0
      %484 = vmatprep.subr.bf16.mxu0 0
      %485 = vmatpush1.bf16.msra.mxu0 0
      %486 = vmatprep.subr.bf16.mxu0 0
      %487 = vmatpush1.bf16.msra.mxu0 0
      %488 = vmatprep.subr.bf16.mxu0 0
      %489 = vmatpush1.bf16.msra.mxu0 0
      %490 = vmatprep.subr.bf16.mxu0 0
      %491 = vmatpush1.bf16.msra.mxu0 0
      %492 = vmatprep.subr.bf16.mxu0 0
      %493 = vmatpush1.bf16.msra.mxu0 0
      %494 = vmatprep.subr.bf16.mxu0 0
      %495 = vmatpush1.bf16.msra.mxu0 0
      %496 = vmatprep.subr.bf16.mxu0 0
      %497 = vmatpush1.bf16.msra.mxu0 0
      %498 = vmatprep.subr.bf16.mxu0 0
      %499 = vmatpush1.bf16.msra.mxu0 0
      %500 = vmatprep.subr.bf16.mxu0 0
      %501 = vmatpush1.bf16.msra.mxu0 0
      %502 = vmatprep.mubr.bf16.mxu0 0
      %503 = vmatmul.mubr.bf16.gmra.mrb[0].mxu0 %v465
      %v504 = vpop.f32.mrb[0].mxu0
      %v505 = vadd.f32 0.0, %v504
      %v506 = vpop.f32.mrb[0].mxu0
      %v507 = vpop.f32.mrb[0].mxu0
      %v508 = vadd.f32 0.0, %v507
      %v509 = vpop.f32.mrb[0].mxu0
      %510 = vmatprep.mubr.bf16.mxu0 0
      %511 = vmatmul.mubr.bf16.gmra.mrb[0].mxu0 %v468
      %v512 = vpop.f32.mrb[0].mxu0
      %v513 = vadd.f32 0.0, %v512
      %v514 = vpop.f32.mrb[0].mxu0
      %v515 = vpop.f32.mrb[0].mxu0
      %v516 = vadd.f32 0.0, %v515
      %v517 = vpop.f32.mrb[0].mxu0
      %518 = vdwg.mxu0
      %v521 = vunpack.c.l.b16 %v443
      %v522 = vunpack.c.l.b16 %v444
      %v523 = vpack.c.b16 %v522, %v521
      %v526 = vsel %vm463, %v441, 0
      %v529 = vsel %vm463, %v442, 0
      %531 = vmatprep.subr.bf16.mxu0 0
      %532 = vmatpush1.bf16.msra.mxu0 %v523
      %533 = vmatprep.subr.bf16.mxu0 0
      %534 = vmatpush1.bf16.msra.mxu0 0
      %535 = vmatprep.subr.bf16.mxu0 0
      %536 = vmatpush1.bf16.msra.mxu0 0
      %537 = vmatprep.subr.bf16.mxu0 0
      %538 = vmatpush1.bf16.msra.mxu0 0
      %539 = vmatprep.subr.bf16.mxu0 0
      %540 = vmatpush1.bf16.msra.mxu0 0
      %541 = vmatprep.subr.bf16.mxu0 0
      %542 = vmatpush1.bf16.msra.mxu0 0
      %543 = vmatprep.subr.bf16.mxu0 0
      %544 = vmatpush1.bf16.msra.mxu0 0
      %545 = vmatprep.subr.bf16.mxu0 0
      %546 = vmatpush1.bf16.msra.mxu0 0
      %547 = vmatprep.subr.bf16.mxu0 0
      %548 = vmatpush1.bf16.msra.mxu0 0
      %549 = vmatprep.subr.bf16.mxu0 0
      %550 = vmatpush1.bf16.msra.mxu0 0
      %551 = vmatprep.subr.bf16.mxu0 0
      %552 = vmatpush1.bf16.msra.mxu0 0
      %553 = vmatprep.subr.bf16.mxu0 0
      %554 = vmatpush1.bf16.msra.mxu0 0
      %555 = vmatprep.subr.bf16.mxu0 0
      %556 = vmatpush1.bf16.msra.mxu0 0
      %557 = vmatprep.subr.bf16.mxu0 0
      %558 = vmatpush1.bf16.msra.mxu0 0
      %559 = vmatprep.subr.bf16.mxu0 0
      %560 = vmatpush1.bf16.msra.mxu0 0
      %561 = vmatprep.subr.bf16.mxu0 0
      %562 = vmatpush1.bf16.msra.mxu0 0
      %563 = vmatprep.mubr.bf16.mxu0 0
      %564 = vmatmul.mubr.bf16.gmra.mrb[0].mxu0 %v526
      %v565 = vpop.f32.mrb[0].mxu0
      %v566 = vadd.f32 %v505, %v565
      %v567 = vpop.f32.mrb[0].mxu0
      %v568 = vpop.f32.mrb[0].mxu0
      %v569 = vadd.f32 %v508, %v568
      %v570 = vpop.f32.mrb[0].mxu0
      %571 = vmatprep.mubr.bf16.mxu0 0
      %572 = vmatmul.mubr.bf16.gmra.mrb[0].mxu0 %v529
      %v573 = vpop.f32.mrb[0].mxu0
      %v574 = vadd.f32 %v513, %v573
      %v575 = vpop.f32.mrb[0].mxu0
      %v576 = vpop.f32.mrb[0].mxu0
      %v577 = vadd.f32 %v516, %v576
      %v578 = vpop.f32.mrb[0].mxu0
      %579 = vdwg.mxu0
      %v580 = vld [vmem:[%s4] sm:$0xf]
      %v581 = vld [vmem:[%s4 + $0x4] sm:$0xf]
      %v586 = vunpack.c.l.b16 %v411
      %v587 = vunpack.c.l.b16 %v412
      %v588 = vunpack.c.l.b16 %v413
      %v589 = vunpack.c.l.b16 %v414
      %v590 = vpack.c.b16 %v587, %v586
      %v591 = vpack.c.b16 %v589, %v588
      %v594 = vunpack.c.l.b16 %v580
      %v595 = vunpack.c.l.b16 %v581
      %v596 = vpack.c.b16 %v595, %v594
      %v599 = vsel %vm463, %v590, 0
      %v602 = vsel %vm463, %v591, 0
      %604 = vmatprep.subr.bf16.mxu0 0
      %605 = vmatpush1.bf16.msra.mxu0 %v596
      %606 = vmatprep.subr.bf16.mxu0 0
      %607 = vmatpush1.bf16.msra.mxu0 0
      %608 = vmatprep.subr.bf16.mxu0 0
      %609 = vmatpush1.bf16.msra.mxu0 0
      %610 = vmatprep.subr.bf16.mxu0 0
      %611 = vmatpush1.bf16.msra.mxu0 0
      %612 = vmatprep.subr.bf16.mxu0 0
      %613 = vmatpush1.bf16.msra.mxu0 0
      %614 = vmatprep.subr.bf16.mxu0 0
      %615 = vmatpush1.bf16.msra.mxu0 0
      %616 = vmatprep.subr.bf16.mxu0 0
      %617 = vmatpush1.bf16.msra.mxu0 0
      %618 = vmatprep.subr.bf16.mxu0 0
      %619 = vmatpush1.bf16.msra.mxu0 0
      %620 = vmatprep.subr.bf16.mxu0 0
      %621 = vmatpush1.bf16.msra.mxu0 0
      %622 = vmatprep.subr.bf16.mxu0 0
      %623 = vmatpush1.bf16.msra.mxu0 0
      %624 = vmatprep.subr.bf16.mxu0 0
      %625 = vmatpush1.bf16.msra.mxu0 0
      %626 = vmatprep.subr.bf16.mxu0 0
      %627 = vmatpush1.bf16.msra.mxu0 0
      %628 = vmatprep.subr.bf16.mxu0 0
      %629 = vmatpush1.bf16.msra.mxu0 0
      %630 = vmatprep.subr.bf16.mxu0 0
      %631 = vmatpush1.bf16.msra.mxu0 0
      %632 = vmatprep.subr.bf16.mxu0 0
      %633 = vmatpush1.bf16.msra.mxu0 0
      %634 = vmatprep.subr.bf16.mxu0 0
      %635 = vmatpush1.bf16.msra.mxu0 0
      %636 = vmatprep.mubr.bf16.mxu0 0
      %637 = vmatmul.mubr.bf16.gmra.mrb[0].mxu0 %v599
      %v638 = vpop.f32.mrb[0].mxu0
      %v639 = vadd.f32 0.0, %v638
      %v640 = vpop.f32.mrb[0].mxu0
      %v641 = vpop.f32.mrb[0].mxu0
      %v642 = vadd.f32 0.0, %v641
      %v643 = vpop.f32.mrb[0].mxu0
      %644 = vmatprep.mubr.bf16.mxu0 0
      %645 = vmatmul.mubr.bf16.gmra.mrb[0].mxu0 %v602
      %v646 = vpop.f32.mrb[0].mxu0
      %v647 = vadd.f32 0.0, %v646
      %v648 = vpop.f32.mrb[0].mxu0
      %v649 = vpop.f32.mrb[0].mxu0
      %v650 = vadd.f32 0.0, %v649
      %v651 = vpop.f32.mrb[0].mxu0
      %652 = vdwg.mxu0
      %v653 = vadd.f32 %v566, %v639
      %v654 = vadd.f32 %v569, %v642
      %v655 = vadd.f32 %v574, %v647
      %v656 = vadd.f32 %v577, %v650
      %v657 = vld [vmem:[%s6] sm:$0xff]
      %v658 = vld [vmem:[%s7] sm:$0xff]
      %v659 = vld [vmem:[%s7 + $0x8] sm:$0xff]
      %v660 = vadd.f32 %v658, %v659
      %v661 = vmul.f32 %v660, 0.015625
      %v662 = vmul.f32 %v661, %v661
      %v664 = vrot.slane %v662, 7
      %v666 = vsub.f32 %v661, %v664
      %v667 = vmax.f32 %v666, 0.0
      %v668 = vadd.f32 %v667, 1e-05
      %v669 = vrsqrt.pop %v668
      %v671 = vrot.slane %v669, 1
      %v673 = vmul.f32 %v657, %v671
      %v674 = vmul.f32 %v661, %v673
      %v676 = vrot.slane %v674, 7
      %v678 = vsub.f32 %v657, %v676
      %v679 = vlaneseq
      %v680 = vshrl.u32 %v679, 7
      %v681 = vsub.s32 0, %v680
      %v682 = vrot.slane %v673, %v681
      %v683 = vmul.f32 %v653, %v682
      %v684 = vmul.f32 %v654, %v682
      %v685 = vmul.f32 %v655, %v682
      %v686 = vmul.f32 %v656, %v682
      %v687 = vlaneseq
      %v688 = vshrl.u32 %v687, 7
      %v689 = vsub.s32 1, %v688
      %v690 = vrot.slane %v678, %v689
      %v691 = vadd.f32 %v683, %v690
      %v692 = vadd.f32 %v684, %v690
      %v693 = vadd.f32 %v685, %v690
      %v694 = vadd.f32 %v686, %v690
      %v695 = vmax.f32 %v691, 0.0
      %v696 = vmax.f32 %v692, 0.0
      %v697 = vmax.f32 %v693, 0.0
      %v698 = vmax.f32 %v694, 0.0
      %v699 = vrot.slane %v695, 7
      %v700 = vrot.slane %v696, 7
      %v701 = vrot.slane %v697, 7
      %v702 = vrot.slane %v698, 7
      %v703 = vsel %vm426, %v701, %v702
      %v704 = vsel %vm426, %v700, %v701
      %v705 = vsel %vm426, %v699, %v700
      %v706 = vsel %vm426, %v702, %v699
      %v707 = vsel %vm431, 0.0, %v706
      %v708 = vsel %vm432, 0.0, %v705
      %v709 = vsel %vm431, 0.0, %v704
      %v710 = vsel %vm432, 0.0, %v703
      %v711 = vpack.c.bf16 %v708, %v707
      %v712 = vpack.c.bf16 %v710, %v709
      %vm713 = vcmp.eq.s32.totalorder %v416, 15
      %vm714 = vcmp.eq.s32.totalorder %v417, 15
      %v715 = vrot.slane %v695, 1
      %v716 = vrot.slane %v696, 1
      %v717 = vrot.slane %v697, 1
      %v718 = vrot.slane %v698, 1
      %vm719 = vcmp.lt.s32.totalorder %v416, 7
      %v720 = vsel %vm719, %v717, %v718
      %v721 = vsel %vm719, %v716, %v717
      %v722 = vsel %vm719, %v715, %v716
      %v723 = vsel %vm719, %v718, %v715
      %v724 = vsel %vm713, 0.0, %v722
      %v725 = vsel %vm714, 0.0, %v721
      %v726 = vsel %vm713, 0.0, %v720
      %v727 = vsel %vm714, 0.0, %v723
      %v728 = vpack.c.bf16 %v725, %v724
      %v729 = vpack.c.bf16 %v727, %v726
      %v730 = vpack.c.bf16 %v696, %v695
      %v731 = vpack.c.bf16 %v698, %v697
      %v732 = vld [vmem:[%s5] sm:$0xf]
      %v733 = vld [vmem:[%s5 + $0x4] sm:$0xf]
      %v734 = vld [vmem:[%s5 + $0x8] sm:$0xf]
      %v735 = vld [vmem:[%s5 + $0xc] sm:$0xf]
      %v736 = vld [vmem:[%s5 + $0x10] sm:$0xf]
      %v737 = vld [vmem:[%s5 + $0x14] sm:$0xf]
      %v738 = vld [vmem:[%s5 + $0x18] sm:$0xf]
      %v739 = vld [vmem:[%s5 + $0x1c] sm:$0xf]
      %v740 = vld [vmem:[%s5 + $0x20] sm:$0xf]
      %v741 = vld [vmem:[%s5 + $0x24] sm:$0xf]
      %v742 = vld [vmem:[%s5 + $0x28] sm:$0xf]
      %v743 = vld [vmem:[%s5 + $0x2c] sm:$0xf]
      %v744 = vld [vmem:[%s5 + $0x30] sm:$0xf]
      %v745 = vld [vmem:[%s5 + $0x34] sm:$0xf]
      %v746 = vld [vmem:[%s5 + $0x38] sm:$0xf]
      %v747 = vld [vmem:[%s5 + $0x3c] sm:$0xf]
      %v748 = vld [vmem:[%s5 + $0x40] sm:$0xf]
      %v749 = vld [vmem:[%s5 + $0x44] sm:$0xf]
      %v750 = vld [vmem:[%s5 + $0x48] sm:$0xf]
      %v751 = vld [vmem:[%s5 + $0x4c] sm:$0xf]
      %v752 = vld [vmem:[%s5 + $0x50] sm:$0xf]
      %v753 = vld [vmem:[%s5 + $0x54] sm:$0xf]
      %v754 = vld [vmem:[%s5 + $0x58] sm:$0xf]
      %v755 = vld [vmem:[%s5 + $0x5c] sm:$0xf]
      %v756 = vld [vmem:[%s5 + $0x60] sm:$0xf]
      %v757 = vld [vmem:[%s5 + $0x64] sm:$0xf]
      %v758 = vld [vmem:[%s5 + $0x68] sm:$0xf]
      %v759 = vld [vmem:[%s5 + $0x6c] sm:$0xf]
      %v760 = vld [vmem:[%s5 + $0x70] sm:$0xf]
      %v761 = vld [vmem:[%s5 + $0x74] sm:$0xf]
      %v762 = vld [vmem:[%s5 + $0x78] sm:$0xf]
      %v763 = vld [vmem:[%s5 + $0x7c] sm:$0xf]
      %v764 = vld [vmem:[%s5 + $0x80] sm:$0xf]
      %v765 = vld [vmem:[%s5 + $0x84] sm:$0xf]
      %v766 = vld [vmem:[%s5 + $0x88] sm:$0xf]
      %v767 = vld [vmem:[%s5 + $0x8c] sm:$0xf]
      %v768 = vld [vmem:[%s5 + $0x90] sm:$0xf]
      %v769 = vld [vmem:[%s5 + $0x94] sm:$0xf]
      %v770 = vld [vmem:[%s5 + $0x98] sm:$0xf]
      %v771 = vld [vmem:[%s5 + $0x9c] sm:$0xf]
      %v772 = vld [vmem:[%s5 + $0xa0] sm:$0xf]
      %v773 = vld [vmem:[%s5 + $0xa4] sm:$0xf]
      %v774 = vld [vmem:[%s5 + $0xa8] sm:$0xf]
      %v775 = vld [vmem:[%s5 + $0xac] sm:$0xf]
      %v776 = vld [vmem:[%s5 + $0xb0] sm:$0xf]
      %v777 = vld [vmem:[%s5 + $0xb4] sm:$0xf]
      %v778 = vld [vmem:[%s5 + $0xb8] sm:$0xf]
      %v779 = vld [vmem:[%s5 + $0xbc] sm:$0xf]
      %v828 = vunpack.c.l.b16 %v732
      %v829 = vunpack.c.l.b16 %v733
      %v830 = vunpack.c.l.b16 %v734
      %v831 = vunpack.c.l.b16 %v735
      %v832 = vunpack.c.l.b16 %v736
      %v833 = vunpack.c.l.b16 %v737
      %v834 = vunpack.c.l.b16 %v738
      %v835 = vunpack.c.l.b16 %v739
      %v836 = vunpack.c.l.b16 %v740
      %v837 = vunpack.c.l.b16 %v741
      %v838 = vunpack.c.l.b16 %v742
      %v839 = vunpack.c.l.b16 %v743
      %v840 = vunpack.c.l.b16 %v744
      %v841 = vunpack.c.l.b16 %v745
      %v842 = vunpack.c.l.b16 %v746
      %v843 = vunpack.c.l.b16 %v747
      %v844 = vunpack.c.l.b16 %v748
      %v845 = vunpack.c.l.b16 %v749
      %v846 = vunpack.c.l.b16 %v750
      %v847 = vunpack.c.l.b16 %v751
      %v848 = vunpack.c.l.b16 %v752
      %v849 = vunpack.c.l.b16 %v753
      %v850 = vunpack.c.l.b16 %v754
      %v851 = vunpack.c.l.b16 %v755
      %v852 = vunpack.c.l.b16 %v756
      %v853 = vunpack.c.l.b16 %v757
      %v854 = vunpack.c.l.b16 %v758
      %v855 = vunpack.c.l.b16 %v759
      %v856 = vunpack.c.l.b16 %v760
      %v857 = vunpack.c.l.b16 %v761
      %v858 = vunpack.c.l.b16 %v762
      %v859 = vunpack.c.l.b16 %v763
      %v860 = vunpack.c.l.b16 %v764
      %v861 = vunpack.c.l.b16 %v765
      %v862 = vunpack.c.l.b16 %v766
      %v863 = vunpack.c.l.b16 %v767
      %v864 = vunpack.c.l.b16 %v768
      %v865 = vunpack.c.l.b16 %v769
      %v866 = vunpack.c.l.b16 %v770
      %v867 = vunpack.c.l.b16 %v771
      %v868 = vunpack.c.l.b16 %v772
      %v869 = vunpack.c.l.b16 %v773
      %v870 = vunpack.c.l.b16 %v774
      %v871 = vunpack.c.l.b16 %v775
      %v872 = vunpack.c.l.b16 %v776
      %v873 = vunpack.c.l.b16 %v777
      %v874 = vunpack.c.l.b16 %v778
      %v875 = vunpack.c.l.b16 %v779
      %v876 = vpack.c.b16 %v829, %v828
      %v877 = vpack.c.b16 %v831, %v830
      %v878 = vpack.c.b16 %v833, %v832
      %v879 = vpack.c.b16 %v835, %v834
      %v880 = vpack.c.b16 %v837, %v836
      %v881 = vpack.c.b16 %v839, %v838
      %v882 = vpack.c.b16 %v841, %v840
      %v883 = vpack.c.b16 %v843, %v842
      %v884 = vpack.c.b16 %v845, %v844
      %v885 = vpack.c.b16 %v847, %v846
      %v886 = vpack.c.b16 %v849, %v848
      %v887 = vpack.c.b16 %v851, %v850
      %v888 = vpack.c.b16 %v853, %v852
      %v889 = vpack.c.b16 %v855, %v854
      %v890 = vpack.c.b16 %v857, %v856
      %v891 = vpack.c.b16 %v859, %v858
      %v892 = vpack.c.b16 %v861, %v860
      %v893 = vpack.c.b16 %v863, %v862
      %v894 = vpack.c.b16 %v865, %v864
      %v895 = vpack.c.b16 %v867, %v866
      %v896 = vpack.c.b16 %v869, %v868
      %v897 = vpack.c.b16 %v871, %v870
      %v898 = vpack.c.b16 %v873, %v872
      %v899 = vpack.c.b16 %v875, %v874
      %924 = vmatprep.subr.bf16.mxu0 0
      %925 = vmatpush1.bf16.msra.mxu0 %v876
      %926 = vmatprep.subr.bf16.mxu0 0
      %927 = vmatpush1.bf16.msra.mxu0 %v877
      %928 = vmatprep.subr.bf16.mxu0 0
      %929 = vmatpush1.bf16.msra.mxu0 %v878
      %930 = vmatprep.subr.bf16.mxu0 0
      %931 = vmatpush1.bf16.msra.mxu0 %v879
      %932 = vmatprep.subr.bf16.mxu0 0
      %933 = vmatpush1.bf16.msra.mxu0 %v880
      %934 = vmatprep.subr.bf16.mxu0 0
      %935 = vmatpush1.bf16.msra.mxu0 %v881
      %936 = vmatprep.subr.bf16.mxu0 0
      %937 = vmatpush1.bf16.msra.mxu0 %v882
      %938 = vmatprep.subr.bf16.mxu0 0
      %939 = vmatpush1.bf16.msra.mxu0 %v883
      %940 = vmatprep.subr.bf16.mxu0 0
      %941 = vmatpush1.bf16.msra.mxu0 %v884
      %942 = vmatprep.subr.bf16.mxu0 0
      %943 = vmatpush1.bf16.msra.mxu0 %v885
      %944 = vmatprep.subr.bf16.mxu0 0
      %945 = vmatpush1.bf16.msra.mxu0 %v886
      %946 = vmatprep.subr.bf16.mxu0 0
      %947 = vmatpush1.bf16.msra.mxu0 %v887
      %948 = vmatprep.subr.bf16.mxu0 0
      %949 = vmatpush1.bf16.msra.mxu0 %v888
      %950 = vmatprep.subr.bf16.mxu0 0
      %951 = vmatpush1.bf16.msra.mxu0 %v889
      %952 = vmatprep.subr.bf16.mxu0 0
      %953 = vmatpush1.bf16.msra.mxu0 %v890
      %954 = vmatprep.subr.bf16.mxu0 0
      %955 = vmatpush1.bf16.msra.mxu0 %v891
      %956 = vmatprep.mubr.bf16.mxu0 %v730
      %957 = vmatmul.mubr.bf16.gmra.mrb[0].mxu0 %v711
      %v958 = vpop.f32.mrb[0].mxu0
      %v959 = vadd.f32 0.0, %v958
      %v960 = vpop.f32.mrb[0].mxu0
      %v961 = vpop.f32.mrb[0].mxu0
      %v962 = vadd.f32 0.0, %v961
      %v963 = vpop.f32.mrb[0].mxu0
      %964 = vmatprep.mubr.bf16.mxu0 %v731
      %965 = vmatmul.mubr.bf16.gmra.mrb[0].mxu0 %v712
      %v966 = vpop.f32.mrb[0].mxu0
      %v967 = vadd.f32 0.0, %v966
      %v968 = vpop.f32.mrb[0].mxu0
      %v969 = vpop.f32.mrb[0].mxu0
      %v970 = vadd.f32 0.0, %v969
      %v971 = vpop.f32.mrb[0].mxu0
      %972 = vdwg.mxu0
      %973 = vmatprep.subr.bf16.mxu0 0
      %974 = vmatpush1.bf16.msra.mxu0 %v892
      %975 = vmatprep.subr.bf16.mxu0 0
      %976 = vmatpush1.bf16.msra.mxu0 %v893
      %977 = vmatprep.subr.bf16.mxu0 0
      %978 = vmatpush1.bf16.msra.mxu0 %v894
      %979 = vmatprep.subr.bf16.mxu0 0
      %980 = vmatpush1.bf16.msra.mxu0 %v895
      %981 = vmatprep.subr.bf16.mxu0 0
      %982 = vmatpush1.bf16.msra.mxu0 %v896
      %983 = vmatprep.subr.bf16.mxu0 0
      %984 = vmatpush1.bf16.msra.mxu0 %v897
      %985 = vmatprep.subr.bf16.mxu0 0
      %986 = vmatpush1.bf16.msra.mxu0 %v898
      %987 = vmatprep.subr.bf16.mxu0 0
      %988 = vmatpush1.bf16.msra.mxu0 %v899
      %989 = vmatprep.subr.bf16.mxu0 0
      %990 = vmatpush1.bf16.msra.mxu0 0
      %991 = vmatprep.subr.bf16.mxu0 0
      %992 = vmatpush1.bf16.msra.mxu0 0
      %993 = vmatprep.subr.bf16.mxu0 0
      %994 = vmatpush1.bf16.msra.mxu0 0
      %995 = vmatprep.subr.bf16.mxu0 0
      %996 = vmatpush1.bf16.msra.mxu0 0
      %997 = vmatprep.subr.bf16.mxu0 0
      %998 = vmatpush1.bf16.msra.mxu0 0
      %999 = vmatprep.subr.bf16.mxu0 0
      %1000 = vmatpush1.bf16.msra.mxu0 0
      %1001 = vmatprep.subr.bf16.mxu0 0
      %1002 = vmatpush1.bf16.msra.mxu0 0
      %1003 = vmatprep.subr.bf16.mxu0 0
      %1004 = vmatpush1.bf16.msra.mxu0 0
      %1005 = vmatprep.mubr.bf16.mxu0 0
      %1006 = vmatmul.mubr.bf16.gmra.mrb[0].mxu0 %v728
      %v1007 = vpop.f32.mrb[0].mxu0
      %v1008 = vadd.f32 %v959, %v1007
      %v1009 = vpop.f32.mrb[0].mxu0
      %v1010 = vpop.f32.mrb[0].mxu0
      %v1011 = vadd.f32 %v962, %v1010
      %v1012 = vpop.f32.mrb[0].mxu0
      %1013 = vmatprep.mubr.bf16.mxu0 0
      %1014 = vmatmul.mubr.bf16.gmra.mrb[0].mxu0 %v729
      %v1015 = vpop.f32.mrb[0].mxu0
      %v1016 = vadd.f32 %v967, %v1015
      %v1017 = vpop.f32.mrb[0].mxu0
      %v1018 = vpop.f32.mrb[0].mxu0
      %v1019 = vadd.f32 %v970, %v1018
      %v1020 = vpop.f32.mrb[0].mxu0
      %1021 = vdwg.mxu0
      %v1022 = vadd.f32 %v1008, %v1011
      %v1023 = vadd.f32 %v1022, %v1016
      %v1024 = vadd.f32 %v1023, %v1019
      %v1025 = vrot.slane %v1024, 4
      %v1026 = vadd.f32 %v1024, %v1025
      %v1027 = vrot.slane %v1026, 2
      %v1028 = vadd.f32 %v1026, %v1027
      %v1029 = vrot.slane %v1028, 1
      %v1030 = vadd.f32 %v1028, %v1029
      %v1031 = vmul.f32 %v1008, %v1008
      %v1032 = vmul.f32 %v1011, %v1011
      %v1033 = vmul.f32 %v1016, %v1016
      %v1034 = vmul.f32 %v1019, %v1019
      %v1035 = vadd.f32 %v1031, %v1032
      %v1036 = vadd.f32 %v1035, %v1033
      %v1037 = vadd.f32 %v1036, %v1034
      %v1038 = vrot.slane %v1037, 4
      %v1039 = vadd.f32 %v1037, %v1038
      %v1040 = vrot.slane %v1039, 2
      %v1041 = vadd.f32 %v1039, %v1040
      %v1042 = vrot.slane %v1041, 1
      %v1043 = vadd.f32 %v1041, %v1042
      %vm1044 = vcmask 1040384
      %v1045 = vsel %vm1044, %v1030, %v1043
      %vm1046 = vcmask 1041408
      %v1047 = vsel %vm1046, %v1045, 0.0
      %vm1048 = vcmask 1042432
      %v1049 = vsel %vm1048, %v1047, 0.0
      %vm1050 = vcmask 1043456
      %v1051 = vsel %vm1050, %v1049, 0.0
      %vm1052 = vcmask 1044480
      %v1053 = vsel %vm1052, %v1051, 0.0
      %vm1054 = vcmask 1045504
      %v1055 = vsel %vm1054, %v1053, 0.0
      %vm1056 = vcmask 1046528
      %v1057 = vsel %vm1056, %v1055, 0.0
      %1058 = vst [vmem:[%s401] sm:$0xff] %v1057
      %v1059 = vrot.slane %v1022, 4
      %v1060 = vadd.f32 %v1022, %v1059
      %v1061 = vrot.slane %v1060, 2
      %v1062 = vadd.f32 %v1060, %v1061
      %v1063 = vrot.slane %v1062, 1
      %v1064 = vadd.f32 %v1062, %v1063
      %v1065 = vadd.f32 %v1016, %v1019
      %v1066 = vrot.slane %v1065, 4
      %v1067 = vadd.f32 %v1065, %v1066
      %v1068 = vrot.slane %v1067, 2
      %v1069 = vadd.f32 %v1067, %v1068
      %v1070 = vrot.slane %v1069, 1
      %v1071 = vadd.f32 %v1069, %v1070
      %vm1074 = vcmask 1041409
      %v1075 = vsel %vm1074, %v1071, %v1064
      %v1077 = vsel %vm1046, %v1075, 0.0
      %1078 = vst [vmem:[%s405] sm:$0xff] %v1077
      %v1079 = vpack.c.bf16 %v1011, %v1008
      %v1080 = vpack.c.bf16 %v1019, %v1016
      %v1083 = vunpack.c.l.b16 %v1079
      %v1084 = vunpack.c.h.b16 %v1079
      %v1085 = vunpack.c.l.b16 %v1080
      %v1086 = vunpack.c.h.b16 %v1080
      %v1087 = vpack.c.b16 %v1083, %v1083
      %v1088 = vpack.c.b16 %v1084, %v1084
      %v1089 = vpack.c.b16 %v1085, %v1085
      %v1090 = vpack.c.b16 %v1086, %v1086
      %1095 = vst [vmem:[%s396] sm:$0xf] %v1087
      %1096 = vst [vmem:[%s396 + $0x4] sm:$0xf] %v1088
      %1097 = vst [vmem:[%s396 + $0x8] sm:$0xf] %v1089
      %1098 = vst [vmem:[%s396 + $0xc] sm:$0xf] %v1090
      %s1099 = smul.u32 4, %s22
      %p1100 = scmp.lt.s32.totalorder %s1099, 7
      %s1101 = scalar_select %p1100, %s1099, 7
      %s1102 = smul.addr %s1101, 4
      %s1103 = scalar_lea.vmem %s8, %s1102
      %p1104 = scmp.lt.s32.totalorder %s22, 1
      %s1105 = scalar_select %p1104, %s22, 1
      %s1106 = smul.addr %s1105, 8
      %s1107 = scalar_lea.vmem %s9, %s1106
      %p1108 = scmp.lt.s32.totalorder %s22, 1
      %s1109 = scalar_select %p1108, %s22, 1
      %s1110 = smul.addr %s1109, 8
      %s1111 = scalar_lea.vmem %s10, %s1110
      // Predicated region
      $region53: #{basic_block_forward.4} parent=51 // pred_check
        %p1112 = pneg %p218
      $region54: #{basic_block_forward.4} parent=51 // pred_check_branch
        %1114 = sbr.rel (%p1112) target = $region56
      $region55: #{basic_block_forward.4} parent=51 // pred_region
        %s1115 = smul.u32 4, %s22
      $region56: #{basic_block_forward.4} parent=51 // pred_fallthru
        _
      // Predicated region
      $region57: #{basic_block_forward.4} parent=51 // pred_check
        %p1116 = pneg %p244
      $region58: #{basic_block_forward.4} parent=51 // pred_check_branch
        %1118 = sbr.rel (%p1116) target = $region60
      $region59: #{basic_block_forward.4} parent=51 // pred_region
        _
      $region60: #{basic_block_forward.4} parent=51 // pred_fallthru
        _
      // Predicated region
      $region61: #{basic_block_forward.4} parent=51 // pred_check
        %p1119 = pneg %p270
      $region62: #{basic_block_forward.4} parent=51 // pred_check_branch
        %1121 = sbr.rel (%p1119) target = $region64
      $region63: #{basic_block_forward.4} parent=51 // pred_region
        _
      $region64: #{basic_block_forward.4} parent=51 // pred_fallthru
        _
    $region52: #{basic_block_forward.4} parent=5 // pred_fallthru
      _
    %p1122 = scmp.le.s32.totalorder 2, %s17
    // Predicated region
    $region65: #{basic_block_forward.4} parent=5 // pred_check
      %p1123 = pneg %p1122
    $region66: #{basic_block_forward.4} parent=5 // pred_check_branch
      %1125 = sbr.rel (%p1123) target = $region68
    $region67: #{basic_block_forward.4} parent=5 // pred_region
      %s1126 = ssub.s32 %s17, 2
      // Predicated region
      $region69: #{basic_block_forward.4} parent=67 // pred_check
        %p1127 = pneg %p224
      $region70: #{basic_block_forward.4} parent=67 // pred_check_branch
        %1129 = sbr.rel (%p1127) target = $region72
      $region71: #{basic_block_forward.4} parent=67 // pred_region
        %s1130 = smul.u32 4, %s23
        %p1131 = scmp.lt.s32.totalorder %s1130, 7
        %s1132 = scalar_select %p1131, %s1130, 7
        %s1133 = smul.addr %s1132, 4
        %s1134 = scalar_lea.vmem %s8, %s1133
      $region72: #{basic_block_forward.4} parent=67 // pred_fallthru
        _
      // Predicated region
      $region73: #{basic_block_forward.4} parent=67 // pred_check
        %p1135 = pneg %p250
      $region74: #{basic_block_forward.4} parent=67 // pred_check_branch
        %1137 = sbr.rel (%p1135) target = $region76
      $region75: #{basic_block_forward.4} parent=67 // pred_region
        %p1138 = scmp.lt.s32.totalorder %s23, 1
        %s1139 = scalar_select %p1138, %s23, 1
        %s1140 = smul.addr %s1139, 8
        %s1141 = scalar_lea.vmem %s9, %s1140
      $region76: #{basic_block_forward.4} parent=67 // pred_fallthru
        _
      // Predicated region
      $region77: #{basic_block_forward.4} parent=67 // pred_check
        %p1142 = pneg %p276
      $region78: #{basic_block_forward.4} parent=67 // pred_check_branch
        %1144 = sbr.rel (%p1142) target = $region80
      $region79: #{basic_block_forward.4} parent=67 // pred_region
        %p1145 = scmp.lt.s32.totalorder %s23, 1
        %s1146 = scalar_select %p1145, %s23, 1
        %s1147 = smul.addr %s1146, 8
        %s1148 = scalar_lea.vmem %s10, %s1147
      $region80: #{basic_block_forward.4} parent=67 // pred_fallthru
        _
    $region68: #{basic_block_forward.4} parent=5 // pred_fallthru
      _
  $region6: #{basic_block_forward.4} parent=0 // loop_footer
    %s21 = sadd.s32 1, %s17
  $region7: #{basic_block_forward.4} parent=0 // loop_footer_branch
    %16 = sbr.rel target = $region3
  $region8: #{basic_block_forward.4} parent=0 // loop_exit
    _

// kernel: basic_block_forward.5
$region0: #{basic_block_forward.5}
  #allocation0 [shape = 'u32[]', space=smem, size = 0x4, offset = 0x4, fixed_abs, tag = 'smem constant byte address 0x4 - core index']
  #allocation1 [shape = 'u32[144,128]{1,0:T(1,128)}', space=vmem, size = 0x12000, scoped, tag = 'internal scratch']
  %s0 = inlined_call_operand.vmem [shape: bf16[64,16], index: 0, kind: input, shape index: {}]
  %s1 = inlined_call_operand.vmem [shape: bf16[64,128], index: 1, kind: input, shape index: {}]
  %s2 = inlined_call_operand.vmem [shape: bf16[16,128], index: 2, kind: input, shape index: {}]
  %s3 = inlined_call_operand.vmem [shape: bf16[128,128], index: 3, kind: input, shape index: {}]
  %s4 = inlined_call_operand.vmem [shape: bf16[128,128], index: 4, kind: input, shape index: {}]
  %s5 = inlined_call_operand.vmem [shape: f32[8,128], index: 5, kind: input, shape index: {}]
  %s6 = inlined_call_operand.vmem [shape: f32[16,128], index: 6, kind: input, shape index: {}]
  %s7 = inlined_call_operand.vmem [shape: f32[16,128], index: 7, kind: input, shape index: {}]
  %s8 = inlined_call_operand.vmem [shape: f32[16,128], index: 8, kind: input, shape index: {}]
  %s9 = inlined_call_operand.vmem [shape: f32[64,128], index: 9, kind: output, shape index: {}]
  %s10 = sld [smem:[#allocation0]]
  $region69: #{basic_block_forward.5} parent=0
    _
  %s12 = ssub.s32 1, %s10
  %s13 = scalar_select 0, %s12, %s10
  loop: start=0, step=1, limit=4
  $region2: #{basic_block_forward.5} parent=0 // loop_pre_header
    _
  $region3: #{basic_block_forward.5} parent=0 // loop_header
    %s15 = sphi 0, %s19
    %p16 = scmp.ge.s32.totalorder %s15, 4
    %s25 = sphi 0, %s27
    %s28 = sphi 0, %s25
    %s29 = sphi 0, %s28
    %s45 = sphi 0, %s29
    %s51 = sphi 0, %s53
    %s54 = sphi 0, %s51
    %s55 = sphi 0, %s54
    %s71 = sphi 0, %s55
    %s75 = sphi 0, %s75
    %s77 = sphi 0, %s75
    %s78 = sphi 0, %s77
    %s92 = sphi 0, %s78
    %s96 = sphi 0, %s96
    %s98 = sphi 0, %s96
    %s99 = sphi 0, %s98
    %s113 = sphi 0, %s99
    %s117 = sphi 0, %s117
    %s119 = sphi 0, %s117
    %s120 = sphi 0, %s119
    %s134 = sphi 0, %s120
    %s138 = sphi 0, %s138
    %s140 = sphi 0, %s138
    %s141 = sphi 0, %s140
    %s155 = sphi 0, %s141
    %s159 = sphi 0, %s159
    %s161 = sphi 0, %s159
    %s162 = sphi 0, %s161
    %s176 = sphi 0, %s162
    %s180 = sphi 0, %s180
    %s182 = sphi 0, %s180
    %s183 = sphi 0, %s182
    %s197 = sphi 0, %s183
    %s203 = sphi 0, %s205
    %s206 = sphi 0, %s203
    %s207 = sphi 0, %s206
    %s223 = sphi 0, %s207
    %s229 = sphi 0, %s231
    %s232 = sphi 0, %s229
    %s233 = sphi 0, %s232
    %s249 = sphi 0, %s233
  $region4: #{basic_block_forward.5} parent=0 // loop_header_branch
    %18 = sbr.rel (%p16) target = $region8
  $region5: #{basic_block_forward.5} parent=0 // loop_body
    %s20 = ssub.s32 %s15, 1
    %s21 = ssub.s32 %s15, 2
    %s22 = sadd.s32 %s15, 1
    %s23 = ssub.s32 %s15, %s22
    %p24 = scmp.eq.s32.totalorder %s23, 0
    %s26 = sadd.s32 %s25, 1
    %s27 = scalar_select %p24, %s25, %s26
    %p30 = pneg %p24
    %p31 = scmp.eq.s32.totalorder %s15, 1
    %p32 = por %p30, %p31
    %p33 = scmp.ne.s32.totalorder %s25, %s28
    %p34 = scmp.eq.s32.totalorder %s15, 0
    %p35 = por %p33, %p34
    %p36 = scmp.ne.s32.totalorder %s25, %s28
    %p37 = scmp.eq.s32.totalorder %s20, 1
    %p38 = por %p36, %p37
    %p39 = scmp.ne.s32.totalorder %s28, %s29
    %p40 = scmp.eq.s32.totalorder %s20, 0
    %p41 = por %p39, %p40
    %p42 = scmp.ne.s32.totalorder %s28, %s29
    %p43 = scmp.eq.s32.totalorder %s21, 1
    %p44 = por %p42, %p43
    %p46 = scmp.ne.s32.totalorder %s29, %s45
    %p47 = scmp.eq.s32.totalorder %s21, 0
    %p48 = por %p46, %p47
    %s49 = ssub.s32 %s15, %s22
    %p50 = scmp.eq.s32.totalorder %s49, 0
    %s52 = sadd.s32 %s51, 1
    %s53 = scalar_select %p50, %s51, %s52
    %p56 = pneg %p50
    %p57 = scmp.eq.s32.totalorder %s15, 1
    %p58 = por %p56, %p57
    %p59 = scmp.ne.s32.totalorder %s51, %s54
    %p60 = scmp.eq.s32.totalorder %s15, 0
    %p61 = por %p59, %p60
    %p62 = scmp.ne.s32.totalorder %s51, %s54
    %p63 = scmp.eq.s32.totalorder %s20, 1
    %p64 = por %p62, %p63
    %p65 = scmp.ne.s32.totalorder %s54, %s55
    %p66 = scmp.eq.s32.totalorder %s20, 0
    %p67 = por %p65, %p66
    %p68 = scmp.ne.s32.totalorder %s54, %s55
    %p69 = scmp.eq.s32.totalorder %s21, 1
    %p70 = por %p68, %p69
    %p72 = scmp.ne.s32.totalorder %s55, %s71
    %p73 = scmp.eq.s32.totalorder %s21, 0
    %p74 = por %p72, %p73
    %s76 = sadd.s32 %s75, 1
    %p79 = scmp.eq.s32.totalorder %s15, 1
    %p80 = scmp.ne.s32.totalorder %s75, %s77
    %p81 = scmp.eq.s32.totalorder %s15, 0
    %p82 = por %p80, %p81
    %p83 = scmp.ne.s32.totalorder %s75, %s77
    %p84 = scmp.eq.s32.totalorder %s20, 1
    %p85 = por %p83, %p84
    %p86 = scmp.ne.s32.totalorder %s77, %s78
    %p87 = scmp.eq.s32.totalorder %s20, 0
    %p88 = por %p86, %p87
    %p89 = scmp.ne.s32.totalorder %s77, %s78
    %p90 = scmp.eq.s32.totalorder %s21, 1
    %p91 = por %p89, %p90
    %p93 = scmp.ne.s32.totalorder %s78, %s92
    %p94 = scmp.eq.s32.totalorder %s21, 0
    %p95 = por %p93, %p94
    %s97 = sadd.s32 %s96, 1
    %p100 = scmp.eq.s32.totalorder %s15, 1
    %p101 = scmp.ne.s32.totalorder %s96, %s98
    %p102 = scmp.eq.s32.totalorder %s15, 0
    %p103 = por %p101, %p102
    %p104 = scmp.ne.s32.totalorder %s96, %s98
    %p105 = scmp.eq.s32.totalorder %s20, 1
    %p106 = por %p104, %p105
    %p107 = scmp.ne.s32.totalorder %s98, %s99
    %p108 = scmp.eq.s32.totalorder %s20, 0
    %p109 = por %p107, %p108
    %p110 = scmp.ne.s32.totalorder %s98, %s99
    %p111 = scmp.eq.s32.totalorder %s21, 1
    %p112 = por %p110, %p111
    %p114 = scmp.ne.s32.totalorder %s99, %s113
    %p115 = scmp.eq.s32.totalorder %s21, 0
    %p116 = por %p114, %p115
    %s118 = sadd.s32 %s117, 1
    %p121 = scmp.eq.s32.totalorder %s15, 1
    %p122 = scmp.ne.s32.totalorder %s117, %s119
    %p123 = scmp.eq.s32.totalorder %s15, 0
    %p124 = por %p122, %p123
    %p125 = scmp.ne.s32.totalorder %s117, %s119
    %p126 = scmp.eq.s32.totalorder %s20, 1
    %p127 = por %p125, %p126
    %p128 = scmp.ne.s32.totalorder %s119, %s120
    %p129 = scmp.eq.s32.totalorder %s20, 0
    %p130 = por %p128, %p129
    %p131 = scmp.ne.s32.totalorder %s119, %s120
    %p132 = scmp.eq.s32.totalorder %s21, 1
    %p133 = por %p131, %p132
    %p135 = scmp.ne.s32.totalorder %s120, %s134
    %p136 = scmp.eq.s32.totalorder %s21, 0
    %p137 = por %p135, %p136
    %s139 = sadd.s32 %s138, 1
    %p142 = scmp.eq.s32.totalorder %s15, 1
    %p143 = scmp.ne.s32.totalorder %s138, %s140
    %p144 = scmp.eq.s32.totalorder %s15, 0
    %p145 = por %p143, %p144
    %p146 = scmp.ne.s32.totalorder %s138, %s140
    %p147 = scmp.eq.s32.totalorder %s20, 1
    %p148 = por %p146, %p147
    %p149 = scmp.ne.s32.totalorder %s140, %s141
    %p150 = scmp.eq.s32.totalorder %s20, 0
    %p151 = por %p149, %p150
    %p152 = scmp.ne.s32.totalorder %s140, %s141
    %p153 = scmp.eq.s32.totalorder %s21, 1
    %p154 = por %p152, %p153
    %p156 = scmp.ne.s32.totalorder %s141, %s155
    %p157 = scmp.eq.s32.totalorder %s21, 0
    %p158 = por %p156, %p157
    %s160 = sadd.s32 %s159, 1
    %p163 = scmp.eq.s32.totalorder %s15, 1
    %p164 = scmp.ne.s32.totalorder %s159, %s161
    %p165 = scmp.eq.s32.totalorder %s15, 0
    %p166 = por %p164, %p165
    %p167 = scmp.ne.s32.totalorder %s159, %s161
    %p168 = scmp.eq.s32.totalorder %s20, 1
    %p169 = por %p167, %p168
    %p170 = scmp.ne.s32.totalorder %s161, %s162
    %p171 = scmp.eq.s32.totalorder %s20, 0
    %p172 = por %p170, %p171
    %p173 = scmp.ne.s32.totalorder %s161, %s162
    %p174 = scmp.eq.s32.totalorder %s21, 1
    %p175 = por %p173, %p174
    %p177 = scmp.ne.s32.totalorder %s162, %s176
    %p178 = scmp.eq.s32.totalorder %s21, 0
    %p179 = por %p177, %p178
    %s181 = sadd.s32 %s180, 1
    %p184 = scmp.eq.s32.totalorder %s15, 1
    %p185 = scmp.ne.s32.totalorder %s180, %s182
    %p186 = scmp.eq.s32.totalorder %s15, 0
    %p187 = por %p185, %p186
    %p188 = scmp.ne.s32.totalorder %s180, %s182
    %p189 = scmp.eq.s32.totalorder %s20, 1
    %p190 = por %p188, %p189
    %p191 = scmp.ne.s32.totalorder %s182, %s183
    %p192 = scmp.eq.s32.totalorder %s20, 0
    %p193 = por %p191, %p192
    %p194 = scmp.ne.s32.totalorder %s182, %s183
    %p195 = scmp.eq.s32.totalorder %s21, 1
    %p196 = por %p194, %p195
    %p198 = scmp.ne.s32.totalorder %s183, %s197
    %p199 = scmp.eq.s32.totalorder %s21, 0
    %p200 = por %p198, %p199
    %s201 = ssub.s32 %s15, %s22
    %p202 = scmp.eq.s32.totalorder %s201, 0
    %s204 = sadd.s32 %s203, 1
    %s205 = scalar_select %p202, %s203, %s204
    %p208 = pneg %p202
    %p209 = scmp.eq.s32.totalorder %s15, 1
    %p210 = por %p208, %p209
    %p211 = scmp.ne.s32.totalorder %s203, %s206
    %p212 = scmp.eq.s32.totalorder %s15, 0
    %p213 = por %p211, %p212
    %p214 = scmp.ne.s32.totalorder %s203, %s206
    %p215 = scmp.eq.s32.totalorder %s20, 1
    %p216 = por %p214, %p215
    %p217 = scmp.ne.s32.totalorder %s206, %s207
    %p218 = scmp.eq.s32.totalorder %s20, 0
    %p219 = por %p217, %p218
    %p220 = scmp.ne.s32.totalorder %s206, %s207
    %p221 = scmp.eq.s32.totalorder %s21, 1
    %p222 = por %p220, %p221
    %p224 = scmp.ne.s32.totalorder %s207, %s223
    %p225 = scmp.eq.s32.totalorder %s21, 0
    %p226 = por %p224, %p225
    %s227 = ssub.s32 %s15, %s22
    %p228 = scmp.eq.s32.totalorder %s227, 0
    %s230 = sadd.s32 %s229, 1
    %s231 = scalar_select %p228, %s229, %s230
    %p234 = pneg %p228
    %p235 = scmp.eq.s32.totalorder %s15, 1
    %p236 = por %p234, %p235
    %p237 = scmp.ne.s32.totalorder %s229, %s232
    %p238 = scmp.eq.s32.totalorder %s15, 0
    %p239 = por %p237, %p238
    %p240 = scmp.ne.s32.totalorder %s229, %s232
    %p241 = scmp.eq.s32.totalorder %s20, 1
    %p242 = por %p240, %p241
    %p243 = scmp.ne.s32.totalorder %s232, %s233
    %p244 = scmp.eq.s32.totalorder %s20, 0
    %p245 = por %p243, %p244
    %p246 = scmp.ne.s32.totalorder %s232, %s233
    %p247 = scmp.eq.s32.totalorder %s21, 1
    %p248 = por %p246, %p247
    %p250 = scmp.ne.s32.totalorder %s233, %s249
    %p251 = scmp.eq.s32.totalorder %s21, 0
    %p252 = por %p250, %p251
    %p253 = scmp.le.s32.totalorder 1, %s15
    %p254 = scmp.lt.s32.totalorder %s15, 3
    %p255 = pnand %p253, %p254
    %p256 = pneg %p255
    // Predicated region
    $region9: #{basic_block_forward.5} parent=5 // pred_check
      _
    $region10: #{basic_block_forward.5} parent=5 // pred_check_branch
      %258 = sbr.rel (%p255) target = $region12
    $region11: #{basic_block_forward.5} parent=5 // pred_region
      %s259 = ssub.s32 %s15, 1
      // Predicated region
      $region13: #{basic_block_forward.5} parent=11 // pred_check
        %p260 = pneg %p88
      $region14: #{basic_block_forward.5} parent=11 // pred_check_branch
        %262 = sbr.rel (%p260) target = $region16
      $region15: #{basic_block_forward.5} parent=11 // pred_region
        _
      $region16: #{basic_block_forward.5} parent=11 // pred_fallthru
        _
      // Predicated region
      $region17: #{basic_block_forward.5} parent=11 // pred_check
        %p263 = pneg %p109
      $region18: #{basic_block_forward.5} parent=11 // pred_check_branch
        %265 = sbr.rel (%p263) target = $region20
      $region19: #{basic_block_forward.5} parent=11 // pred_region
        _
      $region20: #{basic_block_forward.5} parent=11 // pred_fallthru
        _
      // Predicated region
      $region21: #{basic_block_forward.5} parent=11 // pred_check
        %p266 = pneg %p130
      $region22: #{basic_block_forward.5} parent=11 // pred_check_branch
        %268 = sbr.rel (%p266) target = $region24
      $region23: #{basic_block_forward.5} parent=11 // pred_region
        _
      $region24: #{basic_block_forward.5} parent=11 // pred_fallthru
        _
      // Predicated region
      $region25: #{basic_block_forward.5} parent=11 // pred_check
        %p269 = pneg %p151
      $region26: #{basic_block_forward.5} parent=11 // pred_check_branch
        %271 = sbr.rel (%p269) target = $region28
      $region27: #{basic_block_forward.5} parent=11 // pred_region
        _
      $region28: #{basic_block_forward.5} parent=11 // pred_fallthru
        _
      // Predicated region
      $region29: #{basic_block_forward.5} parent=11 // pred_check
        %p272 = pneg %p172
      $region30: #{basic_block_forward.5} parent=11 // pred_check_branch
        %274 = sbr.rel (%p272) target = $region32
      $region31: #{basic_block_forward.5} parent=11 // pred_region
        _
      $region32: #{basic_block_forward.5} parent=11 // pred_fallthru
        _
      // Predicated region
      $region33: #{basic_block_forward.5} parent=11 // pred_check
        %p275 = pneg %p193
      $region34: #{basic_block_forward.5} parent=11 // pred_check_branch
        %277 = sbr.rel (%p275) target = $region36
      $region35: #{basic_block_forward.5} parent=11 // pred_region
        _
      $region36: #{basic_block_forward.5} parent=11 // pred_fallthru
        _
    $region12: #{basic_block_forward.5} parent=5 // pred_fallthru
      _
    %p278 = scmp.lt.s32.totalorder %s15, 2
    // Predicated region
    $region37: #{basic_block_forward.5} parent=5 // pred_check
      %p279 = pneg %p278
    $region38: #{basic_block_forward.5} parent=5 // pred_check_branch
      %281 = sbr.rel (%p279) target = $region40
    $region39: #{basic_block_forward.5} parent=5 // pred_region
      // Predicated region
      $region41: #{basic_block_forward.5} parent=39 // pred_check
        %p282 = pneg %p35
      $region42: #{basic_block_forward.5} parent=39 // pred_check_branch
        %284 = sbr.rel (%p282) target = $region44
      $region43: #{basic_block_forward.5} parent=39 // pred_region
        %s285 = smul.u32 4, %s15
        %p286 = scmp.lt.s32.totalorder %s285, 7
        %s287 = scalar_select %p286, %s285, 7
        %s288 = smul.addr %s287, 4
        %s289 = scalar_lea.vmem %s0, %s288
        %s290 = smul.u32 4, %s15
      $region44: #{basic_block_forward.5} parent=39 // pred_fallthru
        _
      // Predicated region
      $region45: #{basic_block_forward.5} parent=39 // pred_check
        %p291 = pneg %p61
      $region46: #{basic_block_forward.5} parent=39 // pred_check_branch
        %293 = sbr.rel (%p291) target = $region48
      $region47: #{basic_block_forward.5} parent=39 // pred_region
        %s294 = smul.u32 4, %s15
        %p295 = scmp.lt.s32.totalorder %s294, 7
        %s296 = scalar_select %p295, %s294, 7
        %s297 = smul.addr %s296, 4
        %s298 = scalar_lea.vmem %s1, %s297
        %s299 = smul.u32 4, %s15
      $region48: #{basic_block_forward.5} parent=39 // pred_fallthru
        _
      // Predicated region
      $region49: #{basic_block_forward.5} parent=39 // pred_check
        %p300 = pneg %p213
      $region50: #{basic_block_forward.5} parent=39 // pred_check_branch
        %302 = sbr.rel (%p300) target = $region52
      $region51: #{basic_block_forward.5} parent=39 // pred_region
        %p303 = scmp.lt.s32.totalorder %s15, 1
        %s304 = scalar_select %p303, %s15, 1
        %s305 = smul.addr %s304, 8
        %s306 = scalar_lea.vmem %s8, %s305
      $region52: #{basic_block_forward.5} parent=39 // pred_fallthru
        _
    $region40: #{basic_block_forward.5} parent=5 // pred_fallthru
      _
    %p307 = scmp.le.s32.totalorder 1, %s15
    %p308 = scmp.lt.s32.totalorder %s15, 3
    %p309 = pnand %p307, %p308
    %p310 = pneg %p309
    // Predicated region
    $region53: #{basic_block_forward.5} parent=5 // pred_check
      _
    $region54: #{basic_block_forward.5} parent=5 // pred_check_branch
      %312 = sbr.rel (%p309) target = $region56
    $region55: #{basic_block_forward.5} parent=5 // pred_region
      %s313 = ssub.s32 %s15, 1
      %s314 = smul.u32 4, %s20
      %p315 = scmp.lt.s32.totalorder %s314, 7
      %s316 = scalar_select %p315, %s314, 7
      %s317 = smul.addr %s316, 4
      %s318 = scalar_lea.vmem %s0, %s317
      %p319 = pneg %p41
      %p320 = pneg %p38
      %s321 = smul.u32 4, %s20
      %p322 = scmp.lt.s32.totalorder %s321, 7
      %s323 = scalar_select %p322, %s321, 7
      %s324 = smul.addr %s323, 4
      %s325 = scalar_lea.vmem %s1, %s324
      %p326 = pneg %p67
      %p327 = pneg %p64
      %p328 = pneg %p88
      %p329 = pneg %p85
      %p330 = pneg %p109
      %p331 = pneg %p106
      %p332 = pneg %p130
      %p333 = pneg %p127
      %p334 = pneg %p151
      %p335 = pneg %p148
      %p336 = pneg %p172
      %p337 = pneg %p169
      %p338 = pneg %p193
      %p339 = pneg %p190
      %p340 = scmp.lt.s32.totalorder %s20, 1
      %s341 = scalar_select %p340, %s20, 1
      %s342 = smul.addr %s341, 8
      %s343 = scalar_lea.vmem %s8, %s342
      %p344 = pneg %p219
      %p345 = pneg %p216
      %p346 = pneg %p245
      %p347 = pneg %p242
      %s348 = smul.u32 4, %s20
      %p349 = scmp.lt.s32.totalorder %s348, 7
      %s350 = scalar_select %p349, %s348, 7
      %s351 = smul.addr %s350, 8
      %s352 = scalar_lea.vmem %s9, %s351
      %s353 = smul.u32 4, %s20
      %p354 = scmp.lt.s32.totalorder %s353, 7
      %s355 = scalar_select %p354, %s353, 7
      %s356 = smul.addr %s355, 4
      %s357 = scalar_lea.vmem %s0, %s356
      %s358 = smul.u32 4, %s20
      %s359 = smul.u32 4, %s20
      %p360 = scmp.lt.s32.totalorder %s359, 7
      %s361 = scalar_select %p360, %s359, 7
      %s362 = smul.addr %s361, 4
      %s363 = scalar_lea.vmem %s1, %s362
      %s364 = smul.u32 4, %s20
      %p365 = scmp.lt.s32.totalorder %s20, 1
      %s366 = scalar_select %p365, %s20, 1
      %s367 = smul.addr %s366, 8
      %s368 = scalar_lea.vmem %s8, %s367
      %s369 = smul.u32 4, %s20
      %p370 = scmp.lt.s32.totalorder %s369, 7
      %s371 = scalar_select %p370, %s369, 7
      %s372 = smul.addr %s371, 8
      %s373 = scalar_lea.vmem %s9, %s372
      %s374 = smul.u32 4, %s20
      %v376 = vld [vmem:[%s5] sm:$0xff]
      %v377 = vld [vmem:[%s6] sm:$0xff]
      %v378 = vld [vmem:[%s6 + $0x8] sm:$0xff]
      %v379 = vadd.f32 %v377, %v378
      %v380 = vld [vmem:[%s7] sm:$0xff]
      %v381 = vld [vmem:[%s7 + $0x8] sm:$0xff]
      %v382 = vadd.f32 %v380, %v381
      %v383 = vmul.f32 %v382, 0.015625
      %v384 = vmul.f32 %v383, %v383
      %v386 = vrot.slane %v384, 7
      %v388 = vsub.f32 %v383, %v386
      %v389 = vmax.f32 %v388, 0.0
      %v390 = vadd.f32 %v389, 1e-05
      %v391 = vrsqrt.pop %v390
      %v393 = vrot.slane %v391, 7
      %v395 = vmul.f32 %v376, %v393
      %v397 = vrot.slane %v395, 2
      %v399 = vmul.f32 %v383, %v397
      %v401 = vrot.slane %v399, 5
      %v403 = vsub.f32 %v376, %v401
      %v404 = vmul.f32 %v379, 0.015625
      %v405 = vmul.f32 %v404, %v404
      %v407 = vrot.slane %v405, 7
      %v409 = vsub.f32 %v404, %v407
      %v410 = vmax.f32 %v409, 0.0
      %v411 = vadd.f32 %v410, 1e-05
      %v412 = vrsqrt.pop %v411
      %v414 = vrot.slane %v412, 7
      %v416 = vmul.f32 %v376, %v414
      %v418 = vrot.slane %v416, 2
      %v420 = vmul.f32 %v404, %v418
      %v422 = vrot.slane %v420, 5
      %v424 = vsub.f32 %v376, %v422
      %v425 = vld [vmem:[%s357] sm:$0xf]
      %v426 = vld [vmem:[%s357 + $0x4] sm:$0xf]
      %v427 = vld [vmem:[%s357 + $0x8] sm:$0xf]
      %v428 = vld [vmem:[%s357 + $0xc] sm:$0xf]
      %v429 = vld [vmem:[%s2] sm:$0xf]
      %v430 = vld [vmem:[%s2 + $0x4] sm:$0xf]
      %v435 = vunpack.c.l.b16 %v425
      %v436 = vunpack.c.l.b16 %v426
      %v437 = vunpack.c.l.b16 %v427
      %v438 = vunpack.c.l.b16 %v428
      %v439 = vpack.c.b16 %v436, %v435
      %v440 = vpack.c.b16 %v438, %v437
      %v443 = vunpack.c.l.b16 %v429
      %v444 = vunpack.c.l.b16 %v430
      %v445 = vpack.c.b16 %v444, %v443
      %vm447 = vcmask 130048
      %v449 = vsel %vm447, %v439, 0
      %v452 = vsel %vm447, %v440, 0
      %454 = vmatprep.subr.bf16.mxu0 0
      %455 = vmatpush1.bf16.msra.mxu0 %v445
      %456 = vmatprep.subr.bf16.mxu0 0
      %457 = vmatpush1.bf16.msra.mxu0 0
      %458 = vmatprep.subr.bf16.mxu0 0
      %459 = vmatpush1.bf16.msra.mxu0 0
      %460 = vmatprep.subr.bf16.mxu0 0
      %461 = vmatpush1.bf16.msra.mxu0 0
      %462 = vmatprep.subr.bf16.mxu0 0
      %463 = vmatpush1.bf16.msra.mxu0 0
      %464 = vmatprep.subr.bf16.mxu0 0
      %465 = vmatpush1.bf16.msra.mxu0 0
      %466 = vmatprep.subr.bf16.mxu0 0
      %467 = vmatpush1.bf16.msra.mxu0 0
      %468 = vmatprep.subr.bf16.mxu0 0
      %469 = vmatpush1.bf16.msra.mxu0 0
      %470 = vmatprep.subr.bf16.mxu0 0
      %471 = vmatpush1.bf16.msra.mxu0 0
      %472 = vmatprep.subr.bf16.mxu0 0
      %473 = vmatpush1.bf16.msra.mxu0 0
      %474 = vmatprep.subr.bf16.mxu0 0
      %475 = vmatpush1.bf16.msra.mxu0 0
      %476 = vmatprep.subr.bf16.mxu0 0
      %477 = vmatpush1.bf16.msra.mxu0 0
      %478 = vmatprep.subr.bf16.mxu0 0
      %479 = vmatpush1.bf16.msra.mxu0 0
      %480 = vmatprep.subr.bf16.mxu0 0
      %481 = vmatpush1.bf16.msra.mxu0 0
      %482 = vmatprep.subr.bf16.mxu0 0
      %483 = vmatpush1.bf16.msra.mxu0 0
      %484 = vmatprep.subr.bf16.mxu0 0
      %485 = vmatpush1.bf16.msra.mxu0 0
      %486 = vmatprep.mubr.bf16.mxu0 0
      %487 = vmatmul.mubr.bf16.gmra.mrb[0].mxu0 %v449
      %v488 = vpop.f32.mrb[0].mxu0
      %v489 = vadd.f32 0.0, %v488
      %v490 = vpop.f32.mrb[0].mxu0
      %v491 = vpop.f32.mrb[0].mxu0
      %v492 = vadd.f32 0.0, %v491
      %v493 = vpop.f32.mrb[0].mxu0
      %494 = vmatprep.mubr.bf16.mxu0 0
      %495 = vmatmul.mubr.bf16.gmra.mrb[0].mxu0 %v452
      %v496 = vpop.f32.mrb[0].mxu0
      %v497 = vadd.f32 0.0, %v496
      %v498 = vpop.f32.mrb[0].mxu0
      %v499 = vpop.f32.mrb[0].mxu0
      %v500 = vadd.f32 0.0, %v499
      %v501 = vpop.f32.mrb[0].mxu0
      %502 = vdwg.mxu0
      %v503 = vlaneseq
      %v504 = vshrl.u32 %v503, 7
      %v505 = vsub.s32 4, %v504
      %v506 = vrot.slane %v416, %v505
      %v507 = vmul.f32 %v489, %v506
      %v508 = vmul.f32 %v492, %v506
      %v509 = vmul.f32 %v497, %v506
      %v510 = vmul.f32 %v500, %v506
      %v511 = vlaneseq
      %v512 = vshrl.u32 %v511, 7
      %v513 = vsub.s32 5, %v512
      %v514 = vrot.slane %v424, %v513
      %v515 = vadd.f32 %v507, %v514
      %v516 = vadd.f32 %v508, %v514
      %v517 = vadd.f32 %v509, %v514
      %v518 = vadd.f32 %v510, %v514
      %v519 = vld [vmem:[%s363] sm:$0xf]
      %v520 = vld [vmem:[%s363 + $0x4] sm:$0xf]
      %v521 = vld [vmem:[%s363 + $0x8] sm:$0xf]
      %v522 = vld [vmem:[%s363 + $0xc] sm:$0xf]
      %v523 = vunpack.c.l.bf16 %v519
      %v524 = vunpack.c.l.bf16 %v520
      %v525 = vunpack.c.l.bf16 %v521
      %v526 = vunpack.c.l.bf16 %v522
      %v527 = vlaneseq
      %v528 = vshrl.u32 %v527, 7
      %v529 = vsub.s32 2, %v528
      %v530 = vrot.slane %v395, %v529
      %v531 = vmul.f32 %v523, %v530
      %v532 = vmul.f32 %v524, %v530
      %v533 = vmul.f32 %v525, %v530
      %v534 = vmul.f32 %v526, %v530
      %v535 = vlaneseq
      %v536 = vshrl.u32 %v535, 7
      %v537 = vsub.s32 3, %v536
      %v538 = vrot.slane %v403, %v537
      %v539 = vadd.f32 %v531, %v538
      %v540 = vadd.f32 %v532, %v538
      %v541 = vadd.f32 %v533, %v538
      %v542 = vadd.f32 %v534, %v538
      %v543 = vld [vmem:[%s368] sm:$0xff]
      %v544 = vmul.f32 %v395, 0.0625
      %v545 = vlaneseq
      %v546 = vshrl.u32 %v545, 7
      %v547 = vsub.s32 2, %v546
      %v548 = vrot.slane %v544, %v547
      %v549 = vmul.f32 %v543, %v548
      %v550 = vadd.f32 %v549, %v538
      %v551 = vpack.c.bf16 %v550, %v550
      %v552 = vld [vmem:[%s3] sm:$0xf]
      %v553 = vld [vmem:[%s3 + $0x4] sm:$0xf]
      %v554 = vld [vmem:[%s3 + $0x8] sm:$0xf]
      %v555 = vld [vmem:[%s3 + $0xc] sm:$0xf]
      %v556 = vld [vmem:[%s3 + $0x10] sm:$0xf]
      %v557 = vld [vmem:[%s3 + $0x14] sm:$0xf]
      %v558 = vld [vmem:[%s3 + $0x18] sm:$0xf]
      %v559 = vld [vmem:[%s3 + $0x1c] sm:$0xf]
      %v560 = vld [vmem:[%s3 + $0x20] sm:$0xf]
      %v561 = vld [vmem:[%s3 + $0x24] sm:$0xf]
      %v562 = vld [vmem:[%s3 + $0x28] sm:$0xf]
      %v563 = vld [vmem:[%s3 + $0x2c] sm:$0xf]
      %v564 = vld [vmem:[%s3 + $0x30] sm:$0xf]
      %v565 = vld [vmem:[%s3 + $0x34] sm:$0xf]
      %v566 = vld [vmem:[%s3 + $0x38] sm:$0xf]
      %v567 = vld [vmem:[%s3 + $0x3c] sm:$0xf]
      %v584 = vunpack.c.l.b16 %v552
      %v585 = vunpack.c.l.b16 %v553
      %v586 = vunpack.c.l.b16 %v554
      %v587 = vunpack.c.l.b16 %v555
      %v588 = vunpack.c.l.b16 %v556
      %v589 = vunpack.c.l.b16 %v557
      %v590 = vunpack.c.l.b16 %v558
      %v591 = vunpack.c.l.b16 %v559
      %v592 = vunpack.c.l.b16 %v560
      %v593 = vunpack.c.l.b16 %v561
      %v594 = vunpack.c.l.b16 %v562
      %v595 = vunpack.c.l.b16 %v563
      %v596 = vunpack.c.l.b16 %v564
      %v597 = vunpack.c.l.b16 %v565
      %v598 = vunpack.c.l.b16 %v566
      %v599 = vunpack.c.l.b16 %v567
      %v600 = vpack.c.b16 %v585, %v584
      %v601 = vpack.c.b16 %v587, %v586
      %v602 = vpack.c.b16 %v589, %v588
      %v603 = vpack.c.b16 %v591, %v590
      %v604 = vpack.c.b16 %v593, %v592
      %v605 = vpack.c.b16 %v595, %v594
      %v606 = vpack.c.b16 %v597, %v596
      %v607 = vpack.c.b16 %v599, %v598
      %616 = vmatprep.subr.bf16.mxu0 0
      %617 = vmatpush1.bf16.msra.mxu0 %v600
      %618 = vmatprep.subr.bf16.mxu0 0
      %619 = vmatpush1.bf16.msra.mxu0 %v601
      %620 = vmatprep.subr.bf16.mxu0 0
      %621 = vmatpush1.bf16.msra.mxu0 %v602
      %622 = vmatprep.subr.bf16.mxu0 0
      %623 = vmatpush1.bf16.msra.mxu0 %v603
      %624 = vmatprep.subr.bf16.mxu0 0
      %625 = vmatpush1.bf16.msra.mxu0 %v604
      %626 = vmatprep.subr.bf16.mxu0 0
      %627 = vmatpush1.bf16.msra.mxu0 %v605
      %628 = vmatprep.subr.bf16.mxu0 0
      %629 = vmatpush1.bf16.msra.mxu0 %v606
      %630 = vmatprep.subr.bf16.mxu0 0
      %631 = vmatpush1.bf16.msra.mxu0 %v607
      %632 = vmatprep.subr.bf16.mxu0 0
      %633 = vmatpush1.bf16.msra.mxu0 0
      %634 = vmatprep.subr.bf16.mxu0 0
      %635 = vmatpush1.bf16.msra.mxu0 0
      %636 = vmatprep.subr.bf16.mxu0 0
      %637 = vmatpush1.bf16.msra.mxu0 0
      %638 = vmatprep.subr.bf16.mxu0 0
      %639 = vmatpush1.bf16.msra.mxu0 0
      %640 = vmatprep.subr.bf16.mxu0 0
      %641 = vmatpush1.bf16.msra.mxu0 0
      %642 = vmatprep.subr.bf16.mxu0 0
      %643 = vmatpush1.bf16.msra.mxu0 0
      %644 = vmatprep.subr.bf16.mxu0 0
      %645 = vmatpush1.bf16.msra.mxu0 0
      %646 = vmatprep.subr.bf16.mxu0 0
      %647 = vmatpush1.bf16.msra.mxu0 0
      %648 = vmatprep.mubr.bf16.mxu0 0
      %649 = vmatmul.mubr.bf16.gmra.mrb[0].mxu0 %v551
      %v650 = vpop.f32.mrb[0].mxu0
      %v651 = vadd.f32 0.0, %v650
      %v652 = vpop.f32.mrb[0].mxu0
      %v653 = vpop.f32.mrb[0].mxu0
      %v654 = vpop.f32.mrb[0].mxu0
      %655 = vdwg.mxu0
      %v656 = vmax.f32 %v651, 0.0
      %v657 = vpack.c.bf16 %v656, %v656
      %v658 = vld [vmem:[%s4] sm:$0xf]
      %v659 = vld [vmem:[%s4 + $0x4] sm:$0xf]
      %v660 = vld [vmem:[%s4 + $0x8] sm:$0xf]
      %v661 = vld [vmem:[%s4 + $0xc] sm:$0xf]
      %v662 = vld [vmem:[%s4 + $0x10] sm:$0xf]
      %v663 = vld [vmem:[%s4 + $0x14] sm:$0xf]
      %v664 = vld [vmem:[%s4 + $0x18] sm:$0xf]
      %v665 = vld [vmem:[%s4 + $0x1c] sm:$0xf]
      %v666 = vld [vmem:[%s4 + $0x20] sm:$0xf]
      %v667 = vld [vmem:[%s4 + $0x24] sm:$0xf]
      %v668 = vld [vmem:[%s4 + $0x28] sm:$0xf]
      %v669 = vld [vmem:[%s4 + $0x2c] sm:$0xf]
      %v670 = vld [vmem:[%s4 + $0x30] sm:$0xf]
      %v671 = vld [vmem:[%s4 + $0x34] sm:$0xf]
      %v672 = vld [vmem:[%s4 + $0x38] sm:$0xf]
      %v673 = vld [vmem:[%s4 + $0x3c] sm:$0xf]
      %v690 = vunpack.c.l.b16 %v658
      %v691 = vunpack.c.l.b16 %v659
      %v692 = vunpack.c.l.b16 %v660
      %v693 = vunpack.c.l.b16 %v661
      %v694 = vunpack.c.l.b16 %v662
      %v695 = vunpack.c.l.b16 %v663
      %v696 = vunpack.c.l.b16 %v664
      %v697 = vunpack.c.l.b16 %v665
      %v698 = vunpack.c.l.b16 %v666
      %v699 = vunpack.c.l.b16 %v667
      %v700 = vunpack.c.l.b16 %v668
      %v701 = vunpack.c.l.b16 %v669
      %v702 = vunpack.c.l.b16 %v670
      %v703 = vunpack.c.l.b16 %v671
      %v704 = vunpack.c.l.b16 %v672
      %v705 = vunpack.c.l.b16 %v673
      %v706 = vpack.c.b16 %v691, %v690
      %v707 = vpack.c.b16 %v693, %v692
      %v708 = vpack.c.b16 %v695, %v694
      %v709 = vpack.c.b16 %v697, %v696
      %v710 = vpack.c.b16 %v699, %v698
      %v711 = vpack.c.b16 %v701, %v700
      %v712 = vpack.c.b16 %v703, %v702
      %v713 = vpack.c.b16 %v705, %v704
      %722 = vmatprep.subr.bf16.mxu0 0
      %723 = vmatpush1.bf16.msra.mxu0 %v706
      %724 = vmatprep.subr.bf16.mxu0 0
      %725 = vmatpush1.bf16.msra.mxu0 %v707
      %726 = vmatprep.subr.bf16.mxu0 0
      %727 = vmatpush1.bf16.msra.mxu0 %v708
      %728 = vmatprep.subr.bf16.mxu0 0
      %729 = vmatpush1.bf16.msra.mxu0 %v709
      %730 = vmatprep.subr.bf16.mxu0 0
      %731 = vmatpush1.bf16.msra.mxu0 %v710
      %732 = vmatprep.subr.bf16.mxu0 0
      %733 = vmatpush1.bf16.msra.mxu0 %v711
      %734 = vmatprep.subr.bf16.mxu0 0
      %735 = vmatpush1.bf16.msra.mxu0 %v712
      %736 = vmatprep.subr.bf16.mxu0 0
      %737 = vmatpush1.bf16.msra.mxu0 %v713
      %738 = vmatprep.subr.bf16.mxu0 0
      %739 = vmatpush1.bf16.msra.mxu0 0
      %740 = vmatprep.subr.bf16.mxu0 0
      %741 = vmatpush1.bf16.msra.mxu0 0
      %742 = vmatprep.subr.bf16.mxu0 0
      %743 = vmatpush1.bf16.msra.mxu0 0
      %744 = vmatprep.subr.bf16.mxu0 0
      %745 = vmatpush1.bf16.msra.mxu0 0
      %746 = vmatprep.subr.bf16.mxu0 0
      %747 = vmatpush1.bf16.msra.mxu0 0
      %748 = vmatprep.subr.bf16.mxu0 0
      %749 = vmatpush1.bf16.msra.mxu0 0
      %750 = vmatprep.subr.bf16.mxu0 0
      %751 = vmatpush1.bf16.msra.mxu0 0
      %752 = vmatprep.subr.bf16.mxu0 0
      %753 = vmatpush1.bf16.msra.mxu0 0
      %754 = vmatprep.mubr.bf16.mxu0 0
      %755 = vmatmul.mubr.bf16.gmra.mrb[0].mxu0 %v657
      %v756 = vpop.f32.mrb[0].mxu0
      %v757 = vadd.f32 0.0, %v756
      %v758 = vpop.f32.mrb[0].mxu0
      %v759 = vpop.f32.mrb[0].mxu0
      %v760 = vpop.f32.mrb[0].mxu0
      %761 = vdwg.mxu0
      %v762 = vxor.u32 %v757, 2147483648
      %v763 = vmul.f32 %v762, 1.442695
      %v764 = vpow.pop %v763
      %v765 = vadd.f32 %v764, 1.0
      %v766 = vrcp.pop %v765
      %v767 = vmul.f32 1.0, %v766
      %v770 = vunpack.c.l.s4 1966171168
      %v771 = vunpack.c.0.s8 %v770
      %v772 = vlaneseq
      %v773 = vshrl.u32 %v772, 7
      %v774 = vsub.s32 %v771, %v773
      %v775 = vrot.slane %v767, %v774
      %v776 = vcombine.high %v775, %v775
      %v778 = vunpack.c.l.s4 1966171168
      %v779 = vunpack.c.0.s8 %v778
      %v780 = vlaneseq
      %v781 = vshrl.u32 %v780, 7
      %v782 = vsub.s32 %v779, %v781
      %v783 = vrot.slane %v775, %v782
      %v785 = vunpack.c.l.s4 1966171168
      %v786 = vunpack.c.0.s8 %v785
      %v787 = vlaneseq
      %v788 = vshrl.u32 %v787, 7
      %v789 = vsub.s32 %v786, %v788
      %v790 = vrot.slane %v776, %v789
      %v791 = vlaneseq
      %v792 = vshrl.u32 %v791, 7
      %v793 = vsub.s32 0, %v792
      %v794 = vrot.slane %v783, %v793
      %v795 = vlaneseq
      %v796 = vshrl.u32 %v795, 7
      %v797 = vsub.s32 0, %v796
      %v798 = vrot.slane %v790, %v797
      %v801 = vmul.f32 %v539, %v794
      %v802 = vmul.f32 %v540, %v794
      %v803 = vmul.f32 %v541, %v798
      %v804 = vmul.f32 %v542, %v798
      %v805 = vadd.f32 %v801, %v515
      %v806 = vadd.f32 %v802, %v516
      %v807 = vadd.f32 %v803, %v517
      %v808 = vadd.f32 %v804, %v518
      %v809 = vmax.f32 %v805, 0.0
      %v810 = vmax.f32 %v806, 0.0
      %v811 = vmax.f32 %v807, 0.0
      %v812 = vmax.f32 %v808, 0.0
      %813 = vst [vmem:[%s373] sm:$0xff] %v809
      %814 = vst [vmem:[%s373 + $0x8] sm:$0xff] %v810
      %815 = vst [vmem:[%s373 + $0x10] sm:$0xff] %v811
      %816 = vst [vmem:[%s373 + $0x18] sm:$0xff] %v812
      %s817 = smul.u32 4, %s20
      %p818 = scmp.lt.s32.totalorder %s817, 7
      %s819 = scalar_select %p818, %s817, 7
      %s820 = smul.addr %s819, 8
      %s821 = scalar_lea.vmem %s9, %s820
      // Predicated region
      $region57: #{basic_block_forward.5} parent=55 // pred_check
        %p822 = pneg %p242
      $region58: #{basic_block_forward.5} parent=55 // pred_check_branch
        %824 = sbr.rel (%p822) target = $region60
      $region59: #{basic_block_forward.5} parent=55 // pred_region
        %s825 = smul.u32 4, %s20
      $region60: #{basic_block_forward.5} parent=55 // pred_fallthru
        _
    $region56: #{basic_block_forward.5} parent=5 // pred_fallthru
      _
    %p826 = scmp.le.s32.totalorder 2, %s15
    // Predicated region
    $region61: #{basic_block_forward.5} parent=5 // pred_check
      %p827 = pneg %p826
    $region62: #{basic_block_forward.5} parent=5 // pred_check_branch
      %829 = sbr.rel (%p827) target = $region64
    $region63: #{basic_block_forward.5} parent=5 // pred_region
      %s830 = ssub.s32 %s15, 2
      // Predicated region
      $region65: #{basic_block_forward.5} parent=63 // pred_check
        %p831 = pneg %p248
      $region66: #{basic_block_forward.5} parent=63 // pred_check_branch
        %833 = sbr.rel (%p831) target = $region68
      $region67: #{basic_block_forward.5} parent=63 // pred_region
        %s834 = smul.u32 4, %s21
        %p835 = scmp.lt.s32.totalorder %s834, 7
        %s836 = scalar_select %p835, %s834, 7
        %s837 = smul.addr %s836, 8
        %s838 = scalar_lea.vmem %s9, %s837
      $region68: #{basic_block_forward.5} parent=63 // pred_fallthru
        _
    $region64: #{basic_block_forward.5} parent=5 // pred_fallthru
      _
  $region6: #{basic_block_forward.5} parent=0 // loop_footer
    %s19 = sadd.s32 1, %s15
  $region7: #{basic_block_forward.5} parent=0 // loop_footer_branch
    %14 = sbr.rel target = $region3
  $region8: #{basic_block_forward.5} parent=0 // loop_exit
    _

</llo_original>
